<compile_context>
chip_gen: v7x
topology: tpu7x:2x2x1
jax: 0.10.0
libtpu: 0.0.40
codegen_flags: <defaults>
</compile_context>

<pallas_src>
import functools

import jax
import jax.numpy as jnp
from jax.experimental import pallas as pl
from jax.experimental.pallas import tpu as pltpu


def _softplus(x):
    # matches torch.nn.functional.softplus (numerically stable)
    return jnp.logaddexp(x, 0.0)


def _clamped_std(logvar, max_lv, min_lv):
    lv = max_lv - _softplus(max_lv - logvar)
    lv = min_lv + _softplus(lv - min_lv)
    return jnp.exp(0.5 * lv)


def _round_up(n, m):
    return ((n + m - 1) // m) * m


# -----------------------------------------------------------------------------
# Kernel: feature-major, batch on the 128-lane axis, biases folded into MXU.
# -----------------------------------------------------------------------------
def _carol_kernel(horizon, target_is_delta,
                  # batch-tiled inputs, shape (obs, TB)
                  x_ref, atk_ref, merr_ref,
                  # resident extended weights (see prepare_kernel_params)
                  wf_ref,      # (HA_blk + HE_blk, obs+1)  fused [agent L1 ; env L0(obs)]
                  w1z_ref,     # (HA_blk, obs)             W1 with zero pad rows
                  w2e_ref,     # (HA_blk, HA_blk)          agent L2 (bias + ones row folded)
                  wme_ref,     # (A, HA_blk)               agent mean head (bias folded)
                  w0ae_ref,    # (HE_blk, A)               env L0 action part (scale folded)
                  we1e_ref,    # (HE_blk, HE_blk)          env L1 (bias + ones row folded)
                  wmean_ref,   # (horizon, obs+2, HE_blk)  per-step mean head (+ eps*std)
                  # output, shape (1, TB)
                  out_ref):
    f32 = jnp.float32
    obs_dim, tb = x_ref.shape
    ha_blk = w1z_ref.shape[0]

    origin_x = x_ref[...]
    attack = atk_ref[...]
    am = attack + merr_ref[...]          # loop-invariant attack + model_error

    # z = [origin_x ; 1]: the ones row rides through the whole recurrence
    # (every extended weight reproduces it), so biases live inside the MXU.
    z = jnp.concatenate([origin_x, jnp.ones((1, tb), f32)], axis=0)  # (obs+1, tb)

    # Loop-invariant agent-layer-1 offsets (pad rows of W1z are zero, so the
    # ones / pad rows of the fused output stay untouched by the add).
    off_step0 = jnp.dot(w1z_ref[...], attack, preferred_element_type=f32)
    off_rest = jnp.dot(w1z_ref[...], am, preferred_element_type=f32)

    ep_rew = jnp.zeros((1, tb), f32)

    # horizon is small and static -> unrolled Python loop.
    for i in range(horizon):
        off = off_step0 if i == 0 else off_rest

        # ---- fused agent-L1 / env-L0(obs) pass: one MXU op ----
        fused = jnp.dot(wf_ref[...], z, preferred_element_type=f32)
        h1 = jnp.maximum(fused[:ha_blk] + off, 0.0)       # agent L1 (+ones row)
        e0_pre = fused[ha_blk:]                           # env L0 obs part (+ones row)

        # ---- agent policy (biases folded into weights) ----
        h2 = jnp.maximum(
            jnp.dot(w2e_ref[...], h1, preferred_element_type=f32), 0.0)
        action = jnp.tanh(
            jnp.dot(wme_ref[...], h2, preferred_element_type=f32))
        # action scale / bias already folded into w0ae / env L0 bias.

        # ---- env dynamics model ----
        e0 = jnp.maximum(
            e0_pre + jnp.dot(w0ae_ref[...], action, preferred_element_type=f32), 0.0)
        e1 = jnp.maximum(
            jnp.dot(we1e_ref[...], e0, preferred_element_type=f32), 0.0)

        # ---- per-step mean head: rows [0:obs]=delta_obs(+addend), obs=0, obs+1=reward(+addend)
        preds = jnp.dot(wmean_ref[i], e1, preferred_element_type=f32)  # (obs+2, tb)
        reward = preds[obs_dim + 1:obs_dim + 2]

        if target_is_delta:
            # rows [0:obs]: delta + origin_x ; row obs: 0 + 1 = 1 (ones row kept)
            z = preds[:obs_dim + 1] + z
        else:
            unit = (jax.lax.broadcasted_iota(jnp.int32, (obs_dim + 1, 1), 0)
                    == obs_dim).astype(f32)
            z = preds[:obs_dim + 1] + unit

        ep_rew = ep_rew + reward

    out_ref[...] = ep_rew


# -----------------------------------------------------------------------------
# Wrapper
# -----------------------------------------------------------------------------
def carol_forward(x, attack, model_error, kparams, *, horizon,
                  target_is_delta=True, block_b=512):
    f32 = jnp.float32
    B, obs_dim = x.shape
    x = x.astype(f32)
    attack = attack.astype(f32)
    model_error = model_error.astype(f32)

    # Pad batch to a multiple of 128: lane-dense activations, unmasked stores.
    B_pad = _round_up(B, 128)
    if B_pad != B:
        pad = ((0, B_pad - B), (0, 0))
        x = jnp.pad(x, pad)
        attack = jnp.pad(attack, pad)
        model_error = jnp.pad(model_error, pad)

    # Feature-major: batch rides the 128-lane axis.
    xT, atkT, merrT = x.T, attack.T, model_error.T

    # Large batch tile (amortizes grid-step / MXU fill-drain overhead); cap at
    # block_b so big batches still give >=2 "parallel" grid steps for v7x's
    # two TensorCores.
    tb = min(block_b, B_pad)
    tb = max(128, (tb // 128) * 128)
    while B_pad % tb:
        tb -= 128
    grid = (B_pad // tb,)

    tiled = pl.BlockSpec((obs_dim, tb), lambda i: (0, i))
    out_spec = pl.BlockSpec((1, tb), lambda i: (0, i))

    def resident(a):
        return pl.BlockSpec(a.shape, lambda i, _nd=a.ndim: (0,) * _nd)

    in_specs = [tiled, tiled, tiled] + [resident(p) for p in kparams]

    kernel = functools.partial(_carol_kernel, horizon, target_is_delta)
    outT = pl.pallas_call(
        kernel,
        grid=grid,
        out_shape=jax.ShapeDtypeStruct((1, B_pad), f32),
        in_specs=in_specs,
        out_specs=out_spec,
        compiler_params=pltpu.CompilerParams(
            dimension_semantics=("parallel",)),     # megacore sharding on v7x
    )(xT, atkT, merrT, *kparams)
    return outT[:, :B].T  # (B, 1)


# -----------------------------------------------------------------------------
# Parameter preparation: fold normalizer + action scale/bias + all biases +
# per-step (bmean + eps*std) addends into extended weight matrices with a
# ones pass-through row, pad sections to 8-sublane alignment.
# Raw params use the PyTorch nn.Linear layout (W: (out, in), b: (out,)).
# -----------------------------------------------------------------------------
def prepare_kernel_params(raw, obs_dim):
    (W1, b1, W2, b2, Wm, bm, ascale, abias,
     nmean, nstd, W0, b0, We1, be1, Wmean, bmean,
     logvar, max_lv, min_lv, eps) = [jnp.asarray(p, jnp.float32) for p in raw]

    O = obs_dim
    HA = W1.shape[0]
    HE = W0.shape[0]
    A = Wm.shape[0]
    horizon = eps.shape[0]
    HA_blk = _round_up(HA + 1, 8)
    HE_blk = _round_up(HE + 1, 8)

    # Fold the input normalizer: ((z - m)/s) @ W0.T + b0 == z @ W0f.T + b0f
    inv_std = 1.0 / nstd
    W0f = W0 * inv_std[None, :]
    b0f = b0 - (nmean * inv_std) @ W0.T
    W0o = W0f[:, :O]
    W0a = W0f[:, O:]

    # Fold action scale/bias: W0a @ (tanh*s + t) = (W0a*s) @ tanh + W0a @ t
    W0a_s = W0a * ascale[None, :]
    b0f = b0f + W0a @ abias

    def block(W, b, rows_blk):
        # [[W | b], [0...0 | 1], zero pad rows] -> (rows_blk, K+1)
        n, k = W.shape
        out = jnp.zeros((rows_blk, k + 1), jnp.float32)
        out = out.at[:n, :k].set(W)
        out = out.at[:n, k].set(b)
        out = out.at[n, k].set(1.0)
        return out

    # Fused first matmul: input z = [origin_x ; 1]
    Wf = jnp.concatenate([block(W1, b1, HA_blk), block(W0o, b0f, HE_blk)], axis=0)

    # Loop-invariant offset weights: [W1 ; zero rows]
    W1z = jnp.zeros((HA_blk, O), jnp.float32).at[:HA].set(W1)

    # Agent layer 2 (bias column at index HA, ones pass-through at (HA, HA))
    W2e = (jnp.zeros((HA_blk, HA_blk), jnp.float32)
           .at[:HA, :HA].set(W2).at[:HA, HA].set(b2).at[HA, HA].set(1.0))

    # Agent mean head (bias folded; tanh applied in kernel)
    Wme = jnp.zeros((A, HA_blk), jnp.float32).at[:, :HA].set(Wm).at[:, HA].set(bm)

    # Env layer-0 action part (scale folded, bias already in Wf env rows)
    W0ae = jnp.zeros((HE_blk, A), jnp.float32).at[:HE].set(W0a_s)

    # Env layer 1
    We1e = (jnp.zeros((HE_blk, HE_blk), jnp.float32)
            .at[:HE, :HE].set(We1).at[:HE, HE].set(be1).at[HE, HE].set(1.0))

    # Per-step mean head with bmean + eps*std folded into the bias column:
    # rows [0:O]=delta_obs, row O = 0 (keeps z ones row), row O+1 = reward.
    std = _clamped_std(logvar, max_lv, min_lv)          # (O+1,)
    addend = bmean[None, :] + eps * std[None, :]        # (horizon, O+1)
    Wmean_steps = jnp.zeros((horizon, O + 2, HE_blk), jnp.float32)
    Wmean_steps = Wmean_steps.at[:, :O, :HE].set(Wmean[:O])
    Wmean_steps = Wmean_steps.at[:, :O, HE].set(addend[:, :O])
    Wmean_steps = Wmean_steps.at[:, O + 1, :HE].set(Wmean[O])
    Wmean_steps = Wmean_steps.at[:, O + 1, HE].set(addend[:, O])

    return (Wf, W1z, W2e, Wme, W0ae, We1e, Wmean_steps)


# -----------------------------------------------------------------------------
# Faithful pure-JAX reference (mirrors the PyTorch forward from RAW params).
# -----------------------------------------------------------------------------
def carol_reference(x, attack, model_error, raw, *, horizon, target_is_delta=True):
    (W1, b1, W2, b2, Wm, bm, ascale, abias,
     nmean, nstd, W0, b0, We1, be1, Wmean, bmean,
     logvar, max_lv, min_lv, eps) = raw
    mm = lambda a, b: jnp.dot(a, b, precision=jax.lax.Precision.HIGHEST)
    std = _clamped_std(logvar, max_lv, min_lv)
    origin_x = x
    xx = x + attack
    ep_rew = None
    for i in range(horizon):
        h = jax.nn.relu(mm(xx, W1.T) + b1)
        h = jax.nn.relu(mm(h, W2.T) + b2)
        action = jnp.tanh(mm(h, Wm.T) + bm) * ascale + abias
        obs = origin_x
        model_in = jnp.concatenate([obs, action], axis=-1)
        model_in = (model_in - nmean) / nstd
        e = jax.nn.relu(mm(model_in, W0.T) + b0)
        e = jax.nn.relu(mm(e, We1.T) + be1)
        preds = mm(e, Wmean.T) + bmean + eps[i] * std
        next_obs = preds[:, :-1]
        reward = preds[:, -1:]
        if target_is_delta:
            next_obs = next_obs + obs
        origin_x = next_obs
        xx = origin_x + attack + model_error
        ep_rew = reward if ep_rew is None else ep_rew + reward
    return ep_rew


# -----------------------------------------------------------------------------
# Deterministic synthetic parameters (PyTorch nn.Linear layout; no checkpoints).
# -----------------------------------------------------------------------------
def make_raw_params(key, obs_dim, act_dim, h_agent, h_env, horizon):
    def lin(k, fin, fout):
        kw, kb = jax.random.split(k)
        w = jax.random.normal(kw, (fout, fin), jnp.float32) / jnp.sqrt(float(fin))
        b = 0.1 * jax.random.normal(kb, (fout,), jnp.float32)
        return w, b

    ks = jax.random.split(key, 10)
    W1, b1 = lin(ks[0], obs_dim, h_agent)
    W2, b2 = lin(ks[1], h_agent, h_agent)
    Wm, bm = lin(ks[2], h_agent, act_dim)
    ascale = jnp.ones((act_dim,), jnp.float32)
    abias = jnp.zeros((act_dim,), jnp.float32)
    nmean = 0.1 * jax.random.normal(ks[3], (obs_dim + act_dim,), jnp.float32)
    nstd = 0.5 + jnp.abs(jax.random.normal(ks[4], (obs_dim + act_dim,), jnp.float32))
    W0, b0 = lin(ks[5], obs_dim + act_dim, h_env)
    We1, be1 = lin(ks[6], h_env, h_env)
    Wmean, bmean = lin(ks[7], h_env, obs_dim + 1)
    logvar = 0.5 * jax.random.normal(ks[8], (obs_dim + 1,), jnp.float32)
    max_lv = 0.5 * jnp.ones((obs_dim + 1,), jnp.float32)
    min_lv = -10.0 * jnp.ones((obs_dim + 1,), jnp.float32)
    # TODO(synk): PyTorch draws eps with torch.manual_seed(0)+torch.normal;
    # replicated here as deterministic JAX normals (not bit-exact).
    eps = jax.random.normal(ks[9], (horizon, obs_dim + 1), jnp.float32)
    return (W1, b1, W2, b2, Wm, bm, ascale, abias,
            nmean, nstd, W0, b0, We1, be1, Wmean, bmean,
            logvar, max_lv, min_lv, eps)


if __name__ == "__main__":
    B, OBS, ACT, H_AGENT, H_ENV, HORIZON = 256, 16, 4, 32, 32, 4

    key = jax.random.PRNGKey(0)
    k_in, k_par = jax.random.split(key)
    kx, ka, km = jax.random.split(k_in, 3)

    x = jax.random.normal(kx, (B, OBS), jnp.float32)
    attack = 0.01 * jax.random.normal(ka, (B, OBS), jnp.float32)
    model_error = 0.01 * jax.random.normal(km, (B, OBS), jnp.float32)

    raw = make_raw_params(k_par, OBS, ACT, H_AGENT, H_ENV, HORIZON)
    kparams = prepare_kernel_params(raw, OBS)

    out = carol_forward(x, attack, model_error, kparams,
                        horizon=HORIZON, block_b=512)
    out = jax.block_until_ready(out)

    ref = carol_reference(x, attack, model_error, raw, horizon=HORIZON)
    assert out.shape == (B, 1)
    assert jnp.allclose(out, ref, rtol=1e-2, atol=1e-2), (
        float(jnp.max(jnp.abs(out - ref))))

    print("KERNEL_OK")
</pallas_src>

<mosaic_0001>
module attributes {stable_mosaic.version = 11 : i64} {
  func.func @_carol_kernel(%arg0: i32, %arg1: memref<16x256xf32, #tpu.memory_space<vmem>>, %arg2: memref<16x256xf32, #tpu.memory_space<vmem>>, %arg3: memref<16x256xf32, #tpu.memory_space<vmem>>, %arg4: memref<80x17xf32, #tpu.memory_space<vmem>>, %arg5: memref<40x16xf32, #tpu.memory_space<vmem>>, %arg6: memref<40x40xf32, #tpu.memory_space<vmem>>, %arg7: memref<4x40xf32, #tpu.memory_space<vmem>>, %arg8: memref<40x4xf32, #tpu.memory_space<vmem>>, %arg9: memref<40x40xf32, #tpu.memory_space<vmem>>, %arg10: memref<4x18x40xf32, #tpu.memory_space<vmem>>, %arg11: memref<1x256xf32, #tpu.memory_space<vmem>>) attributes {dimension_semantics = [#tpu.dimension_semantics<parallel>], iteration_bounds = array<i64: 1>, scalar_prefetch = 0 : i64, scratch_operands = 0 : i64, tpu.core_type = #tpu.core_type<tc>, window_params = [{transform_indices = @transform_0, window_bounds = array<i64: 16, 256>}, {transform_indices = @transform_1, window_bounds = array<i64: 16, 256>}, {transform_indices = @transform_2, window_bounds = array<i64: 16, 256>}, {pipeline_mode = #tpu.pipeline_mode<synchronous>, transform_indices = @transform_3, window_bounds = array<i64: 80, 17>}, {pipeline_mode = #tpu.pipeline_mode<synchronous>, transform_indices = @transform_4, window_bounds = array<i64: 40, 16>}, {pipeline_mode = #tpu.pipeline_mode<synchronous>, transform_indices = @transform_5, window_bounds = array<i64: 40, 40>}, {pipeline_mode = #tpu.pipeline_mode<synchronous>, transform_indices = @transform_6, window_bounds = array<i64: 4, 40>}, {pipeline_mode = #tpu.pipeline_mode<synchronous>, transform_indices = @transform_7, window_bounds = array<i64: 40, 4>}, {pipeline_mode = #tpu.pipeline_mode<synchronous>, transform_indices = @transform_8, window_bounds = array<i64: 40, 40>}, {pipeline_mode = #tpu.pipeline_mode<synchronous>, transform_indices = @transform_9, window_bounds = array<i64: 4, 18, 40>}, {transform_indices = @transform_10, window_bounds = array<i64: 1, 256>}]} {
    %c0 = arith.constant 0 : index
    %c0_0 = arith.constant 0 : index
    %0 = vector.load %arg1[%c0, %c0_0] : memref<16x256xf32, #tpu.memory_space<vmem>>, vector<16x256xf32>
    %c0_1 = arith.constant 0 : index
    %c0_2 = arith.constant 0 : index
    %1 = vector.load %arg2[%c0_1, %c0_2] : memref<16x256xf32, #tpu.memory_space<vmem>>, vector<16x256xf32>
    %c0_3 = arith.constant 0 : index
    %c0_4 = arith.constant 0 : index
    %2 = vector.load %arg3[%c0_3, %c0_4] : memref<16x256xf32, #tpu.memory_space<vmem>>, vector<16x256xf32>
    %3 = arith.addf %1, %2 : vector<16x256xf32>
    %cst = arith.constant 1.000000e+00 : f32
    %4 = vector.broadcast %cst : f32 to vector<1x256xf32>
    %5 = tpu.concatenate %0, %4 in 0 : vector<16x256xf32>, vector<1x256xf32> -> vector<17x256xf32>
    %c0_5 = arith.constant 0 : index
    %c0_6 = arith.constant 0 : index
    %6 = vector.load %arg5[%c0_5, %c0_6] : memref<40x16xf32, #tpu.memory_space<vmem>>, vector<40x16xf32>
    %cst_7 = arith.constant dense<0.000000e+00> : vector<40x256xf32>
    %7 = tpu.matmul %6, %1, %cst_7 {dimension_numbers = #tpu.dot_dimension_numbers<[1], [0], [0], [1], [0, 0, 1, 1], [], []>} : vector<40x16xf32>, vector<16x256xf32>, vector<40x256xf32> -> vector<40x256xf32>
    %c0_8 = arith.constant 0 : index
    %c0_9 = arith.constant 0 : index
    %8 = vector.load %arg5[%c0_8, %c0_9] : memref<40x16xf32, #tpu.memory_space<vmem>>, vector<40x16xf32>
    %cst_10 = arith.constant dense<0.000000e+00> : vector<40x256xf32>
    %9 = tpu.matmul %8, %3, %cst_10 {dimension_numbers = #tpu.dot_dimension_numbers<[1], [0], [0], [1], [0, 0, 1, 1], [], []>} : vector<40x16xf32>, vector<16x256xf32>, vector<40x256xf32> -> vector<40x256xf32>
    %cst_11 = arith.constant 0.000000e+00 : f32
    %10 = vector.broadcast %cst_11 : f32 to vector<1x256xf32>
    %c0_12 = arith.constant 0 : index
    %c0_13 = arith.constant 0 : index
    %11 = vector.load %arg4[%c0_12, %c0_13] : memref<80x17xf32, #tpu.memory_space<vmem>>, vector<80x17xf32>
    %cst_14 = arith.constant dense<0.000000e+00> : vector<80x256xf32>
    %12 = tpu.matmul %11, %5, %cst_14 {dimension_numbers = #tpu.dot_dimension_numbers<[1], [0], [0], [1], [0, 0, 1, 1], [], []>} : vector<80x17xf32>, vector<17x256xf32>, vector<80x256xf32> -> vector<80x256xf32>
    %13 = vector.extract_strided_slice %12 {offsets = [0, 0], sizes = [40, 256], strides = [1, 1]} : vector<80x256xf32> to vector<40x256xf32>
    %14 = arith.addf %13, %7 : vector<40x256xf32>
    %cst_15 = arith.constant 0.000000e+00 : f32
    %15 = vector.broadcast %cst_15 : f32 to vector<40x256xf32>
    %16 = arith.maximumf %14, %15 : vector<40x256xf32>
    %17 = vector.extract_strided_slice %12 {offsets = [40, 0], sizes = [40, 256], strides = [1, 1]} : vector<80x256xf32> to vector<40x256xf32>
    %c0_16 = arith.constant 0 : index
    %c0_17 = arith.constant 0 : index
    %18 = vector.load %arg6[%c0_16, %c0_17] : memref<40x40xf32, #tpu.memory_space<vmem>>, vector<40x40xf32>
    %cst_18 = arith.constant dense<0.000000e+00> : vector<40x256xf32>
    %19 = tpu.matmul %18, %16, %cst_18 {dimension_numbers = #tpu.dot_dimension_numbers<[1], [0], [0], [1], [0, 0, 1, 1], [], []>} : vector<40x40xf32>, vector<40x256xf32>, vector<40x256xf32> -> vector<40x256xf32>
    %cst_19 = arith.constant 0.000000e+00 : f32
    %20 = vector.broadcast %cst_19 : f32 to vector<40x256xf32>
    %21 = arith.maximumf %19, %20 : vector<40x256xf32>
    %c0_20 = arith.constant 0 : index
    %c0_21 = arith.constant 0 : index
    %22 = vector.load %arg7[%c0_20, %c0_21] : memref<4x40xf32, #tpu.memory_space<vmem>>, vector<4x40xf32>
    %cst_22 = arith.constant dense<0.000000e+00> : vector<4x256xf32>
    %23 = tpu.matmul %22, %21, %cst_22 {dimension_numbers = #tpu.dot_dimension_numbers<[1], [0], [0], [1], [0, 0, 1, 1], [], []>} : vector<4x40xf32>, vector<40x256xf32>, vector<4x256xf32> -> vector<4x256xf32>
    %24 = math.tanh %23 : vector<4x256xf32>
    %c0_23 = arith.constant 0 : index
    %c0_24 = arith.constant 0 : index
    %25 = vector.load %arg8[%c0_23, %c0_24] : memref<40x4xf32, #tpu.memory_space<vmem>>, vector<40x4xf32>
    %cst_25 = arith.constant dense<0.000000e+00> : vector<40x256xf32>
    %26 = tpu.matmul %25, %24, %cst_25 {dimension_numbers = #tpu.dot_dimension_numbers<[1], [0], [0], [1], [0, 0, 1, 1], [], []>} : vector<40x4xf32>, vector<4x256xf32>, vector<40x256xf32> -> vector<40x256xf32>
    %27 = arith.addf %17, %26 : vector<40x256xf32>
    %cst_26 = arith.constant 0.000000e+00 : f32
    %28 = vector.broadcast %cst_26 : f32 to vector<40x256xf32>
    %29 = arith.maximumf %27, %28 : vector<40x256xf32>
    %c0_27 = arith.constant 0 : index
    %c0_28 = arith.constant 0 : index
    %30 = vector.load %arg9[%c0_27, %c0_28] : memref<40x40xf32, #tpu.memory_space<vmem>>, vector<40x40xf32>
    %cst_29 = arith.constant dense<0.000000e+00> : vector<40x256xf32>
    %31 = tpu.matmul %30, %29, %cst_29 {dimension_numbers = #tpu.dot_dimension_numbers<[1], [0], [0], [1], [0, 0, 1, 1], [], []>} : vector<40x40xf32>, vector<40x256xf32>, vector<40x256xf32> -> vector<40x256xf32>
    %cst_30 = arith.constant 0.000000e+00 : f32
    %32 = vector.broadcast %cst_30 : f32 to vector<40x256xf32>
    %33 = arith.maximumf %31, %32 : vector<40x256xf32>
    %c0_31 = arith.constant 0 : index
    %c0_32 = arith.constant 0 : index
    %c0_33 = arith.constant 0 : index
    %34 = vector.load %arg10[%c0_31, %c0_32, %c0_33] : memref<4x18x40xf32, #tpu.memory_space<vmem>>, vector<1x18x40xf32>
    %35 = vector.shape_cast %34 : vector<1x18x40xf32> to vector<18x40xf32>
    %cst_34 = arith.constant dense<0.000000e+00> : vector<18x256xf32>
    %36 = tpu.matmul %35, %33, %cst_34 {dimension_numbers = #tpu.dot_dimension_numbers<[1], [0], [0], [1], [0, 0, 1, 1], [], []>} : vector<18x40xf32>, vector<40x256xf32>, vector<18x256xf32> -> vector<18x256xf32>
    %37 = vector.extract_strided_slice %36 {offsets = [17, 0], sizes = [1, 256], strides = [1, 1]} : vector<18x256xf32> to vector<1x256xf32>
    %38 = vector.extract_strided_slice %36 {offsets = [0, 0], sizes = [17, 256], strides = [1, 1]} : vector<18x256xf32> to vector<17x256xf32>
    %39 = arith.addf %38, %5 : vector<17x256xf32>
    %40 = arith.addf %10, %37 : vector<1x256xf32>
    %c0_35 = arith.constant 0 : index
    %c0_36 = arith.constant 0 : index
    %41 = vector.load %arg4[%c0_35, %c0_36] : memref<80x17xf32, #tpu.memory_space<vmem>>, vector<80x17xf32>
    %cst_37 = arith.constant dense<0.000000e+00> : vector<80x256xf32>
    %42 = tpu.matmul %41, %39, %cst_37 {dimension_numbers = #tpu.dot_dimension_numbers<[1], [0], [0], [1], [0, 0, 1, 1], [], []>} : vector<80x17xf32>, vector<17x256xf32>, vector<80x256xf32> -> vector<80x256xf32>
    %43 = vector.extract_strided_slice %42 {offsets = [0, 0], sizes = [40, 256], strides = [1, 1]} : vector<80x256xf32> to vector<40x256xf32>
    %44 = arith.addf %43, %9 : vector<40x256xf32>
    %cst_38 = arith.constant 0.000000e+00 : f32
    %45 = vector.broadcast %cst_38 : f32 to vector<40x256xf32>
    %46 = arith.maximumf %44, %45 : vector<40x256xf32>
    %47 = vector.extract_strided_slice %42 {offsets = [40, 0], sizes = [40, 256], strides = [1, 1]} : vector<80x256xf32> to vector<40x256xf32>
    %c0_39 = arith.constant 0 : index
    %c0_40 = arith.constant 0 : index
    %48 = vector.load %arg6[%c0_39, %c0_40] : memref<40x40xf32, #tpu.memory_space<vmem>>, vector<40x40xf32>
    %cst_41 = arith.constant dense<0.000000e+00> : vector<40x256xf32>
    %49 = tpu.matmul %48, %46, %cst_41 {dimension_numbers = #tpu.dot_dimension_numbers<[1], [0], [0], [1], [0, 0, 1, 1], [], []>} : vector<40x40xf32>, vector<40x256xf32>, vector<40x256xf32> -> vector<40x256xf32>
    %cst_42 = arith.constant 0.000000e+00 : f32
    %50 = vector.broadcast %cst_42 : f32 to vector<40x256xf32>
    %51 = arith.maximumf %49, %50 : vector<40x256xf32>
    %c0_43 = arith.constant 0 : index
    %c0_44 = arith.constant 0 : index
    %52 = vector.load %arg7[%c0_43, %c0_44] : memref<4x40xf32, #tpu.memory_space<vmem>>, vector<4x40xf32>
    %cst_45 = arith.constant dense<0.000000e+00> : vector<4x256xf32>
    %53 = tpu.matmul %52, %51, %cst_45 {dimension_numbers = #tpu.dot_dimension_numbers<[1], [0], [0], [1], [0, 0, 1, 1], [], []>} : vector<4x40xf32>, vector<40x256xf32>, vector<4x256xf32> -> vector<4x256xf32>
    %54 = math.tanh %53 : vector<4x256xf32>
    %c0_46 = arith.constant 0 : index
    %c0_47 = arith.constant 0 : index
    %55 = vector.load %arg8[%c0_46, %c0_47] : memref<40x4xf32, #tpu.memory_space<vmem>>, vector<40x4xf32>
    %cst_48 = arith.constant dense<0.000000e+00> : vector<40x256xf32>
    %56 = tpu.matmul %55, %54, %cst_48 {dimension_numbers = #tpu.dot_dimension_numbers<[1], [0], [0], [1], [0, 0, 1, 1], [], []>} : vector<40x4xf32>, vector<4x256xf32>, vector<40x256xf32> -> vector<40x256xf32>
    %57 = arith.addf %47, %56 : vector<40x256xf32>
    %cst_49 = arith.constant 0.000000e+00 : f32
    %58 = vector.broadcast %cst_49 : f32 to vector<40x256xf32>
    %59 = arith.maximumf %57, %58 : vector<40x256xf32>
    %c0_50 = arith.constant 0 : index
    %c0_51 = arith.constant 0 : index
    %60 = vector.load %arg9[%c0_50, %c0_51] : memref<40x40xf32, #tpu.memory_space<vmem>>, vector<40x40xf32>
    %cst_52 = arith.constant dense<0.000000e+00> : vector<40x256xf32>
    %61 = tpu.matmul %60, %59, %cst_52 {dimension_numbers = #tpu.dot_dimension_numbers<[1], [0], [0], [1], [0, 0, 1, 1], [], []>} : vector<40x40xf32>, vector<40x256xf32>, vector<40x256xf32> -> vector<40x256xf32>
    %cst_53 = arith.constant 0.000000e+00 : f32
    %62 = vector.broadcast %cst_53 : f32 to vector<40x256xf32>
    %63 = arith.maximumf %61, %62 : vector<40x256xf32>
    %c1 = arith.constant 1 : index
    %c0_54 = arith.constant 0 : index
    %c0_55 = arith.constant 0 : index
    %64 = vector.load %arg10[%c1, %c0_54, %c0_55] : memref<4x18x40xf32, #tpu.memory_space<vmem>>, vector<1x18x40xf32>
    %65 = vector.shape_cast %64 : vector<1x18x40xf32> to vector<18x40xf32>
    %cst_56 = arith.constant dense<0.000000e+00> : vector<18x256xf32>
    %66 = tpu.matmul %65, %63, %cst_56 {dimension_numbers = #tpu.dot_dimension_numbers<[1], [0], [0], [1], [0, 0, 1, 1], [], []>} : vector<18x40xf32>, vector<40x256xf32>, vector<18x256xf32> -> vector<18x256xf32>
    %67 = vector.extract_strided_slice %66 {offsets = [17, 0], sizes = [1, 256], strides = [1, 1]} : vector<18x256xf32> to vector<1x256xf32>
    %68 = vector.extract_strided_slice %66 {offsets = [0, 0], sizes = [17, 256], strides = [1, 1]} : vector<18x256xf32> to vector<17x256xf32>
    %69 = arith.addf %68, %39 : vector<17x256xf32>
    %70 = arith.addf %40, %67 : vector<1x256xf32>
    %c0_57 = arith.constant 0 : index
    %c0_58 = arith.constant 0 : index
    %71 = vector.load %arg4[%c0_57, %c0_58] : memref<80x17xf32, #tpu.memory_space<vmem>>, vector<80x17xf32>
    %cst_59 = arith.constant dense<0.000000e+00> : vector<80x256xf32>
    %72 = tpu.matmul %71, %69, %cst_59 {dimension_numbers = #tpu.dot_dimension_numbers<[1], [0], [0], [1], [0, 0, 1, 1], [], []>} : vector<80x17xf32>, vector<17x256xf32>, vector<80x256xf32> -> vector<80x256xf32>
    %73 = vector.extract_strided_slice %72 {offsets = [0, 0], sizes = [40, 256], strides = [1, 1]} : vector<80x256xf32> to vector<40x256xf32>
    %74 = arith.addf %73, %9 : vector<40x256xf32>
    %cst_60 = arith.constant 0.000000e+00 : f32
    %75 = vector.broadcast %cst_60 : f32 to vector<40x256xf32>
    %76 = arith.maximumf %74, %75 : vector<40x256xf32>
    %77 = vector.extract_strided_slice %72 {offsets = [40, 0], sizes = [40, 256], strides = [1, 1]} : vector<80x256xf32> to vector<40x256xf32>
    %c0_61 = arith.constant 0 : index
    %c0_62 = arith.constant 0 : index
    %78 = vector.load %arg6[%c0_61, %c0_62] : memref<40x40xf32, #tpu.memory_space<vmem>>, vector<40x40xf32>
    %cst_63 = arith.constant dense<0.000000e+00> : vector<40x256xf32>
    %79 = tpu.matmul %78, %76, %cst_63 {dimension_numbers = #tpu.dot_dimension_numbers<[1], [0], [0], [1], [0, 0, 1, 1], [], []>} : vector<40x40xf32>, vector<40x256xf32>, vector<40x256xf32> -> vector<40x256xf32>
    %cst_64 = arith.constant 0.000000e+00 : f32
    %80 = vector.broadcast %cst_64 : f32 to vector<40x256xf32>
    %81 = arith.maximumf %79, %80 : vector<40x256xf32>
    %c0_65 = arith.constant 0 : index
    %c0_66 = arith.constant 0 : index
    %82 = vector.load %arg7[%c0_65, %c0_66] : memref<4x40xf32, #tpu.memory_space<vmem>>, vector<4x40xf32>
    %cst_67 = arith.constant dense<0.000000e+00> : vector<4x256xf32>
    %83 = tpu.matmul %82, %81, %cst_67 {dimension_numbers = #tpu.dot_dimension_numbers<[1], [0], [0], [1], [0, 0, 1, 1], [], []>} : vector<4x40xf32>, vector<40x256xf32>, vector<4x256xf32> -> vector<4x256xf32>
    %84 = math.tanh %83 : vector<4x256xf32>
    %c0_68 = arith.constant 0 : index
    %c0_69 = arith.constant 0 : index
    %85 = vector.load %arg8[%c0_68, %c0_69] : memref<40x4xf32, #tpu.memory_space<vmem>>, vector<40x4xf32>
    %cst_70 = arith.constant dense<0.000000e+00> : vector<40x256xf32>
    %86 = tpu.matmul %85, %84, %cst_70 {dimension_numbers = #tpu.dot_dimension_numbers<[1], [0], [0], [1], [0, 0, 1, 1], [], []>} : vector<40x4xf32>, vector<4x256xf32>, vector<40x256xf32> -> vector<40x256xf32>
    %87 = arith.addf %77, %86 : vector<40x256xf32>
    %cst_71 = arith.constant 0.000000e+00 : f32
    %88 = vector.broadcast %cst_71 : f32 to vector<40x256xf32>
    %89 = arith.maximumf %87, %88 : vector<40x256xf32>
    %c0_72 = arith.constant 0 : index
    %c0_73 = arith.constant 0 : index
    %90 = vector.load %arg9[%c0_72, %c0_73] : memref<40x40xf32, #tpu.memory_space<vmem>>, vector<40x40xf32>
    %cst_74 = arith.constant dense<0.000000e+00> : vector<40x256xf32>
    %91 = tpu.matmul %90, %89, %cst_74 {dimension_numbers = #tpu.dot_dimension_numbers<[1], [0], [0], [1], [0, 0, 1, 1], [], []>} : vector<40x40xf32>, vector<40x256xf32>, vector<40x256xf32> -> vector<40x256xf32>
    %cst_75 = arith.constant 0.000000e+00 : f32
    %92 = vector.broadcast %cst_75 : f32 to vector<40x256xf32>
    %93 = arith.maximumf %91, %92 : vector<40x256xf32>
    %c2 = arith.constant 2 : index
    %c0_76 = arith.constant 0 : index
    %c0_77 = arith.constant 0 : index
    %94 = vector.load %arg10[%c2, %c0_76, %c0_77] : memref<4x18x40xf32, #tpu.memory_space<vmem>>, vector<1x18x40xf32>
    %95 = vector.shape_cast %94 : vector<1x18x40xf32> to vector<18x40xf32>
    %cst_78 = arith.constant dense<0.000000e+00> : vector<18x256xf32>
    %96 = tpu.matmul %95, %93, %cst_78 {dimension_numbers = #tpu.dot_dimension_numbers<[1], [0], [0], [1], [0, 0, 1, 1], [], []>} : vector<18x40xf32>, vector<40x256xf32>, vector<18x256xf32> -> vector<18x256xf32>
    %97 = vector.extract_strided_slice %96 {offsets = [17, 0], sizes = [1, 256], strides = [1, 1]} : vector<18x256xf32> to vector<1x256xf32>
    %98 = vector.extract_strided_slice %96 {offsets = [0, 0], sizes = [17, 256], strides = [1, 1]} : vector<18x256xf32> to vector<17x256xf32>
    %99 = arith.addf %98, %69 : vector<17x256xf32>
    %100 = arith.addf %70, %97 : vector<1x256xf32>
    %c0_79 = arith.constant 0 : index
    %c0_80 = arith.constant 0 : index
    %101 = vector.load %arg4[%c0_79, %c0_80] : memref<80x17xf32, #tpu.memory_space<vmem>>, vector<80x17xf32>
    %cst_81 = arith.constant dense<0.000000e+00> : vector<80x256xf32>
    %102 = tpu.matmul %101, %99, %cst_81 {dimension_numbers = #tpu.dot_dimension_numbers<[1], [0], [0], [1], [0, 0, 1, 1], [], []>} : vector<80x17xf32>, vector<17x256xf32>, vector<80x256xf32> -> vector<80x256xf32>
    %103 = vector.extract_strided_slice %102 {offsets = [0, 0], sizes = [40, 256], strides = [1, 1]} : vector<80x256xf32> to vector<40x256xf32>
    %104 = arith.addf %103, %9 : vector<40x256xf32>
    %cst_82 = arith.constant 0.000000e+00 : f32
    %105 = vector.broadcast %cst_82 : f32 to vector<40x256xf32>
    %106 = arith.maximumf %104, %105 : vector<40x256xf32>
    %107 = vector.extract_strided_slice %102 {offsets = [40, 0], sizes = [40, 256], strides = [1, 1]} : vector<80x256xf32> to vector<40x256xf32>
    %c0_83 = arith.constant 0 : index
    %c0_84 = arith.constant 0 : index
    %108 = vector.load %arg6[%c0_83, %c0_84] : memref<40x40xf32, #tpu.memory_space<vmem>>, vector<40x40xf32>
    %cst_85 = arith.constant dense<0.000000e+00> : vector<40x256xf32>
    %109 = tpu.matmul %108, %106, %cst_85 {dimension_numbers = #tpu.dot_dimension_numbers<[1], [0], [0], [1], [0, 0, 1, 1], [], []>} : vector<40x40xf32>, vector<40x256xf32>, vector<40x256xf32> -> vector<40x256xf32>
    %cst_86 = arith.constant 0.000000e+00 : f32
    %110 = vector.broadcast %cst_86 : f32 to vector<40x256xf32>
    %111 = arith.maximumf %109, %110 : vector<40x256xf32>
    %c0_87 = arith.constant 0 : index
    %c0_88 = arith.constant 0 : index
    %112 = vector.load %arg7[%c0_87, %c0_88] : memref<4x40xf32, #tpu.memory_space<vmem>>, vector<4x40xf32>
    %cst_89 = arith.constant dense<0.000000e+00> : vector<4x256xf32>
    %113 = tpu.matmul %112, %111, %cst_89 {dimension_numbers = #tpu.dot_dimension_numbers<[1], [0], [0], [1], [0, 0, 1, 1], [], []>} : vector<4x40xf32>, vector<40x256xf32>, vector<4x256xf32> -> vector<4x256xf32>
    %114 = math.tanh %113 : vector<4x256xf32>
    %c0_90 = arith.constant 0 : index
    %c0_91 = arith.constant 0 : index
    %115 = vector.load %arg8[%c0_90, %c0_91] : memref<40x4xf32, #tpu.memory_space<vmem>>, vector<40x4xf32>
    %cst_92 = arith.constant dense<0.000000e+00> : vector<40x256xf32>
    %116 = tpu.matmul %115, %114, %cst_92 {dimension_numbers = #tpu.dot_dimension_numbers<[1], [0], [0], [1], [0, 0, 1, 1], [], []>} : vector<40x4xf32>, vector<4x256xf32>, vector<40x256xf32> -> vector<40x256xf32>
    %117 = arith.addf %107, %116 : vector<40x256xf32>
    %cst_93 = arith.constant 0.000000e+00 : f32
    %118 = vector.broadcast %cst_93 : f32 to vector<40x256xf32>
    %119 = arith.maximumf %117, %118 : vector<40x256xf32>
    %c0_94 = arith.constant 0 : index
    %c0_95 = arith.constant 0 : index
    %120 = vector.load %arg9[%c0_94, %c0_95] : memref<40x40xf32, #tpu.memory_space<vmem>>, vector<40x40xf32>
    %cst_96 = arith.constant dense<0.000000e+00> : vector<40x256xf32>
    %121 = tpu.matmul %120, %119, %cst_96 {dimension_numbers = #tpu.dot_dimension_numbers<[1], [0], [0], [1], [0, 0, 1, 1], [], []>} : vector<40x40xf32>, vector<40x256xf32>, vector<40x256xf32> -> vector<40x256xf32>
    %cst_97 = arith.constant 0.000000e+00 : f32
    %122 = vector.broadcast %cst_97 : f32 to vector<40x256xf32>
    %123 = arith.maximumf %121, %122 : vector<40x256xf32>
    %c3 = arith.constant 3 : index
    %c0_98 = arith.constant 0 : index
    %c0_99 = arith.constant 0 : index
    %124 = vector.load %arg10[%c3, %c0_98, %c0_99] : memref<4x18x40xf32, #tpu.memory_space<vmem>>, vector<1x18x40xf32>
    %125 = vector.shape_cast %124 : vector<1x18x40xf32> to vector<18x40xf32>
    %cst_100 = arith.constant dense<0.000000e+00> : vector<18x256xf32>
    %126 = tpu.matmul %125, %123, %cst_100 {dimension_numbers = #tpu.dot_dimension_numbers<[1], [0], [0], [1], [0, 0, 1, 1], [], []>} : vector<18x40xf32>, vector<40x256xf32>, vector<18x256xf32> -> vector<18x256xf32>
    %127 = vector.extract_strided_slice %126 {offsets = [17, 0], sizes = [1, 256], strides = [1, 1]} : vector<18x256xf32> to vector<1x256xf32>
    %128 = arith.addf %100, %127 : vector<1x256xf32>
    %c0_101 = arith.constant 0 : index
    %c0_102 = arith.constant 0 : index
    %129 = vector.load %arg11[%c0_101, %c0_102] : memref<1x256xf32, #tpu.memory_space<vmem>>, vector<1x256xf32>
    tpu.vector_store %arg11[%c0_101, %c0_102], %128 {strides = array<i32>} : memref<1x256xf32, #tpu.memory_space<vmem>>, vector<1x256xf32>,
    return
  }
  func.func @transform_0(%arg0: i32) -> (i32, i32) {
    %c0_i32 = arith.constant 0 : i32
    %c0_i32_0 = arith.constant 0 : i32
    return %c0_i32, %arg0 : i32, i32
  }
  func.func @transform_1(%arg0: i32) -> (i32, i32) {
    %c0_i32 = arith.constant 0 : i32
    %c0_i32_0 = arith.constant 0 : i32
    return %c0_i32, %arg0 : i32, i32
  }
  func.func @transform_2(%arg0: i32) -> (i32, i32) {
    %c0_i32 = arith.constant 0 : i32
    %c0_i32_0 = arith.constant 0 : i32
    return %c0_i32, %arg0 : i32, i32
  }
  func.func @transform_3(%arg0: i32) -> (i32, i32) {
    %c0_i32 = arith.constant 0 : i32
    %c0_i32_0 = arith.constant 0 : i32
    %c0_i32_1 = arith.constant 0 : i32
    return %c0_i32, %c0_i32_0 : i32, i32
  }
  func.func @transform_4(%arg0: i32) -> (i32, i32) {
    %c0_i32 = arith.constant 0 : i32
    %c0_i32_0 = arith.constant 0 : i32
    %c0_i32_1 = arith.constant 0 : i32
    return %c0_i32, %c0_i32_0 : i32, i32
  }
  func.func @transform_5(%arg0: i32) -> (i32, i32) {
    %c0_i32 = arith.constant 0 : i32
    %c0_i32_0 = arith.constant 0 : i32
    %c0_i32_1 = arith.constant 0 : i32
    return %c0_i32, %c0_i32_0 : i32, i32
  }
  func.func @transform_6(%arg0: i32) -> (i32, i32) {
    %c0_i32 = arith.constant 0 : i32
    %c0_i32_0 = arith.constant 0 : i32
    %c0_i32_1 = arith.constant 0 : i32
    return %c0_i32, %c0_i32_0 : i32, i32
  }
  func.func @transform_7(%arg0: i32) -> (i32, i32) {
    %c0_i32 = arith.constant 0 : i32
    %c0_i32_0 = arith.constant 0 : i32
    %c0_i32_1 = arith.constant 0 : i32
    return %c0_i32, %c0_i32_0 : i32, i32
  }
  func.func @transform_8(%arg0: i32) -> (i32, i32) {
    %c0_i32 = arith.constant 0 : i32
    %c0_i32_0 = arith.constant 0 : i32
    %c0_i32_1 = arith.constant 0 : i32
    return %c0_i32, %c0_i32_0 : i32, i32
  }
  func.func @transform_9(%arg0: i32) -> (i32, i32, i32) {
    %c0_i32 = arith.constant 0 : i32
    %c0_i32_0 = arith.constant 0 : i32
    %c0_i32_1 = arith.constant 0 : i32
    %c0_i32_2 = arith.constant 0 : i32
    return %c0_i32, %c0_i32_0, %c0_i32_1 : i32, i32, i32
  }
  func.func @transform_10(%arg0: i32) -> (i32, i32) {
    %c0_i32 = arith.constant 0 : i32
    %c0_i32_0 = arith.constant 0 : i32
    return %c0_i32, %arg0 : i32, i32
  }
}

</mosaic_0001>

<llo_original>
// kernel: tpu_custom_call.1
$region0: #{tpu_custom_call.1}
  #allocation0 [shape = 'u32[]', space=smem, size = 0x4, offset = 0x4, fixed_abs, tag = 'smem constant byte address 0x4 - core index']
  #allocation1 [shape = 'u32[144,128]{1,0:T(1,128)}', space=vmem, size = 0x12000, scoped, tag = 'internal scratch']
  %s0 = inlined_call_operand.vmem [shape: f32[16,256], index: 0, kind: input, shape index: {}]
  %s1 = inlined_call_operand.vmem [shape: f32[16,256], index: 1, kind: input, shape index: {}]
  %s2 = inlined_call_operand.vmem [shape: f32[16,256], index: 2, kind: input, shape index: {}]
  %s3 = inlined_call_operand.vmem [shape: f32[80,17], index: 3, kind: input, shape index: {}]
  %s4 = inlined_call_operand.vmem [shape: f32[40,16], index: 4, kind: input, shape index: {}]
  %s5 = inlined_call_operand.vmem [shape: f32[40,40], index: 5, kind: input, shape index: {}]
  %s6 = inlined_call_operand.vmem [shape: f32[4,40], index: 6, kind: input, shape index: {}]
  %s7 = inlined_call_operand.vmem [shape: f32[40,4], index: 7, kind: input, shape index: {}]
  %s8 = inlined_call_operand.vmem [shape: f32[40,40], index: 8, kind: input, shape index: {}]
  %s9 = inlined_call_operand.vmem [shape: f32[4,18,40], index: 9, kind: input, shape index: {}]
  %s10 = inlined_call_operand.hbm [shape: f32[1,256], index: 10, kind: output, shape index: {}]
  %s11 = sld [smem:[#allocation0]]
  $region50: #{tpu_custom_call.1} parent=0
    _
  %s13 = ssub.s32 1, %s11
  %s14 = scalar_select 0, %s13, %s11
  $region1: #{tpu_custom_call.1} parent=0
    #allocation2 [shape = 'u8[1024]{0}', space=vmem, size = 0x400, scoped, tag = 'output window, operand 0, single buffered']
    #allocation3 [shape = 's32[1]{0}', space=sflag, size = 0x4, scoped, tag = 'scoped memory for tpu_custom_call.1']
    %15 = vsyncpa [#allocation3], 0
    // Predicated region
    $region2: #{tpu_custom_call.1} parent=1 // pred_check
      _
    $region3: #{tpu_custom_call.1} parent=1 // pred_check_branch
      %17 = sbr.rel (0) target = $region5
    $region4: #{tpu_custom_call.1} parent=1 // pred_region
      _
    $region5: #{tpu_custom_call.1} parent=1 // pred_fallthru
      _
    // Predicated region
    $region6: #{tpu_custom_call.1} parent=1 // pred_check
      _
    $region7: #{tpu_custom_call.1} parent=1 // pred_check_branch
      %19 = sbr.rel (0) target = $region9
    $region8: #{tpu_custom_call.1} parent=1 // pred_region
      _
    $region9: #{tpu_custom_call.1} parent=1 // pred_fallthru
      _
    // Predicated region
    $region10: #{tpu_custom_call.1} parent=1 // pred_check
      _
    $region11: #{tpu_custom_call.1} parent=1 // pred_check_branch
      %21 = sbr.rel (0) target = $region13
    $region12: #{tpu_custom_call.1} parent=1 // pred_region
      _
    $region13: #{tpu_custom_call.1} parent=1 // pred_fallthru
      _
    // Predicated region
    $region14: #{tpu_custom_call.1} parent=1 // pred_check
      _
    $region15: #{tpu_custom_call.1} parent=1 // pred_check_branch
      %23 = sbr.rel (0) target = $region17
    $region16: #{tpu_custom_call.1} parent=1 // pred_region
      _
    $region17: #{tpu_custom_call.1} parent=1 // pred_fallthru
      _
    // Predicated region
    $region18: #{tpu_custom_call.1} parent=1 // pred_check
      _
    $region19: #{tpu_custom_call.1} parent=1 // pred_check_branch
      %25 = sbr.rel (0) target = $region21
    $region20: #{tpu_custom_call.1} parent=1 // pred_region
      _
    $region21: #{tpu_custom_call.1} parent=1 // pred_fallthru
      _
    // Predicated region
    $region22: #{tpu_custom_call.1} parent=1 // pred_check
      _
    $region23: #{tpu_custom_call.1} parent=1 // pred_check_branch
      %27 = sbr.rel (0) target = $region25
    $region24: #{tpu_custom_call.1} parent=1 // pred_region
      _
    $region25: #{tpu_custom_call.1} parent=1 // pred_fallthru
      _
    // Predicated region
    $region26: #{tpu_custom_call.1} parent=1 // pred_check
      _
    $region27: #{tpu_custom_call.1} parent=1 // pred_check_branch
      %29 = sbr.rel (0) target = $region29
    $region28: #{tpu_custom_call.1} parent=1 // pred_region
      _
    $region29: #{tpu_custom_call.1} parent=1 // pred_fallthru
      _
    // Predicated region
    $region30: #{tpu_custom_call.1} parent=1 // pred_check
      _
    $region31: #{tpu_custom_call.1} parent=1 // pred_check_branch
      %31 = sbr.rel (0) target = $region33
    $region32: #{tpu_custom_call.1} parent=1 // pred_region
      _
    $region33: #{tpu_custom_call.1} parent=1 // pred_fallthru
      _
    // Predicated region
    $region34: #{tpu_custom_call.1} parent=1 // pred_check
      _
    $region35: #{tpu_custom_call.1} parent=1 // pred_check_branch
      %33 = sbr.rel (0) target = $region37
    $region36: #{tpu_custom_call.1} parent=1 // pred_region
      _
    $region37: #{tpu_custom_call.1} parent=1 // pred_fallthru
      _
    // Predicated region
    $region38: #{tpu_custom_call.1} parent=1 // pred_check
      _
    $region39: #{tpu_custom_call.1} parent=1 // pred_check_branch
      %35 = sbr.rel (0) target = $region41
    $region40: #{tpu_custom_call.1} parent=1 // pred_region
      _
    $region41: #{tpu_custom_call.1} parent=1 // pred_fallthru
      _
    %v36 = vld [vmem:[%s0] sm:$0xff]
    %v37 = vld [vmem:[%s0 + $0x8] sm:$0xff]
    %v38 = vld [vmem:[%s0 + $0x10] sm:$0xff]
    %v39 = vld [vmem:[%s0 + $0x18] sm:$0xff]
    %v40 = vld [vmem:[%s1] sm:$0xff]
    %v41 = vld [vmem:[%s1 + $0x8] sm:$0xff]
    %v42 = vld [vmem:[%s1 + $0x10] sm:$0xff]
    %v43 = vld [vmem:[%s1 + $0x18] sm:$0xff]
    %v44 = vld [vmem:[%s2] sm:$0xff]
    %v45 = vld [vmem:[%s2 + $0x8] sm:$0xff]
    %v46 = vld [vmem:[%s2 + $0x10] sm:$0xff]
    %v47 = vld [vmem:[%s2 + $0x18] sm:$0xff]
    %v48 = vadd.f32 %v40, %v44
    %v49 = vadd.f32 %v41, %v45
    %v50 = vadd.f32 %v42, %v46
    %v51 = vadd.f32 %v43, %v47
    %v52 = vld [vmem:[%s4] sm:$0xff]
    %v53 = vld [vmem:[%s4 + $0x8] sm:$0xff]
    %v54 = vld [vmem:[%s4 + $0x10] sm:$0xff]
    %v55 = vld [vmem:[%s4 + $0x18] sm:$0xff]
    %v56 = vld [vmem:[%s4 + $0x20] sm:$0xff]
    %vm57 = vcmask 130048
    %v59 = vsel %vm57, %v52, 0
    %v62 = vsel %vm57, %v53, 0
    %v65 = vsel %vm57, %v54, 0
    %v68 = vsel %vm57, %v55, 0
    %v71 = vsel %vm57, %v56, 0
    %73 = vmatprep.subr.mxu0 %v41
    %74 = vmatpush1.msra.mxu0 %v40
    %75 = vmatprep.subr.mxu0 %v43
    %76 = vmatpush1.msra.mxu0 %v42
    %77 = vmatprep.subr.mxu0 0.0
    %78 = vmatpush1.msra.mxu0 0.0
    %79 = vmatprep.subr.mxu0 0.0
    %80 = vmatpush1.msra.mxu0 0.0
    %81 = vmatprep.subr.mxu0 0.0
    %82 = vmatpush1.msra.mxu0 0.0
    %83 = vmatprep.subr.mxu0 0.0
    %84 = vmatpush1.msra.mxu0 0.0
    %85 = vmatprep.subr.mxu0 0.0
    %86 = vmatpush1.msra.mxu0 0.0
    %87 = vmatprep.subr.mxu0 0.0
    %88 = vmatpush1.msra.mxu0 0.0
    %89 = vmatprep.subr.mxu0 0.0
    %90 = vmatpush1.msra.mxu0 0.0
    %91 = vmatprep.subr.mxu0 0.0
    %92 = vmatpush1.msra.mxu0 0.0
    %93 = vmatprep.subr.mxu0 0.0
    %94 = vmatpush1.msra.mxu0 0.0
    %95 = vmatprep.subr.mxu0 0.0
    %96 = vmatpush1.msra.mxu0 0.0
    %97 = vmatprep.subr.mxu0 0.0
    %98 = vmatpush1.msra.mxu0 0.0
    %99 = vmatprep.subr.mxu0 0.0
    %100 = vmatpush1.msra.mxu0 0.0
    %101 = vmatprep.subr.mxu0 0.0
    %102 = vmatpush1.msra.mxu0 0.0
    %103 = vmatprep.subr.mxu0 0.0
    %104 = vmatpush1.msra.mxu0 0.0
    %105 = vmatprep.subr.mxu0 0.0
    %106 = vmatpush1.msra.mxu0 0.0
    %107 = vmatprep.subr.mxu0 0.0
    %108 = vmatpush1.msra.mxu0 0.0
    %109 = vmatprep.subr.mxu0 0.0
    %110 = vmatpush1.msra.mxu0 0.0
    %111 = vmatprep.subr.mxu0 0.0
    %112 = vmatpush1.msra.mxu0 0.0
    %113 = vmatprep.subr.mxu0 0.0
    %114 = vmatpush1.msra.mxu0 0.0
    %115 = vmatprep.subr.mxu0 0.0
    %116 = vmatpush1.msra.mxu0 0.0
    %117 = vmatprep.subr.mxu0 0.0
    %118 = vmatpush1.msra.mxu0 0.0
    %119 = vmatprep.subr.mxu0 0.0
    %120 = vmatpush1.msra.mxu0 0.0
    %121 = vmatprep.subr.mxu0 0.0
    %122 = vmatpush1.msra.mxu0 0.0
    %123 = vmatprep.subr.mxu0 0.0
    %124 = vmatpush1.msra.mxu0 0.0
    %125 = vmatprep.subr.mxu0 0.0
    %126 = vmatpush1.msra.mxu0 0.0
    %127 = vmatprep.subr.mxu0 0.0
    %128 = vmatpush1.msra.mxu0 0.0
    %129 = vmatprep.subr.mxu0 0.0
    %130 = vmatpush1.msra.mxu0 0.0
    %131 = vmatprep.subr.mxu0 0.0
    %132 = vmatpush1.msra.mxu0 0.0
    %133 = vmatprep.subr.mxu0 0.0
    %134 = vmatpush1.msra.mxu0 0.0
    %135 = vmatprep.subr.mxu0 0.0
    %136 = vmatpush1.msra.mxu0 0.0
    %137 = vmatprep.mubr.f32.mxu0 0.0
    %138 = vmatmul.mubr.f32.gmra.mrb[0].mxu0 %v59
    %v139 = vpop.f32.mrb[0].mxu0
    %v140 = vadd.f32 0.0, %v139
    %v141 = vpop.f32.mrb[0].mxu0
    %v142 = vadd.f32 0.0, %v141
    %143 = vmatprep.mubr.f32.mxu0 0.0
    %144 = vmatmul.mubr.f32.gmra.mrb[0].mxu0 %v62
    %v145 = vpop.f32.mrb[0].mxu0
    %v146 = vadd.f32 0.0, %v145
    %v147 = vpop.f32.mrb[0].mxu0
    %v148 = vadd.f32 0.0, %v147
    %149 = vmatprep.mubr.f32.mxu0 0.0
    %150 = vmatmul.mubr.f32.gmra.mrb[0].mxu0 %v65
    %v151 = vpop.f32.mrb[0].mxu0
    %v152 = vadd.f32 0.0, %v151
    %v153 = vpop.f32.mrb[0].mxu0
    %v154 = vadd.f32 0.0, %v153
    %155 = vmatprep.mubr.f32.mxu0 0.0
    %156 = vmatmul.mubr.f32.gmra.mrb[0].mxu0 %v68
    %v157 = vpop.f32.mrb[0].mxu0
    %v158 = vadd.f32 0.0, %v157
    %v159 = vpop.f32.mrb[0].mxu0
    %v160 = vadd.f32 0.0, %v159
    %161 = vmatprep.mubr.f32.mxu0 0.0
    %162 = vmatmul.mubr.f32.gmra.mrb[0].mxu0 %v71
    %v163 = vpop.f32.mrb[0].mxu0
    %v164 = vadd.f32 0.0, %v163
    %v165 = vpop.f32.mrb[0].mxu0
    %v166 = vadd.f32 0.0, %v165
    %167 = vdwg.mxu0
    %168 = vmatprep.subr.mxu0 %v49
    %169 = vmatpush1.msra.mxu0 %v48
    %170 = vmatprep.subr.mxu0 %v51
    %171 = vmatpush1.msra.mxu0 %v50
    %172 = vmatprep.subr.mxu0 0.0
    %173 = vmatpush1.msra.mxu0 0.0
    %174 = vmatprep.subr.mxu0 0.0
    %175 = vmatpush1.msra.mxu0 0.0
    %176 = vmatprep.subr.mxu0 0.0
    %177 = vmatpush1.msra.mxu0 0.0
    %178 = vmatprep.subr.mxu0 0.0
    %179 = vmatpush1.msra.mxu0 0.0
    %180 = vmatprep.subr.mxu0 0.0
    %181 = vmatpush1.msra.mxu0 0.0
    %182 = vmatprep.subr.mxu0 0.0
    %183 = vmatpush1.msra.mxu0 0.0
    %184 = vmatprep.subr.mxu0 0.0
    %185 = vmatpush1.msra.mxu0 0.0
    %186 = vmatprep.subr.mxu0 0.0
    %187 = vmatpush1.msra.mxu0 0.0
    %188 = vmatprep.subr.mxu0 0.0
    %189 = vmatpush1.msra.mxu0 0.0
    %190 = vmatprep.subr.mxu0 0.0
    %191 = vmatpush1.msra.mxu0 0.0
    %192 = vmatprep.subr.mxu0 0.0
    %193 = vmatpush1.msra.mxu0 0.0
    %194 = vmatprep.subr.mxu0 0.0
    %195 = vmatpush1.msra.mxu0 0.0
    %196 = vmatprep.subr.mxu0 0.0
    %197 = vmatpush1.msra.mxu0 0.0
    %198 = vmatprep.subr.mxu0 0.0
    %199 = vmatpush1.msra.mxu0 0.0
    %200 = vmatprep.subr.mxu0 0.0
    %201 = vmatpush1.msra.mxu0 0.0
    %202 = vmatprep.subr.mxu0 0.0
    %203 = vmatpush1.msra.mxu0 0.0
    %204 = vmatprep.subr.mxu0 0.0
    %205 = vmatpush1.msra.mxu0 0.0
    %206 = vmatprep.subr.mxu0 0.0
    %207 = vmatpush1.msra.mxu0 0.0
    %208 = vmatprep.subr.mxu0 0.0
    %209 = vmatpush1.msra.mxu0 0.0
    %210 = vmatprep.subr.mxu0 0.0
    %211 = vmatpush1.msra.mxu0 0.0
    %212 = vmatprep.subr.mxu0 0.0
    %213 = vmatpush1.msra.mxu0 0.0
    %214 = vmatprep.subr.mxu0 0.0
    %215 = vmatpush1.msra.mxu0 0.0
    %216 = vmatprep.subr.mxu0 0.0
    %217 = vmatpush1.msra.mxu0 0.0
    %218 = vmatprep.subr.mxu0 0.0
    %219 = vmatpush1.msra.mxu0 0.0
    %220 = vmatprep.subr.mxu0 0.0
    %221 = vmatpush1.msra.mxu0 0.0
    %222 = vmatprep.subr.mxu0 0.0
    %223 = vmatpush1.msra.mxu0 0.0
    %224 = vmatprep.subr.mxu0 0.0
    %225 = vmatpush1.msra.mxu0 0.0
    %226 = vmatprep.subr.mxu0 0.0
    %227 = vmatpush1.msra.mxu0 0.0
    %228 = vmatprep.subr.mxu0 0.0
    %229 = vmatpush1.msra.mxu0 0.0
    %230 = vmatprep.subr.mxu0 0.0
    %231 = vmatpush1.msra.mxu0 0.0
    %232 = vmatprep.mubr.f32.mxu0 0.0
    %233 = vmatmul.mubr.f32.gmra.mrb[0].mxu0 %v59
    %v234 = vpop.f32.mrb[0].mxu0
    %v235 = vadd.f32 0.0, %v234
    %v236 = vpop.f32.mrb[0].mxu0
    %v237 = vadd.f32 0.0, %v236
    %238 = vmatprep.mubr.f32.mxu0 0.0
    %239 = vmatmul.mubr.f32.gmra.mrb[0].mxu0 %v62
    %v240 = vpop.f32.mrb[0].mxu0
    %v241 = vadd.f32 0.0, %v240
    %v242 = vpop.f32.mrb[0].mxu0
    %v243 = vadd.f32 0.0, %v242
    %244 = vmatprep.mubr.f32.mxu0 0.0
    %245 = vmatmul.mubr.f32.gmra.mrb[0].mxu0 %v65
    %v246 = vpop.f32.mrb[0].mxu0
    %v247 = vadd.f32 0.0, %v246
    %v248 = vpop.f32.mrb[0].mxu0
    %v249 = vadd.f32 0.0, %v248
    %250 = vmatprep.mubr.f32.mxu0 0.0
    %251 = vmatmul.mubr.f32.gmra.mrb[0].mxu0 %v68
    %v252 = vpop.f32.mrb[0].mxu0
    %v253 = vadd.f32 0.0, %v252
    %v254 = vpop.f32.mrb[0].mxu0
    %v255 = vadd.f32 0.0, %v254
    %256 = vmatprep.mubr.f32.mxu0 0.0
    %257 = vmatmul.mubr.f32.gmra.mrb[0].mxu0 %v71
    %v258 = vpop.f32.mrb[0].mxu0
    %v259 = vadd.f32 0.0, %v258
    %v260 = vpop.f32.mrb[0].mxu0
    %v261 = vadd.f32 0.0, %v260
    %262 = vdwg.mxu0
    %v263 = vld [vmem:[%s3] sm:$0xff]
    %v264 = vld [vmem:[%s3 + $0x8] sm:$0xff]
    %v265 = vld [vmem:[%s3 + $0x10] sm:$0xff]
    %v266 = vld [vmem:[%s3 + $0x18] sm:$0xff]
    %v267 = vld [vmem:[%s3 + $0x20] sm:$0xff]
    %v268 = vld [vmem:[%s3 + $0x28] sm:$0xff]
    %v269 = vld [vmem:[%s3 + $0x30] sm:$0xff]
    %v270 = vld [vmem:[%s3 + $0x38] sm:$0xff]
    %v271 = vld [vmem:[%s3 + $0x40] sm:$0xff]
    %v272 = vld [vmem:[%s3 + $0x48] sm:$0xff]
    %vm273 = vcmask 138240
    %v275 = vsel %vm273, %v263, 0
    %v278 = vsel %vm273, %v264, 0
    %v281 = vsel %vm273, %v265, 0
    %v284 = vsel %vm273, %v266, 0
    %v287 = vsel %vm273, %v267, 0
    %v290 = vsel %vm273, %v268, 0
    %v293 = vsel %vm273, %v269, 0
    %v296 = vsel %vm273, %v270, 0
    %v299 = vsel %vm273, %v271, 0
    %v302 = vsel %vm273, %v272, 0
    %vm304 = vcmask 1040384
    %v306 = vsel %vm304, 1.0, 0
    %308 = vmatprep.subr.mxu0 %v37
    %309 = vmatpush1.msra.mxu0 %v36
    %310 = vmatprep.subr.mxu0 %v39
    %311 = vmatpush1.msra.mxu0 %v38
    %312 = vmatprep.subr.mxu0 %v306
    %313 = vmatpush1.msra.mxu0 %v306
    %314 = vmatprep.subr.mxu0 0.0
    %315 = vmatpush1.msra.mxu0 0.0
    %316 = vmatprep.subr.mxu0 0.0
    %317 = vmatpush1.msra.mxu0 0.0
    %318 = vmatprep.subr.mxu0 0.0
    %319 = vmatpush1.msra.mxu0 0.0
    %320 = vmatprep.subr.mxu0 0.0
    %321 = vmatpush1.msra.mxu0 0.0
    %322 = vmatprep.subr.mxu0 0.0
    %323 = vmatpush1.msra.mxu0 0.0
    %324 = vmatprep.subr.mxu0 0.0
    %325 = vmatpush1.msra.mxu0 0.0
    %326 = vmatprep.subr.mxu0 0.0
    %327 = vmatpush1.msra.mxu0 0.0
    %328 = vmatprep.subr.mxu0 0.0
    %329 = vmatpush1.msra.mxu0 0.0
    %330 = vmatprep.subr.mxu0 0.0
    %331 = vmatpush1.msra.mxu0 0.0
    %332 = vmatprep.subr.mxu0 0.0
    %333 = vmatpush1.msra.mxu0 0.0
    %334 = vmatprep.subr.mxu0 0.0
    %335 = vmatpush1.msra.mxu0 0.0
    %336 = vmatprep.subr.mxu0 0.0
    %337 = vmatpush1.msra.mxu0 0.0
    %338 = vmatprep.subr.mxu0 0.0
    %339 = vmatpush1.msra.mxu0 0.0
    %340 = vmatprep.subr.mxu0 0.0
    %341 = vmatpush1.msra.mxu0 0.0
    %342 = vmatprep.subr.mxu0 0.0
    %343 = vmatpush1.msra.mxu0 0.0
    %344 = vmatprep.subr.mxu0 0.0
    %345 = vmatpush1.msra.mxu0 0.0
    %346 = vmatprep.subr.mxu0 0.0
    %347 = vmatpush1.msra.mxu0 0.0
    %348 = vmatprep.subr.mxu0 0.0
    %349 = vmatpush1.msra.mxu0 0.0
    %350 = vmatprep.subr.mxu0 0.0
    %351 = vmatpush1.msra.mxu0 0.0
    %352 = vmatprep.subr.mxu0 0.0
    %353 = vmatpush1.msra.mxu0 0.0
    %354 = vmatprep.subr.mxu0 0.0
    %355 = vmatpush1.msra.mxu0 0.0
    %356 = vmatprep.subr.mxu0 0.0
    %357 = vmatpush1.msra.mxu0 0.0
    %358 = vmatprep.subr.mxu0 0.0
    %359 = vmatpush1.msra.mxu0 0.0
    %360 = vmatprep.subr.mxu0 0.0
    %361 = vmatpush1.msra.mxu0 0.0
    %362 = vmatprep.subr.mxu0 0.0
    %363 = vmatpush1.msra.mxu0 0.0
    %364 = vmatprep.subr.mxu0 0.0
    %365 = vmatpush1.msra.mxu0 0.0
    %366 = vmatprep.subr.mxu0 0.0
    %367 = vmatpush1.msra.mxu0 0.0
    %368 = vmatprep.subr.mxu0 0.0
    %369 = vmatpush1.msra.mxu0 0.0
    %370 = vmatprep.subr.mxu0 0.0
    %371 = vmatpush1.msra.mxu0 0.0
    %372 = vmatprep.mubr.f32.mxu0 0.0
    %373 = vmatmul.mubr.f32.gmra.mrb[0].mxu0 %v275
    %v374 = vpop.f32.mrb[0].mxu0
    %v375 = vadd.f32 0.0, %v374
    %v376 = vpop.f32.mrb[0].mxu0
    %v377 = vadd.f32 0.0, %v376
    %378 = vmatprep.mubr.f32.mxu0 0.0
    %379 = vmatmul.mubr.f32.gmra.mrb[0].mxu0 %v278
    %v380 = vpop.f32.mrb[0].mxu0
    %v381 = vadd.f32 0.0, %v380
    %v382 = vpop.f32.mrb[0].mxu0
    %v383 = vadd.f32 0.0, %v382
    %384 = vmatprep.mubr.f32.mxu0 0.0
    %385 = vmatmul.mubr.f32.gmra.mrb[0].mxu0 %v281
    %v386 = vpop.f32.mrb[0].mxu0
    %v387 = vadd.f32 0.0, %v386
    %v388 = vpop.f32.mrb[0].mxu0
    %v389 = vadd.f32 0.0, %v388
    %390 = vmatprep.mubr.f32.mxu0 0.0
    %391 = vmatmul.mubr.f32.gmra.mrb[0].mxu0 %v284
    %v392 = vpop.f32.mrb[0].mxu0
    %v393 = vadd.f32 0.0, %v392
    %v394 = vpop.f32.mrb[0].mxu0
    %v395 = vadd.f32 0.0, %v394
    %396 = vmatprep.mubr.f32.mxu0 0.0
    %397 = vmatmul.mubr.f32.gmra.mrb[0].mxu0 %v287
    %v398 = vpop.f32.mrb[0].mxu0
    %v399 = vadd.f32 0.0, %v398
    %v400 = vpop.f32.mrb[0].mxu0
    %v401 = vadd.f32 0.0, %v400
    %402 = vmatprep.mubr.f32.mxu0 0.0
    %403 = vmatmul.mubr.f32.gmra.mrb[0].mxu0 %v290
    %v404 = vpop.f32.mrb[0].mxu0
    %v405 = vadd.f32 0.0, %v404
    %v406 = vpop.f32.mrb[0].mxu0
    %v407 = vadd.f32 0.0, %v406
    %408 = vmatprep.mubr.f32.mxu0 0.0
    %409 = vmatmul.mubr.f32.gmra.mrb[0].mxu0 %v293
    %v410 = vpop.f32.mrb[0].mxu0
    %v411 = vadd.f32 0.0, %v410
    %v412 = vpop.f32.mrb[0].mxu0
    %v413 = vadd.f32 0.0, %v412
    %414 = vmatprep.mubr.f32.mxu0 0.0
    %415 = vmatmul.mubr.f32.gmra.mrb[0].mxu0 %v296
    %v416 = vpop.f32.mrb[0].mxu0
    %v417 = vadd.f32 0.0, %v416
    %v418 = vpop.f32.mrb[0].mxu0
    %v419 = vadd.f32 0.0, %v418
    %420 = vmatprep.mubr.f32.mxu0 0.0
    %421 = vmatmul.mubr.f32.gmra.mrb[0].mxu0 %v299
    %v422 = vpop.f32.mrb[0].mxu0
    %v423 = vadd.f32 0.0, %v422
    %v424 = vpop.f32.mrb[0].mxu0
    %v425 = vadd.f32 0.0, %v424
    %426 = vmatprep.mubr.f32.mxu0 0.0
    %427 = vmatmul.mubr.f32.gmra.mrb[0].mxu0 %v302
    %v428 = vpop.f32.mrb[0].mxu0
    %v429 = vadd.f32 0.0, %v428
    %v430 = vpop.f32.mrb[0].mxu0
    %v431 = vadd.f32 0.0, %v430
    %432 = vdwg.mxu0
    %v433 = vadd.f32 %v375, %v140
    %v434 = vadd.f32 %v377, %v142
    %v435 = vadd.f32 %v381, %v146
    %v436 = vadd.f32 %v383, %v148
    %v437 = vadd.f32 %v387, %v152
    %v438 = vadd.f32 %v389, %v154
    %v439 = vadd.f32 %v393, %v158
    %v440 = vadd.f32 %v395, %v160
    %v441 = vadd.f32 %v399, %v164
    %v442 = vadd.f32 %v401, %v166
    %v443 = vmax.f32 %v433, 0.0
    %v444 = vmax.f32 %v434, 0.0
    %v445 = vmax.f32 %v435, 0.0
    %v446 = vmax.f32 %v436, 0.0
    %v447 = vmax.f32 %v437, 0.0
    %v448 = vmax.f32 %v438, 0.0
    %v449 = vmax.f32 %v439, 0.0
    %v450 = vmax.f32 %v440, 0.0
    %v451 = vmax.f32 %v441, 0.0
    %v452 = vmax.f32 %v442, 0.0
    %v453 = vld [vmem:[%s5] sm:$0xff]
    %v454 = vld [vmem:[%s5 + $0x8] sm:$0xff]
    %v455 = vld [vmem:[%s5 + $0x10] sm:$0xff]
    %v456 = vld [vmem:[%s5 + $0x18] sm:$0xff]
    %v457 = vld [vmem:[%s5 + $0x20] sm:$0xff]
    %vm458 = vcmask 326656
    %v460 = vsel %vm458, %v453, 0
    %v463 = vsel %vm458, %v454, 0
    %v466 = vsel %vm458, %v455, 0
    %v469 = vsel %vm458, %v456, 0
    %v472 = vsel %vm458, %v457, 0
    %474 = vmatprep.subr.mxu0 %v444
    %475 = vmatpush1.msra.mxu0 %v443
    %476 = vmatprep.subr.mxu0 %v446
    %477 = vmatpush1.msra.mxu0 %v445
    %478 = vmatprep.subr.mxu0 %v448
    %479 = vmatpush1.msra.mxu0 %v447
    %480 = vmatprep.subr.mxu0 %v450
    %481 = vmatpush1.msra.mxu0 %v449
    %482 = vmatprep.subr.mxu0 %v452
    %483 = vmatpush1.msra.mxu0 %v451
    %484 = vmatprep.subr.mxu0 0.0
    %485 = vmatpush1.msra.mxu0 0.0
    %486 = vmatprep.subr.mxu0 0.0
    %487 = vmatpush1.msra.mxu0 0.0
    %488 = vmatprep.subr.mxu0 0.0
    %489 = vmatpush1.msra.mxu0 0.0
    %490 = vmatprep.subr.mxu0 0.0
    %491 = vmatpush1.msra.mxu0 0.0
    %492 = vmatprep.subr.mxu0 0.0
    %493 = vmatpush1.msra.mxu0 0.0
    %494 = vmatprep.subr.mxu0 0.0
    %495 = vmatpush1.msra.mxu0 0.0
    %496 = vmatprep.subr.mxu0 0.0
    %497 = vmatpush1.msra.mxu0 0.0
    %498 = vmatprep.subr.mxu0 0.0
    %499 = vmatpush1.msra.mxu0 0.0
    %500 = vmatprep.subr.mxu0 0.0
    %501 = vmatpush1.msra.mxu0 0.0
    %502 = vmatprep.subr.mxu0 0.0
    %503 = vmatpush1.msra.mxu0 0.0
    %504 = vmatprep.subr.mxu0 0.0
    %505 = vmatpush1.msra.mxu0 0.0
    %506 = vmatprep.subr.mxu0 0.0
    %507 = vmatpush1.msra.mxu0 0.0
    %508 = vmatprep.subr.mxu0 0.0
    %509 = vmatpush1.msra.mxu0 0.0
    %510 = vmatprep.subr.mxu0 0.0
    %511 = vmatpush1.msra.mxu0 0.0
    %512 = vmatprep.subr.mxu0 0.0
    %513 = vmatpush1.msra.mxu0 0.0
    %514 = vmatprep.subr.mxu0 0.0
    %515 = vmatpush1.msra.mxu0 0.0
    %516 = vmatprep.subr.mxu0 0.0
    %517 = vmatpush1.msra.mxu0 0.0
    %518 = vmatprep.subr.mxu0 0.0
    %519 = vmatpush1.msra.mxu0 0.0
    %520 = vmatprep.subr.mxu0 0.0
    %521 = vmatpush1.msra.mxu0 0.0
    %522 = vmatprep.subr.mxu0 0.0
    %523 = vmatpush1.msra.mxu0 0.0
    %524 = vmatprep.subr.mxu0 0.0
    %525 = vmatpush1.msra.mxu0 0.0
    %526 = vmatprep.subr.mxu0 0.0
    %527 = vmatpush1.msra.mxu0 0.0
    %528 = vmatprep.subr.mxu0 0.0
    %529 = vmatpush1.msra.mxu0 0.0
    %530 = vmatprep.subr.mxu0 0.0
    %531 = vmatpush1.msra.mxu0 0.0
    %532 = vmatprep.subr.mxu0 0.0
    %533 = vmatpush1.msra.mxu0 0.0
    %534 = vmatprep.subr.mxu0 0.0
    %535 = vmatpush1.msra.mxu0 0.0
    %536 = vmatprep.subr.mxu0 0.0
    %537 = vmatpush1.msra.mxu0 0.0
    %538 = vmatprep.mubr.f32.mxu0 0.0
    %539 = vmatmul.mubr.f32.gmra.mrb[0].mxu0 %v460
    %v540 = vpop.f32.mrb[0].mxu0
    %v541 = vadd.f32 0.0, %v540
    %v542 = vpop.f32.mrb[0].mxu0
    %v543 = vadd.f32 0.0, %v542
    %544 = vmatprep.mubr.f32.mxu0 0.0
    %545 = vmatmul.mubr.f32.gmra.mrb[0].mxu0 %v463
    %v546 = vpop.f32.mrb[0].mxu0
    %v547 = vadd.f32 0.0, %v546
    %v548 = vpop.f32.mrb[0].mxu0
    %v549 = vadd.f32 0.0, %v548
    %550 = vmatprep.mubr.f32.mxu0 0.0
    %551 = vmatmul.mubr.f32.gmra.mrb[0].mxu0 %v466
    %v552 = vpop.f32.mrb[0].mxu0
    %v553 = vadd.f32 0.0, %v552
    %v554 = vpop.f32.mrb[0].mxu0
    %v555 = vadd.f32 0.0, %v554
    %556 = vmatprep.mubr.f32.mxu0 0.0
    %557 = vmatmul.mubr.f32.gmra.mrb[0].mxu0 %v469
    %v558 = vpop.f32.mrb[0].mxu0
    %v559 = vadd.f32 0.0, %v558
    %v560 = vpop.f32.mrb[0].mxu0
    %v561 = vadd.f32 0.0, %v560
    %562 = vmatprep.mubr.f32.mxu0 0.0
    %563 = vmatmul.mubr.f32.gmra.mrb[0].mxu0 %v472
    %v564 = vpop.f32.mrb[0].mxu0
    %v565 = vadd.f32 0.0, %v564
    %v566 = vpop.f32.mrb[0].mxu0
    %v567 = vadd.f32 0.0, %v566
    %568 = vdwg.mxu0
    %v569 = vmax.f32 %v541, 0.0
    %v570 = vmax.f32 %v543, 0.0
    %v571 = vmax.f32 %v547, 0.0
    %v572 = vmax.f32 %v549, 0.0
    %v573 = vmax.f32 %v553, 0.0
    %v574 = vmax.f32 %v555, 0.0
    %v575 = vmax.f32 %v559, 0.0
    %v576 = vmax.f32 %v561, 0.0
    %v577 = vmax.f32 %v565, 0.0
    %v578 = vmax.f32 %v567, 0.0
    %v579 = vld [vmem:[%s6] sm:$0xf]
    %v581 = vsel %vm458, %v579, 0
    %583 = vmatprep.subr.mxu0 %v570
    %584 = vmatpush1.msra.mxu0 %v569
    %585 = vmatprep.subr.mxu0 %v572
    %586 = vmatpush1.msra.mxu0 %v571
    %587 = vmatprep.subr.mxu0 %v574
    %588 = vmatpush1.msra.mxu0 %v573
    %589 = vmatprep.subr.mxu0 %v576
    %590 = vmatpush1.msra.mxu0 %v575
    %591 = vmatprep.subr.mxu0 %v578
    %592 = vmatpush1.msra.mxu0 %v577
    %593 = vmatprep.subr.mxu0 0.0
    %594 = vmatpush1.msra.mxu0 0.0
    %595 = vmatprep.subr.mxu0 0.0
    %596 = vmatpush1.msra.mxu0 0.0
    %597 = vmatprep.subr.mxu0 0.0
    %598 = vmatpush1.msra.mxu0 0.0
    %599 = vmatprep.subr.mxu0 0.0
    %600 = vmatpush1.msra.mxu0 0.0
    %601 = vmatprep.subr.mxu0 0.0
    %602 = vmatpush1.msra.mxu0 0.0
    %603 = vmatprep.subr.mxu0 0.0
    %604 = vmatpush1.msra.mxu0 0.0
    %605 = vmatprep.subr.mxu0 0.0
    %606 = vmatpush1.msra.mxu0 0.0
    %607 = vmatprep.subr.mxu0 0.0
    %608 = vmatpush1.msra.mxu0 0.0
    %609 = vmatprep.subr.mxu0 0.0
    %610 = vmatpush1.msra.mxu0 0.0
    %611 = vmatprep.subr.mxu0 0.0
    %612 = vmatpush1.msra.mxu0 0.0
    %613 = vmatprep.subr.mxu0 0.0
    %614 = vmatpush1.msra.mxu0 0.0
    %615 = vmatprep.subr.mxu0 0.0
    %616 = vmatpush1.msra.mxu0 0.0
    %617 = vmatprep.subr.mxu0 0.0
    %618 = vmatpush1.msra.mxu0 0.0
    %619 = vmatprep.subr.mxu0 0.0
    %620 = vmatpush1.msra.mxu0 0.0
    %621 = vmatprep.subr.mxu0 0.0
    %622 = vmatpush1.msra.mxu0 0.0
    %623 = vmatprep.subr.mxu0 0.0
    %624 = vmatpush1.msra.mxu0 0.0
    %625 = vmatprep.subr.mxu0 0.0
    %626 = vmatpush1.msra.mxu0 0.0
    %627 = vmatprep.subr.mxu0 0.0
    %628 = vmatpush1.msra.mxu0 0.0
    %629 = vmatprep.subr.mxu0 0.0
    %630 = vmatpush1.msra.mxu0 0.0
    %631 = vmatprep.subr.mxu0 0.0
    %632 = vmatpush1.msra.mxu0 0.0
    %633 = vmatprep.subr.mxu0 0.0
    %634 = vmatpush1.msra.mxu0 0.0
    %635 = vmatprep.subr.mxu0 0.0
    %636 = vmatpush1.msra.mxu0 0.0
    %637 = vmatprep.subr.mxu0 0.0
    %638 = vmatpush1.msra.mxu0 0.0
    %639 = vmatprep.subr.mxu0 0.0
    %640 = vmatpush1.msra.mxu0 0.0
    %641 = vmatprep.subr.mxu0 0.0
    %642 = vmatpush1.msra.mxu0 0.0
    %643 = vmatprep.subr.mxu0 0.0
    %644 = vmatpush1.msra.mxu0 0.0
    %645 = vmatprep.subr.mxu0 0.0
    %646 = vmatpush1.msra.mxu0 0.0
    %647 = vmatprep.mubr.f32.mxu0 0.0
    %648 = vmatmul.mubr.f32.gmra.mrb[0].mxu0 %v581
    %v649 = vpop.f32.mrb[0].mxu0
    %v650 = vadd.f32 0.0, %v649
    %v651 = vpop.f32.mrb[0].mxu0
    %v652 = vadd.f32 0.0, %v651
    %653 = vdwg.mxu0
    %v654 = vtanh.pop %v650
    %v655 = vtanh.pop %v652
    %v656 = vld [vmem:[%s7] sm:$0xff]
    %v657 = vld [vmem:[%s7 + $0x8] sm:$0xff]
    %v658 = vld [vmem:[%s7 + $0x10] sm:$0xff]
    %v659 = vld [vmem:[%s7 + $0x18] sm:$0xff]
    %v660 = vld [vmem:[%s7 + $0x20] sm:$0xff]
    %vm661 = vcmask 31744
    %v663 = vsel %vm661, %v656, 0
    %v666 = vsel %vm661, %v657, 0
    %v669 = vsel %vm661, %v658, 0
    %v672 = vsel %vm661, %v659, 0
    %v675 = vsel %vm661, %v660, 0
    %vm677 = vcmask 1043456
    %v679 = vsel %vm677, %v654, 0
    %v682 = vsel %vm677, %v655, 0
    %684 = vmatprep.subr.mxu0 %v682
    %685 = vmatpush1.msra.mxu0 %v679
    %686 = vmatprep.subr.mxu0 0.0
    %687 = vmatpush1.msra.mxu0 0.0
    %688 = vmatprep.subr.mxu0 0.0
    %689 = vmatpush1.msra.mxu0 0.0
    %690 = vmatprep.subr.mxu0 0.0
    %691 = vmatpush1.msra.mxu0 0.0
    %692 = vmatprep.subr.mxu0 0.0
    %693 = vmatpush1.msra.mxu0 0.0
    %694 = vmatprep.subr.mxu0 0.0
    %695 = vmatpush1.msra.mxu0 0.0
    %696 = vmatprep.subr.mxu0 0.0
    %697 = vmatpush1.msra.mxu0 0.0
    %698 = vmatprep.subr.mxu0 0.0
    %699 = vmatpush1.msra.mxu0 0.0
    %700 = vmatprep.subr.mxu0 0.0
    %701 = vmatpush1.msra.mxu0 0.0
    %702 = vmatprep.subr.mxu0 0.0
    %703 = vmatpush1.msra.mxu0 0.0
    %704 = vmatprep.subr.mxu0 0.0
    %705 = vmatpush1.msra.mxu0 0.0
    %706 = vmatprep.subr.mxu0 0.0
    %707 = vmatpush1.msra.mxu0 0.0
    %708 = vmatprep.subr.mxu0 0.0
    %709 = vmatpush1.msra.mxu0 0.0
    %710 = vmatprep.subr.mxu0 0.0
    %711 = vmatpush1.msra.mxu0 0.0
    %712 = vmatprep.subr.mxu0 0.0
    %713 = vmatpush1.msra.mxu0 0.0
    %714 = vmatprep.subr.mxu0 0.0
    %715 = vmatpush1.msra.mxu0 0.0
    %716 = vmatprep.subr.mxu0 0.0
    %717 = vmatpush1.msra.mxu0 0.0
    %718 = vmatprep.subr.mxu0 0.0
    %719 = vmatpush1.msra.mxu0 0.0
    %720 = vmatprep.subr.mxu0 0.0
    %721 = vmatpush1.msra.mxu0 0.0
    %722 = vmatprep.subr.mxu0 0.0
    %723 = vmatpush1.msra.mxu0 0.0
    %724 = vmatprep.subr.mxu0 0.0
    %725 = vmatpush1.msra.mxu0 0.0
    %726 = vmatprep.subr.mxu0 0.0
    %727 = vmatpush1.msra.mxu0 0.0
    %728 = vmatprep.subr.mxu0 0.0
    %729 = vmatpush1.msra.mxu0 0.0
    %730 = vmatprep.subr.mxu0 0.0
    %731 = vmatpush1.msra.mxu0 0.0
    %732 = vmatprep.subr.mxu0 0.0
    %733 = vmatpush1.msra.mxu0 0.0
    %734 = vmatprep.subr.mxu0 0.0
    %735 = vmatpush1.msra.mxu0 0.0
    %736 = vmatprep.subr.mxu0 0.0
    %737 = vmatpush1.msra.mxu0 0.0
    %738 = vmatprep.subr.mxu0 0.0
    %739 = vmatpush1.msra.mxu0 0.0
    %740 = vmatprep.subr.mxu0 0.0
    %741 = vmatpush1.msra.mxu0 0.0
    %742 = vmatprep.subr.mxu0 0.0
    %743 = vmatpush1.msra.mxu0 0.0
    %744 = vmatprep.subr.mxu0 0.0
    %745 = vmatpush1.msra.mxu0 0.0
    %746 = vmatprep.subr.mxu0 0.0
    %747 = vmatpush1.msra.mxu0 0.0
    %748 = vmatprep.mubr.f32.mxu0 0.0
    %749 = vmatmul.mubr.f32.gmra.mrb[0].mxu0 %v663
    %v750 = vpop.f32.mrb[0].mxu0
    %v751 = vadd.f32 0.0, %v750
    %v752 = vpop.f32.mrb[0].mxu0
    %v753 = vadd.f32 0.0, %v752
    %754 = vmatprep.mubr.f32.mxu0 0.0
    %755 = vmatmul.mubr.f32.gmra.mrb[0].mxu0 %v666
    %v756 = vpop.f32.mrb[0].mxu0
    %v757 = vadd.f32 0.0, %v756
    %v758 = vpop.f32.mrb[0].mxu0
    %v759 = vadd.f32 0.0, %v758
    %760 = vmatprep.mubr.f32.mxu0 0.0
    %761 = vmatmul.mubr.f32.gmra.mrb[0].mxu0 %v669
    %v762 = vpop.f32.mrb[0].mxu0
    %v763 = vadd.f32 0.0, %v762
    %v764 = vpop.f32.mrb[0].mxu0
    %v765 = vadd.f32 0.0, %v764
    %766 = vmatprep.mubr.f32.mxu0 0.0
    %767 = vmatmul.mubr.f32.gmra.mrb[0].mxu0 %v672
    %v768 = vpop.f32.mrb[0].mxu0
    %v769 = vadd.f32 0.0, %v768
    %v770 = vpop.f32.mrb[0].mxu0
    %v771 = vadd.f32 0.0, %v770
    %772 = vmatprep.mubr.f32.mxu0 0.0
    %773 = vmatmul.mubr.f32.gmra.mrb[0].mxu0 %v675
    %v774 = vpop.f32.mrb[0].mxu0
    %v775 = vadd.f32 0.0, %v774
    %v776 = vpop.f32.mrb[0].mxu0
    %v777 = vadd.f32 0.0, %v776
    %778 = vdwg.mxu0
    %v779 = vadd.f32 %v405, %v751
    %v780 = vadd.f32 %v407, %v753
    %v781 = vadd.f32 %v411, %v757
    %v782 = vadd.f32 %v413, %v759
    %v783 = vadd.f32 %v417, %v763
    %v784 = vadd.f32 %v419, %v765
    %v785 = vadd.f32 %v423, %v769
    %v786 = vadd.f32 %v425, %v771
    %v787 = vadd.f32 %v429, %v775
    %v788 = vadd.f32 %v431, %v777
    %v789 = vmax.f32 %v779, 0.0
    %v790 = vmax.f32 %v780, 0.0
    %v791 = vmax.f32 %v781, 0.0
    %v792 = vmax.f32 %v782, 0.0
    %v793 = vmax.f32 %v783, 0.0
    %v794 = vmax.f32 %v784, 0.0
    %v795 = vmax.f32 %v785, 0.0
    %v796 = vmax.f32 %v786, 0.0
    %v797 = vmax.f32 %v787, 0.0
    %v798 = vmax.f32 %v788, 0.0
    %v799 = vld [vmem:[%s8] sm:$0xff]
    %v800 = vld [vmem:[%s8 + $0x8] sm:$0xff]
    %v801 = vld [vmem:[%s8 + $0x10] sm:$0xff]
    %v802 = vld [vmem:[%s8 + $0x18] sm:$0xff]
    %v803 = vld [vmem:[%s8 + $0x20] sm:$0xff]
    %v805 = vsel %vm458, %v799, 0
    %v808 = vsel %vm458, %v800, 0
    %v811 = vsel %vm458, %v801, 0
    %v814 = vsel %vm458, %v802, 0
    %v817 = vsel %vm458, %v803, 0
    %819 = vmatprep.subr.mxu0 %v790
    %820 = vmatpush1.msra.mxu0 %v789
    %821 = vmatprep.subr.mxu0 %v792
    %822 = vmatpush1.msra.mxu0 %v791
    %823 = vmatprep.subr.mxu0 %v794
    %824 = vmatpush1.msra.mxu0 %v793
    %825 = vmatprep.subr.mxu0 %v796
    %826 = vmatpush1.msra.mxu0 %v795
    %827 = vmatprep.subr.mxu0 %v798
    %828 = vmatpush1.msra.mxu0 %v797
    %829 = vmatprep.subr.mxu0 0.0
    %830 = vmatpush1.msra.mxu0 0.0
    %831 = vmatprep.subr.mxu0 0.0
    %832 = vmatpush1.msra.mxu0 0.0
    %833 = vmatprep.subr.mxu0 0.0
    %834 = vmatpush1.msra.mxu0 0.0
    %835 = vmatprep.subr.mxu0 0.0
    %836 = vmatpush1.msra.mxu0 0.0
    %837 = vmatprep.subr.mxu0 0.0
    %838 = vmatpush1.msra.mxu0 0.0
    %839 = vmatprep.subr.mxu0 0.0
    %840 = vmatpush1.msra.mxu0 0.0
    %841 = vmatprep.subr.mxu0 0.0
    %842 = vmatpush1.msra.mxu0 0.0
    %843 = vmatprep.subr.mxu0 0.0
    %844 = vmatpush1.msra.mxu0 0.0
    %845 = vmatprep.subr.mxu0 0.0
    %846 = vmatpush1.msra.mxu0 0.0
    %847 = vmatprep.subr.mxu0 0.0
    %848 = vmatpush1.msra.mxu0 0.0
    %849 = vmatprep.subr.mxu0 0.0
    %850 = vmatpush1.msra.mxu0 0.0
    %851 = vmatprep.subr.mxu0 0.0
    %852 = vmatpush1.msra.mxu0 0.0
    %853 = vmatprep.subr.mxu0 0.0
    %854 = vmatpush1.msra.mxu0 0.0
    %855 = vmatprep.subr.mxu0 0.0
    %856 = vmatpush1.msra.mxu0 0.0
    %857 = vmatprep.subr.mxu0 0.0
    %858 = vmatpush1.msra.mxu0 0.0
    %859 = vmatprep.subr.mxu0 0.0
    %860 = vmatpush1.msra.mxu0 0.0
    %861 = vmatprep.subr.mxu0 0.0
    %862 = vmatpush1.msra.mxu0 0.0
    %863 = vmatprep.subr.mxu0 0.0
    %864 = vmatpush1.msra.mxu0 0.0
    %865 = vmatprep.subr.mxu0 0.0
    %866 = vmatpush1.msra.mxu0 0.0
    %867 = vmatprep.subr.mxu0 0.0
    %868 = vmatpush1.msra.mxu0 0.0
    %869 = vmatprep.subr.mxu0 0.0
    %870 = vmatpush1.msra.mxu0 0.0
    %871 = vmatprep.subr.mxu0 0.0
    %872 = vmatpush1.msra.mxu0 0.0
    %873 = vmatprep.subr.mxu0 0.0
    %874 = vmatpush1.msra.mxu0 0.0
    %875 = vmatprep.subr.mxu0 0.0
    %876 = vmatpush1.msra.mxu0 0.0
    %877 = vmatprep.subr.mxu0 0.0
    %878 = vmatpush1.msra.mxu0 0.0
    %879 = vmatprep.subr.mxu0 0.0
    %880 = vmatpush1.msra.mxu0 0.0
    %881 = vmatprep.subr.mxu0 0.0
    %882 = vmatpush1.msra.mxu0 0.0
    %883 = vmatprep.mubr.f32.mxu0 0.0
    %884 = vmatmul.mubr.f32.gmra.mrb[0].mxu0 %v805
    %v885 = vpop.f32.mrb[0].mxu0
    %v886 = vadd.f32 0.0, %v885
    %v887 = vpop.f32.mrb[0].mxu0
    %v888 = vadd.f32 0.0, %v887
    %889 = vmatprep.mubr.f32.mxu0 0.0
    %890 = vmatmul.mubr.f32.gmra.mrb[0].mxu0 %v808
    %v891 = vpop.f32.mrb[0].mxu0
    %v892 = vadd.f32 0.0, %v891
    %v893 = vpop.f32.mrb[0].mxu0
    %v894 = vadd.f32 0.0, %v893
    %895 = vmatprep.mubr.f32.mxu0 0.0
    %896 = vmatmul.mubr.f32.gmra.mrb[0].mxu0 %v811
    %v897 = vpop.f32.mrb[0].mxu0
    %v898 = vadd.f32 0.0, %v897
    %v899 = vpop.f32.mrb[0].mxu0
    %v900 = vadd.f32 0.0, %v899
    %901 = vmatprep.mubr.f32.mxu0 0.0
    %902 = vmatmul.mubr.f32.gmra.mrb[0].mxu0 %v814
    %v903 = vpop.f32.mrb[0].mxu0
    %v904 = vadd.f32 0.0, %v903
    %v905 = vpop.f32.mrb[0].mxu0
    %v906 = vadd.f32 0.0, %v905
    %907 = vmatprep.mubr.f32.mxu0 0.0
    %908 = vmatmul.mubr.f32.gmra.mrb[0].mxu0 %v817
    %v909 = vpop.f32.mrb[0].mxu0
    %v910 = vadd.f32 0.0, %v909
    %v911 = vpop.f32.mrb[0].mxu0
    %v912 = vadd.f32 0.0, %v911
    %913 = vdwg.mxu0
    %v914 = vmax.f32 %v886, 0.0
    %v915 = vmax.f32 %v888, 0.0
    %v916 = vmax.f32 %v892, 0.0
    %v917 = vmax.f32 %v894, 0.0
    %v918 = vmax.f32 %v898, 0.0
    %v919 = vmax.f32 %v900, 0.0
    %v920 = vmax.f32 %v904, 0.0
    %v921 = vmax.f32 %v906, 0.0
    %v922 = vmax.f32 %v910, 0.0
    %v923 = vmax.f32 %v912, 0.0
    %v924 = vld [vmem:[%s9] sm:$0xff]
    %v925 = vld [vmem:[%s9 + $0x8] sm:$0xff]
    %v926 = vld [vmem:[%s9 + $0x10] sm:$0x3]
    %v928 = vsel %vm458, %v924, 0
    %v931 = vsel %vm458, %v925, 0
    %v934 = vsel %vm458, %v926, 0
    %936 = vmatprep.subr.mxu0 %v915
    %937 = vmatpush1.msra.mxu0 %v914
    %938 = vmatprep.subr.mxu0 %v917
    %939 = vmatpush1.msra.mxu0 %v916
    %940 = vmatprep.subr.mxu0 %v919
    %941 = vmatpush1.msra.mxu0 %v918
    %942 = vmatprep.subr.mxu0 %v921
    %943 = vmatpush1.msra.mxu0 %v920
    %944 = vmatprep.subr.mxu0 %v923
    %945 = vmatpush1.msra.mxu0 %v922
    %946 = vmatprep.subr.mxu0 0.0
    %947 = vmatpush1.msra.mxu0 0.0
    %948 = vmatprep.subr.mxu0 0.0
    %949 = vmatpush1.msra.mxu0 0.0
    %950 = vmatprep.subr.mxu0 0.0
    %951 = vmatpush1.msra.mxu0 0.0
    %952 = vmatprep.subr.mxu0 0.0
    %953 = vmatpush1.msra.mxu0 0.0
    %954 = vmatprep.subr.mxu0 0.0
    %955 = vmatpush1.msra.mxu0 0.0
    %956 = vmatprep.subr.mxu0 0.0
    %957 = vmatpush1.msra.mxu0 0.0
    %958 = vmatprep.subr.mxu0 0.0
    %959 = vmatpush1.msra.mxu0 0.0
    %960 = vmatprep.subr.mxu0 0.0
    %961 = vmatpush1.msra.mxu0 0.0
    %962 = vmatprep.subr.mxu0 0.0
    %963 = vmatpush1.msra.mxu0 0.0
    %964 = vmatprep.subr.mxu0 0.0
    %965 = vmatpush1.msra.mxu0 0.0
    %966 = vmatprep.subr.mxu0 0.0
    %967 = vmatpush1.msra.mxu0 0.0
    %968 = vmatprep.subr.mxu0 0.0
    %969 = vmatpush1.msra.mxu0 0.0
    %970 = vmatprep.subr.mxu0 0.0
    %971 = vmatpush1.msra.mxu0 0.0
    %972 = vmatprep.subr.mxu0 0.0
    %973 = vmatpush1.msra.mxu0 0.0
    %974 = vmatprep.subr.mxu0 0.0
    %975 = vmatpush1.msra.mxu0 0.0
    %976 = vmatprep.subr.mxu0 0.0
    %977 = vmatpush1.msra.mxu0 0.0
    %978 = vmatprep.subr.mxu0 0.0
    %979 = vmatpush1.msra.mxu0 0.0
    %980 = vmatprep.subr.mxu0 0.0
    %981 = vmatpush1.msra.mxu0 0.0
    %982 = vmatprep.subr.mxu0 0.0
    %983 = vmatpush1.msra.mxu0 0.0
    %984 = vmatprep.subr.mxu0 0.0
    %985 = vmatpush1.msra.mxu0 0.0
    %986 = vmatprep.subr.mxu0 0.0
    %987 = vmatpush1.msra.mxu0 0.0
    %988 = vmatprep.subr.mxu0 0.0
    %989 = vmatpush1.msra.mxu0 0.0
    %990 = vmatprep.subr.mxu0 0.0
    %991 = vmatpush1.msra.mxu0 0.0
    %992 = vmatprep.subr.mxu0 0.0
    %993 = vmatpush1.msra.mxu0 0.0
    %994 = vmatprep.subr.mxu0 0.0
    %995 = vmatpush1.msra.mxu0 0.0
    %996 = vmatprep.subr.mxu0 0.0
    %997 = vmatpush1.msra.mxu0 0.0
    %998 = vmatprep.subr.mxu0 0.0
    %999 = vmatpush1.msra.mxu0 0.0
    %1000 = vmatprep.mubr.f32.mxu0 0.0
    %1001 = vmatmul.mubr.f32.gmra.mrb[0].mxu0 %v928
    %v1002 = vpop.f32.mrb[0].mxu0
    %v1003 = vadd.f32 0.0, %v1002
    %v1004 = vpop.f32.mrb[0].mxu0
    %v1005 = vadd.f32 0.0, %v1004
    %1006 = vmatprep.mubr.f32.mxu0 0.0
    %1007 = vmatmul.mubr.f32.gmra.mrb[0].mxu0 %v931
    %v1008 = vpop.f32.mrb[0].mxu0
    %v1009 = vadd.f32 0.0, %v1008
    %v1010 = vpop.f32.mrb[0].mxu0
    %v1011 = vadd.f32 0.0, %v1010
    %1012 = vmatprep.mubr.f32.mxu0 0.0
    %1013 = vmatmul.mubr.f32.gmra.mrb[0].mxu0 %v934
    %v1014 = vpop.f32.mrb[0].mxu0
    %v1015 = vadd.f32 0.0, %v1014
    %v1016 = vpop.f32.mrb[0].mxu0
    %v1017 = vadd.f32 0.0, %v1016
    %1018 = vdwg.mxu0
    %v1019 = vadd.f32 %v1003, %v36
    %v1020 = vadd.f32 %v1005, %v37
    %v1021 = vadd.f32 %v1009, %v38
    %v1022 = vadd.f32 %v1011, %v39
    %v1023 = vadd.f32 %v1015, 1.0
    %v1024 = vadd.f32 %v1017, 1.0
    %v1025 = vadd.f32 %v1015, 0.0
    %v1026 = vadd.f32 %v1017, 0.0
    %v1028 = vsel %vm304, %v1023, 0
    %v1031 = vsel %vm304, %v1024, 0
    %1033 = vmatprep.subr.mxu0 %v1020
    %1034 = vmatpush1.msra.mxu0 %v1019
    %1035 = vmatprep.subr.mxu0 %v1022
    %1036 = vmatpush1.msra.mxu0 %v1021
    %1037 = vmatprep.subr.mxu0 %v1031
    %1038 = vmatpush1.msra.mxu0 %v1028
    %1039 = vmatprep.subr.mxu0 0.0
    %1040 = vmatpush1.msra.mxu0 0.0
    %1041 = vmatprep.subr.mxu0 0.0
    %1042 = vmatpush1.msra.mxu0 0.0
    %1043 = vmatprep.subr.mxu0 0.0
    %1044 = vmatpush1.msra.mxu0 0.0
    %1045 = vmatprep.subr.mxu0 0.0
    %1046 = vmatpush1.msra.mxu0 0.0
    %1047 = vmatprep.subr.mxu0 0.0
    %1048 = vmatpush1.msra.mxu0 0.0
    %1049 = vmatprep.subr.mxu0 0.0
    %1050 = vmatpush1.msra.mxu0 0.0
    %1051 = vmatprep.subr.mxu0 0.0
    %1052 = vmatpush1.msra.mxu0 0.0
    %1053 = vmatprep.subr.mxu0 0.0
    %1054 = vmatpush1.msra.mxu0 0.0
    %1055 = vmatprep.subr.mxu0 0.0
    %1056 = vmatpush1.msra.mxu0 0.0
    %1057 = vmatprep.subr.mxu0 0.0
    %1058 = vmatpush1.msra.mxu0 0.0
    %1059 = vmatprep.subr.mxu0 0.0
    %1060 = vmatpush1.msra.mxu0 0.0
    %1061 = vmatprep.subr.mxu0 0.0
    %1062 = vmatpush1.msra.mxu0 0.0
    %1063 = vmatprep.subr.mxu0 0.0
    %1064 = vmatpush1.msra.mxu0 0.0
    %1065 = vmatprep.subr.mxu0 0.0
    %1066 = vmatpush1.msra.mxu0 0.0
    %1067 = vmatprep.subr.mxu0 0.0
    %1068 = vmatpush1.msra.mxu0 0.0
    %1069 = vmatprep.subr.mxu0 0.0
    %1070 = vmatpush1.msra.mxu0 0.0
    %1071 = vmatprep.subr.mxu0 0.0
    %1072 = vmatpush1.msra.mxu0 0.0
    %1073 = vmatprep.subr.mxu0 0.0
    %1074 = vmatpush1.msra.mxu0 0.0
    %1075 = vmatprep.subr.mxu0 0.0
    %1076 = vmatpush1.msra.mxu0 0.0
    %1077 = vmatprep.subr.mxu0 0.0
    %1078 = vmatpush1.msra.mxu0 0.0
    %1079 = vmatprep.subr.mxu0 0.0
    %1080 = vmatpush1.msra.mxu0 0.0
    %1081 = vmatprep.subr.mxu0 0.0
    %1082 = vmatpush1.msra.mxu0 0.0
    %1083 = vmatprep.subr.mxu0 0.0
    %1084 = vmatpush1.msra.mxu0 0.0
    %1085 = vmatprep.subr.mxu0 0.0
    %1086 = vmatpush1.msra.mxu0 0.0
    %1087 = vmatprep.subr.mxu0 0.0
    %1088 = vmatpush1.msra.mxu0 0.0
    %1089 = vmatprep.subr.mxu0 0.0
    %1090 = vmatpush1.msra.mxu0 0.0
    %1091 = vmatprep.subr.mxu0 0.0
    %1092 = vmatpush1.msra.mxu0 0.0
    %1093 = vmatprep.subr.mxu0 0.0
    %1094 = vmatpush1.msra.mxu0 0.0
    %1095 = vmatprep.subr.mxu0 0.0
    %1096 = vmatpush1.msra.mxu0 0.0
    %1097 = vmatprep.mubr.f32.mxu0 0.0
    %1098 = vmatmul.mubr.f32.gmra.mrb[0].mxu0 %v275
    %v1099 = vpop.f32.mrb[0].mxu0
    %v1100 = vadd.f32 0.0, %v1099
    %v1101 = vpop.f32.mrb[0].mxu0
    %v1102 = vadd.f32 0.0, %v1101
    %1103 = vmatprep.mubr.f32.mxu0 0.0
    %1104 = vmatmul.mubr.f32.gmra.mrb[0].mxu0 %v278
    %v1105 = vpop.f32.mrb[0].mxu0
    %v1106 = vadd.f32 0.0, %v1105
    %v1107 = vpop.f32.mrb[0].mxu0
    %v1108 = vadd.f32 0.0, %v1107
    %1109 = vmatprep.mubr.f32.mxu0 0.0
    %1110 = vmatmul.mubr.f32.gmra.mrb[0].mxu0 %v281
    %v1111 = vpop.f32.mrb[0].mxu0
    %v1112 = vadd.f32 0.0, %v1111
    %v1113 = vpop.f32.mrb[0].mxu0
    %v1114 = vadd.f32 0.0, %v1113
    %1115 = vmatprep.mubr.f32.mxu0 0.0
    %1116 = vmatmul.mubr.f32.gmra.mrb[0].mxu0 %v284
    %v1117 = vpop.f32.mrb[0].mxu0
    %v1118 = vadd.f32 0.0, %v1117
    %v1119 = vpop.f32.mrb[0].mxu0
    %v1120 = vadd.f32 0.0, %v1119
    %1121 = vmatprep.mubr.f32.mxu0 0.0
    %1122 = vmatmul.mubr.f32.gmra.mrb[0].mxu0 %v287
    %v1123 = vpop.f32.mrb[0].mxu0
    %v1124 = vadd.f32 0.0, %v1123
    %v1125 = vpop.f32.mrb[0].mxu0
    %v1126 = vadd.f32 0.0, %v1125
    %1127 = vmatprep.mubr.f32.mxu0 0.0
    %1128 = vmatmul.mubr.f32.gmra.mrb[0].mxu0 %v290
    %v1129 = vpop.f32.mrb[0].mxu0
    %v1130 = vadd.f32 0.0, %v1129
    %v1131 = vpop.f32.mrb[0].mxu0
    %v1132 = vadd.f32 0.0, %v1131
    %1133 = vmatprep.mubr.f32.mxu0 0.0
    %1134 = vmatmul.mubr.f32.gmra.mrb[0].mxu0 %v293
    %v1135 = vpop.f32.mrb[0].mxu0
    %v1136 = vadd.f32 0.0, %v1135
    %v1137 = vpop.f32.mrb[0].mxu0
    %v1138 = vadd.f32 0.0, %v1137
    %1139 = vmatprep.mubr.f32.mxu0 0.0
    %1140 = vmatmul.mubr.f32.gmra.mrb[0].mxu0 %v296
    %v1141 = vpop.f32.mrb[0].mxu0
    %v1142 = vadd.f32 0.0, %v1141
    %v1143 = vpop.f32.mrb[0].mxu0
    %v1144 = vadd.f32 0.0, %v1143
    %1145 = vmatprep.mubr.f32.mxu0 0.0
    %1146 = vmatmul.mubr.f32.gmra.mrb[0].mxu0 %v299
    %v1147 = vpop.f32.mrb[0].mxu0
    %v1148 = vadd.f32 0.0, %v1147
    %v1149 = vpop.f32.mrb[0].mxu0
    %v1150 = vadd.f32 0.0, %v1149
    %1151 = vmatprep.mubr.f32.mxu0 0.0
    %1152 = vmatmul.mubr.f32.gmra.mrb[0].mxu0 %v302
    %v1153 = vpop.f32.mrb[0].mxu0
    %v1154 = vadd.f32 0.0, %v1153
    %v1155 = vpop.f32.mrb[0].mxu0
    %v1156 = vadd.f32 0.0, %v1155
    %1157 = vdwg.mxu0
    %v1158 = vadd.f32 %v1100, %v235
    %v1159 = vadd.f32 %v1102, %v237
    %v1160 = vadd.f32 %v1106, %v241
    %v1161 = vadd.f32 %v1108, %v243
    %v1162 = vadd.f32 %v1112, %v247
    %v1163 = vadd.f32 %v1114, %v249
    %v1164 = vadd.f32 %v1118, %v253
    %v1165 = vadd.f32 %v1120, %v255
    %v1166 = vadd.f32 %v1124, %v259
    %v1167 = vadd.f32 %v1126, %v261
    %v1168 = vmax.f32 %v1158, 0.0
    %v1169 = vmax.f32 %v1159, 0.0
    %v1170 = vmax.f32 %v1160, 0.0
    %v1171 = vmax.f32 %v1161, 0.0
    %v1172 = vmax.f32 %v1162, 0.0
    %v1173 = vmax.f32 %v1163, 0.0
    %v1174 = vmax.f32 %v1164, 0.0
    %v1175 = vmax.f32 %v1165, 0.0
    %v1176 = vmax.f32 %v1166, 0.0
    %v1177 = vmax.f32 %v1167, 0.0
    %1178 = vmatprep.subr.mxu0 %v1169
    %1179 = vmatpush1.msra.mxu0 %v1168
    %1180 = vmatprep.subr.mxu0 %v1171
    %1181 = vmatpush1.msra.mxu0 %v1170
    %1182 = vmatprep.subr.mxu0 %v1173
    %1183 = vmatpush1.msra.mxu0 %v1172
    %1184 = vmatprep.subr.mxu0 %v1175
    %1185 = vmatpush1.msra.mxu0 %v1174
    %1186 = vmatprep.subr.mxu0 %v1177
    %1187 = vmatpush1.msra.mxu0 %v1176
    %1188 = vmatprep.subr.mxu0 0.0
    %1189 = vmatpush1.msra.mxu0 0.0
    %1190 = vmatprep.subr.mxu0 0.0
    %1191 = vmatpush1.msra.mxu0 0.0
    %1192 = vmatprep.subr.mxu0 0.0
    %1193 = vmatpush1.msra.mxu0 0.0
    %1194 = vmatprep.subr.mxu0 0.0
    %1195 = vmatpush1.msra.mxu0 0.0
    %1196 = vmatprep.subr.mxu0 0.0
    %1197 = vmatpush1.msra.mxu0 0.0
    %1198 = vmatprep.subr.mxu0 0.0
    %1199 = vmatpush1.msra.mxu0 0.0
    %1200 = vmatprep.subr.mxu0 0.0
    %1201 = vmatpush1.msra.mxu0 0.0
    %1202 = vmatprep.subr.mxu0 0.0
    %1203 = vmatpush1.msra.mxu0 0.0
    %1204 = vmatprep.subr.mxu0 0.0
    %1205 = vmatpush1.msra.mxu0 0.0
    %1206 = vmatprep.subr.mxu0 0.0
    %1207 = vmatpush1.msra.mxu0 0.0
    %1208 = vmatprep.subr.mxu0 0.0
    %1209 = vmatpush1.msra.mxu0 0.0
    %1210 = vmatprep.subr.mxu0 0.0
    %1211 = vmatpush1.msra.mxu0 0.0
    %1212 = vmatprep.subr.mxu0 0.0
    %1213 = vmatpush1.msra.mxu0 0.0
    %1214 = vmatprep.subr.mxu0 0.0
    %1215 = vmatpush1.msra.mxu0 0.0
    %1216 = vmatprep.subr.mxu0 0.0
    %1217 = vmatpush1.msra.mxu0 0.0
    %1218 = vmatprep.subr.mxu0 0.0
    %1219 = vmatpush1.msra.mxu0 0.0
    %1220 = vmatprep.subr.mxu0 0.0
    %1221 = vmatpush1.msra.mxu0 0.0
    %1222 = vmatprep.subr.mxu0 0.0
    %1223 = vmatpush1.msra.mxu0 0.0
    %1224 = vmatprep.subr.mxu0 0.0
    %1225 = vmatpush1.msra.mxu0 0.0
    %1226 = vmatprep.subr.mxu0 0.0
    %1227 = vmatpush1.msra.mxu0 0.0
    %1228 = vmatprep.subr.mxu0 0.0
    %1229 = vmatpush1.msra.mxu0 0.0
    %1230 = vmatprep.subr.mxu0 0.0
    %1231 = vmatpush1.msra.mxu0 0.0
    %1232 = vmatprep.subr.mxu0 0.0
    %1233 = vmatpush1.msra.mxu0 0.0
    %1234 = vmatprep.subr.mxu0 0.0
    %1235 = vmatpush1.msra.mxu0 0.0
    %1236 = vmatprep.subr.mxu0 0.0
    %1237 = vmatpush1.msra.mxu0 0.0
    %1238 = vmatprep.subr.mxu0 0.0
    %1239 = vmatpush1.msra.mxu0 0.0
    %1240 = vmatprep.subr.mxu0 0.0
    %1241 = vmatpush1.msra.mxu0 0.0
    %1242 = vmatprep.mubr.f32.mxu0 0.0
    %1243 = vmatmul.mubr.f32.gmra.mrb[0].mxu0 %v460
    %v1244 = vpop.f32.mrb[0].mxu0
    %v1245 = vadd.f32 0.0, %v1244
    %v1246 = vpop.f32.mrb[0].mxu0
    %v1247 = vadd.f32 0.0, %v1246
    %1248 = vmatprep.mubr.f32.mxu0 0.0
    %1249 = vmatmul.mubr.f32.gmra.mrb[0].mxu0 %v463
    %v1250 = vpop.f32.mrb[0].mxu0
    %v1251 = vadd.f32 0.0, %v1250
    %v1252 = vpop.f32.mrb[0].mxu0
    %v1253 = vadd.f32 0.0, %v1252
    %1254 = vmatprep.mubr.f32.mxu0 0.0
    %1255 = vmatmul.mubr.f32.gmra.mrb[0].mxu0 %v466
    %v1256 = vpop.f32.mrb[0].mxu0
    %v1257 = vadd.f32 0.0, %v1256
    %v1258 = vpop.f32.mrb[0].mxu0
    %v1259 = vadd.f32 0.0, %v1258
    %1260 = vmatprep.mubr.f32.mxu0 0.0
    %1261 = vmatmul.mubr.f32.gmra.mrb[0].mxu0 %v469
    %v1262 = vpop.f32.mrb[0].mxu0
    %v1263 = vadd.f32 0.0, %v1262
    %v1264 = vpop.f32.mrb[0].mxu0
    %v1265 = vadd.f32 0.0, %v1264
    %1266 = vmatprep.mubr.f32.mxu0 0.0
    %1267 = vmatmul.mubr.f32.gmra.mrb[0].mxu0 %v472
    %v1268 = vpop.f32.mrb[0].mxu0
    %v1269 = vadd.f32 0.0, %v1268
    %v1270 = vpop.f32.mrb[0].mxu0
    %v1271 = vadd.f32 0.0, %v1270
    %1272 = vdwg.mxu0
    %v1273 = vmax.f32 %v1245, 0.0
    %v1274 = vmax.f32 %v1247, 0.0
    %v1275 = vmax.f32 %v1251, 0.0
    %v1276 = vmax.f32 %v1253, 0.0
    %v1277 = vmax.f32 %v1257, 0.0
    %v1278 = vmax.f32 %v1259, 0.0
    %v1279 = vmax.f32 %v1263, 0.0
    %v1280 = vmax.f32 %v1265, 0.0
    %v1281 = vmax.f32 %v1269, 0.0
    %v1282 = vmax.f32 %v1271, 0.0
    %1283 = vmatprep.subr.mxu0 %v1274
    %1284 = vmatpush1.msra.mxu0 %v1273
    %1285 = vmatprep.subr.mxu0 %v1276
    %1286 = vmatpush1.msra.mxu0 %v1275
    %1287 = vmatprep.subr.mxu0 %v1278
    %1288 = vmatpush1.msra.mxu0 %v1277
    %1289 = vmatprep.subr.mxu0 %v1280
    %1290 = vmatpush1.msra.mxu0 %v1279
    %1291 = vmatprep.subr.mxu0 %v1282
    %1292 = vmatpush1.msra.mxu0 %v1281
    %1293 = vmatprep.subr.mxu0 0.0
    %1294 = vmatpush1.msra.mxu0 0.0
    %1295 = vmatprep.subr.mxu0 0.0
    %1296 = vmatpush1.msra.mxu0 0.0
    %1297 = vmatprep.subr.mxu0 0.0
    %1298 = vmatpush1.msra.mxu0 0.0
    %1299 = vmatprep.subr.mxu0 0.0
    %1300 = vmatpush1.msra.mxu0 0.0
    %1301 = vmatprep.subr.mxu0 0.0
    %1302 = vmatpush1.msra.mxu0 0.0
    %1303 = vmatprep.subr.mxu0 0.0
    %1304 = vmatpush1.msra.mxu0 0.0
    %1305 = vmatprep.subr.mxu0 0.0
    %1306 = vmatpush1.msra.mxu0 0.0
    %1307 = vmatprep.subr.mxu0 0.0
    %1308 = vmatpush1.msra.mxu0 0.0
    %1309 = vmatprep.subr.mxu0 0.0
    %1310 = vmatpush1.msra.mxu0 0.0
    %1311 = vmatprep.subr.mxu0 0.0
    %1312 = vmatpush1.msra.mxu0 0.0
    %1313 = vmatprep.subr.mxu0 0.0
    %1314 = vmatpush1.msra.mxu0 0.0
    %1315 = vmatprep.subr.mxu0 0.0
    %1316 = vmatpush1.msra.mxu0 0.0
    %1317 = vmatprep.subr.mxu0 0.0
    %1318 = vmatpush1.msra.mxu0 0.0
    %1319 = vmatprep.subr.mxu0 0.0
    %1320 = vmatpush1.msra.mxu0 0.0
    %1321 = vmatprep.subr.mxu0 0.0
    %1322 = vmatpush1.msra.mxu0 0.0
    %1323 = vmatprep.subr.mxu0 0.0
    %1324 = vmatpush1.msra.mxu0 0.0
    %1325 = vmatprep.subr.mxu0 0.0
    %1326 = vmatpush1.msra.mxu0 0.0
    %1327 = vmatprep.subr.mxu0 0.0
    %1328 = vmatpush1.msra.mxu0 0.0
    %1329 = vmatprep.subr.mxu0 0.0
    %1330 = vmatpush1.msra.mxu0 0.0
    %1331 = vmatprep.subr.mxu0 0.0
    %1332 = vmatpush1.msra.mxu0 0.0
    %1333 = vmatprep.subr.mxu0 0.0
    %1334 = vmatpush1.msra.mxu0 0.0
    %1335 = vmatprep.subr.mxu0 0.0
    %1336 = vmatpush1.msra.mxu0 0.0
    %1337 = vmatprep.subr.mxu0 0.0
    %1338 = vmatpush1.msra.mxu0 0.0
    %1339 = vmatprep.subr.mxu0 0.0
    %1340 = vmatpush1.msra.mxu0 0.0
    %1341 = vmatprep.subr.mxu0 0.0
    %1342 = vmatpush1.msra.mxu0 0.0
    %1343 = vmatprep.subr.mxu0 0.0
    %1344 = vmatpush1.msra.mxu0 0.0
    %1345 = vmatprep.subr.mxu0 0.0
    %1346 = vmatpush1.msra.mxu0 0.0
    %1347 = vmatprep.mubr.f32.mxu0 0.0
    %1348 = vmatmul.mubr.f32.gmra.mrb[0].mxu0 %v581
    %v1349 = vpop.f32.mrb[0].mxu0
    %v1350 = vadd.f32 0.0, %v1349
    %v1351 = vpop.f32.mrb[0].mxu0
    %v1352 = vadd.f32 0.0, %v1351
    %1353 = vdwg.mxu0
    %v1354 = vtanh.pop %v1350
    %v1355 = vtanh.pop %v1352
    %v1357 = vsel %vm677, %v1354, 0
    %v1360 = vsel %vm677, %v1355, 0
    %1362 = vmatprep.subr.mxu0 %v1360
    %1363 = vmatpush1.msra.mxu0 %v1357
    %1364 = vmatprep.subr.mxu0 0.0
    %1365 = vmatpush1.msra.mxu0 0.0
    %1366 = vmatprep.subr.mxu0 0.0
    %1367 = vmatpush1.msra.mxu0 0.0
    %1368 = vmatprep.subr.mxu0 0.0
    %1369 = vmatpush1.msra.mxu0 0.0
    %1370 = vmatprep.subr.mxu0 0.0
    %1371 = vmatpush1.msra.mxu0 0.0
    %1372 = vmatprep.subr.mxu0 0.0
    %1373 = vmatpush1.msra.mxu0 0.0
    %1374 = vmatprep.subr.mxu0 0.0
    %1375 = vmatpush1.msra.mxu0 0.0
    %1376 = vmatprep.subr.mxu0 0.0
    %1377 = vmatpush1.msra.mxu0 0.0
    %1378 = vmatprep.subr.mxu0 0.0
    %1379 = vmatpush1.msra.mxu0 0.0
    %1380 = vmatprep.subr.mxu0 0.0
    %1381 = vmatpush1.msra.mxu0 0.0
    %1382 = vmatprep.subr.mxu0 0.0
    %1383 = vmatpush1.msra.mxu0 0.0
    %1384 = vmatprep.subr.mxu0 0.0
    %1385 = vmatpush1.msra.mxu0 0.0
    %1386 = vmatprep.subr.mxu0 0.0
    %1387 = vmatpush1.msra.mxu0 0.0
    %1388 = vmatprep.subr.mxu0 0.0
    %1389 = vmatpush1.msra.mxu0 0.0
    %1390 = vmatprep.subr.mxu0 0.0
    %1391 = vmatpush1.msra.mxu0 0.0
    %1392 = vmatprep.subr.mxu0 0.0
    %1393 = vmatpush1.msra.mxu0 0.0
    %1394 = vmatprep.subr.mxu0 0.0
    %1395 = vmatpush1.msra.mxu0 0.0
    %1396 = vmatprep.subr.mxu0 0.0
    %1397 = vmatpush1.msra.mxu0 0.0
    %1398 = vmatprep.subr.mxu0 0.0
    %1399 = vmatpush1.msra.mxu0 0.0
    %1400 = vmatprep.subr.mxu0 0.0
    %1401 = vmatpush1.msra.mxu0 0.0
    %1402 = vmatprep.subr.mxu0 0.0
    %1403 = vmatpush1.msra.mxu0 0.0
    %1404 = vmatprep.subr.mxu0 0.0
    %1405 = vmatpush1.msra.mxu0 0.0
    %1406 = vmatprep.subr.mxu0 0.0
    %1407 = vmatpush1.msra.mxu0 0.0
    %1408 = vmatprep.subr.mxu0 0.0
    %1409 = vmatpush1.msra.mxu0 0.0
    %1410 = vmatprep.subr.mxu0 0.0
    %1411 = vmatpush1.msra.mxu0 0.0
    %1412 = vmatprep.subr.mxu0 0.0
    %1413 = vmatpush1.msra.mxu0 0.0
    %1414 = vmatprep.subr.mxu0 0.0
    %1415 = vmatpush1.msra.mxu0 0.0
    %1416 = vmatprep.subr.mxu0 0.0
    %1417 = vmatpush1.msra.mxu0 0.0
    %1418 = vmatprep.subr.mxu0 0.0
    %1419 = vmatpush1.msra.mxu0 0.0
    %1420 = vmatprep.subr.mxu0 0.0
    %1421 = vmatpush1.msra.mxu0 0.0
    %1422 = vmatprep.subr.mxu0 0.0
    %1423 = vmatpush1.msra.mxu0 0.0
    %1424 = vmatprep.subr.mxu0 0.0
    %1425 = vmatpush1.msra.mxu0 0.0
    %1426 = vmatprep.mubr.f32.mxu0 0.0
    %1427 = vmatmul.mubr.f32.gmra.mrb[0].mxu0 %v663
    %v1428 = vpop.f32.mrb[0].mxu0
    %v1429 = vadd.f32 0.0, %v1428
    %v1430 = vpop.f32.mrb[0].mxu0
    %v1431 = vadd.f32 0.0, %v1430
    %1432 = vmatprep.mubr.f32.mxu0 0.0
    %1433 = vmatmul.mubr.f32.gmra.mrb[0].mxu0 %v666
    %v1434 = vpop.f32.mrb[0].mxu0
    %v1435 = vadd.f32 0.0, %v1434
    %v1436 = vpop.f32.mrb[0].mxu0
    %v1437 = vadd.f32 0.0, %v1436
    %1438 = vmatprep.mubr.f32.mxu0 0.0
    %1439 = vmatmul.mubr.f32.gmra.mrb[0].mxu0 %v669
    %v1440 = vpop.f32.mrb[0].mxu0
    %v1441 = vadd.f32 0.0, %v1440
    %v1442 = vpop.f32.mrb[0].mxu0
    %v1443 = vadd.f32 0.0, %v1442
    %1444 = vmatprep.mubr.f32.mxu0 0.0
    %1445 = vmatmul.mubr.f32.gmra.mrb[0].mxu0 %v672
    %v1446 = vpop.f32.mrb[0].mxu0
    %v1447 = vadd.f32 0.0, %v1446
    %v1448 = vpop.f32.mrb[0].mxu0
    %v1449 = vadd.f32 0.0, %v1448
    %1450 = vmatprep.mubr.f32.mxu0 0.0
    %1451 = vmatmul.mubr.f32.gmra.mrb[0].mxu0 %v675
    %v1452 = vpop.f32.mrb[0].mxu0
    %v1453 = vadd.f32 0.0, %v1452
    %v1454 = vpop.f32.mrb[0].mxu0
    %v1455 = vadd.f32 0.0, %v1454
    %1456 = vdwg.mxu0
    %v1457 = vadd.f32 %v1130, %v1429
    %v1458 = vadd.f32 %v1132, %v1431
    %v1459 = vadd.f32 %v1136, %v1435
    %v1460 = vadd.f32 %v1138, %v1437
    %v1461 = vadd.f32 %v1142, %v1441
    %v1462 = vadd.f32 %v1144, %v1443
    %v1463 = vadd.f32 %v1148, %v1447
    %v1464 = vadd.f32 %v1150, %v1449
    %v1465 = vadd.f32 %v1154, %v1453
    %v1466 = vadd.f32 %v1156, %v1455
    %v1467 = vmax.f32 %v1457, 0.0
    %v1468 = vmax.f32 %v1458, 0.0
    %v1469 = vmax.f32 %v1459, 0.0
    %v1470 = vmax.f32 %v1460, 0.0
    %v1471 = vmax.f32 %v1461, 0.0
    %v1472 = vmax.f32 %v1462, 0.0
    %v1473 = vmax.f32 %v1463, 0.0
    %v1474 = vmax.f32 %v1464, 0.0
    %v1475 = vmax.f32 %v1465, 0.0
    %v1476 = vmax.f32 %v1466, 0.0
    %1477 = vmatprep.subr.mxu0 %v1468
    %1478 = vmatpush1.msra.mxu0 %v1467
    %1479 = vmatprep.subr.mxu0 %v1470
    %1480 = vmatpush1.msra.mxu0 %v1469
    %1481 = vmatprep.subr.mxu0 %v1472
    %1482 = vmatpush1.msra.mxu0 %v1471
    %1483 = vmatprep.subr.mxu0 %v1474
    %1484 = vmatpush1.msra.mxu0 %v1473
    %1485 = vmatprep.subr.mxu0 %v1476
    %1486 = vmatpush1.msra.mxu0 %v1475
    %1487 = vmatprep.subr.mxu0 0.0
    %1488 = vmatpush1.msra.mxu0 0.0
    %1489 = vmatprep.subr.mxu0 0.0
    %1490 = vmatpush1.msra.mxu0 0.0
    %1491 = vmatprep.subr.mxu0 0.0
    %1492 = vmatpush1.msra.mxu0 0.0
    %1493 = vmatprep.subr.mxu0 0.0
    %1494 = vmatpush1.msra.mxu0 0.0
    %1495 = vmatprep.subr.mxu0 0.0
    %1496 = vmatpush1.msra.mxu0 0.0
    %1497 = vmatprep.subr.mxu0 0.0
    %1498 = vmatpush1.msra.mxu0 0.0
    %1499 = vmatprep.subr.mxu0 0.0
    %1500 = vmatpush1.msra.mxu0 0.0
    %1501 = vmatprep.subr.mxu0 0.0
    %1502 = vmatpush1.msra.mxu0 0.0
    %1503 = vmatprep.subr.mxu0 0.0
    %1504 = vmatpush1.msra.mxu0 0.0
    %1505 = vmatprep.subr.mxu0 0.0
    %1506 = vmatpush1.msra.mxu0 0.0
    %1507 = vmatprep.subr.mxu0 0.0
    %1508 = vmatpush1.msra.mxu0 0.0
    %1509 = vmatprep.subr.mxu0 0.0
    %1510 = vmatpush1.msra.mxu0 0.0
    %1511 = vmatprep.subr.mxu0 0.0
    %1512 = vmatpush1.msra.mxu0 0.0
    %1513 = vmatprep.subr.mxu0 0.0
    %1514 = vmatpush1.msra.mxu0 0.0
    %1515 = vmatprep.subr.mxu0 0.0
    %1516 = vmatpush1.msra.mxu0 0.0
    %1517 = vmatprep.subr.mxu0 0.0
    %1518 = vmatpush1.msra.mxu0 0.0
    %1519 = vmatprep.subr.mxu0 0.0
    %1520 = vmatpush1.msra.mxu0 0.0
    %1521 = vmatprep.subr.mxu0 0.0
    %1522 = vmatpush1.msra.mxu0 0.0
    %1523 = vmatprep.subr.mxu0 0.0
    %1524 = vmatpush1.msra.mxu0 0.0
    %1525 = vmatprep.subr.mxu0 0.0
    %1526 = vmatpush1.msra.mxu0 0.0
    %1527 = vmatprep.subr.mxu0 0.0
    %1528 = vmatpush1.msra.mxu0 0.0
    %1529 = vmatprep.subr.mxu0 0.0
    %1530 = vmatpush1.msra.mxu0 0.0
    %1531 = vmatprep.subr.mxu0 0.0
    %1532 = vmatpush1.msra.mxu0 0.0
    %1533 = vmatprep.subr.mxu0 0.0
    %1534 = vmatpush1.msra.mxu0 0.0
    %1535 = vmatprep.subr.mxu0 0.0
    %1536 = vmatpush1.msra.mxu0 0.0
    %1537 = vmatprep.subr.mxu0 0.0
    %1538 = vmatpush1.msra.mxu0 0.0
    %1539 = vmatprep.subr.mxu0 0.0
    %1540 = vmatpush1.msra.mxu0 0.0
    %1541 = vmatprep.mubr.f32.mxu0 0.0
    %1542 = vmatmul.mubr.f32.gmra.mrb[0].mxu0 %v805
    %v1543 = vpop.f32.mrb[0].mxu0
    %v1544 = vadd.f32 0.0, %v1543
    %v1545 = vpop.f32.mrb[0].mxu0
    %v1546 = vadd.f32 0.0, %v1545
    %1547 = vmatprep.mubr.f32.mxu0 0.0
    %1548 = vmatmul.mubr.f32.gmra.mrb[0].mxu0 %v808
    %v1549 = vpop.f32.mrb[0].mxu0
    %v1550 = vadd.f32 0.0, %v1549
    %v1551 = vpop.f32.mrb[0].mxu0
    %v1552 = vadd.f32 0.0, %v1551
    %1553 = vmatprep.mubr.f32.mxu0 0.0
    %1554 = vmatmul.mubr.f32.gmra.mrb[0].mxu0 %v811
    %v1555 = vpop.f32.mrb[0].mxu0
    %v1556 = vadd.f32 0.0, %v1555
    %v1557 = vpop.f32.mrb[0].mxu0
    %v1558 = vadd.f32 0.0, %v1557
    %1559 = vmatprep.mubr.f32.mxu0 0.0
    %1560 = vmatmul.mubr.f32.gmra.mrb[0].mxu0 %v814
    %v1561 = vpop.f32.mrb[0].mxu0
    %v1562 = vadd.f32 0.0, %v1561
    %v1563 = vpop.f32.mrb[0].mxu0
    %v1564 = vadd.f32 0.0, %v1563
    %1565 = vmatprep.mubr.f32.mxu0 0.0
    %1566 = vmatmul.mubr.f32.gmra.mrb[0].mxu0 %v817
    %v1567 = vpop.f32.mrb[0].mxu0
    %v1568 = vadd.f32 0.0, %v1567
    %v1569 = vpop.f32.mrb[0].mxu0
    %v1570 = vadd.f32 0.0, %v1569
    %1571 = vdwg.mxu0
    %v1572 = vmax.f32 %v1544, 0.0
    %v1573 = vmax.f32 %v1546, 0.0
    %v1574 = vmax.f32 %v1550, 0.0
    %v1575 = vmax.f32 %v1552, 0.0
    %v1576 = vmax.f32 %v1556, 0.0
    %v1577 = vmax.f32 %v1558, 0.0
    %v1578 = vmax.f32 %v1562, 0.0
    %v1579 = vmax.f32 %v1564, 0.0
    %v1580 = vmax.f32 %v1568, 0.0
    %v1581 = vmax.f32 %v1570, 0.0
    %s1582 = scalar_lea.vmem %s9, 24
    %v1583 = vld [vmem:[%s1582] sm:$0xff]
    %v1584 = vld [vmem:[%s1582 + $0x8] sm:$0xff]
    %v1585 = vld [vmem:[%s1582 + $0x10] sm:$0x3]
    %v1587 = vsel %vm458, %v1583, 0
    %v1590 = vsel %vm458, %v1584, 0
    %v1593 = vsel %vm458, %v1585, 0
    %1595 = vmatprep.subr.mxu0 %v1573
    %1596 = vmatpush1.msra.mxu0 %v1572
    %1597 = vmatprep.subr.mxu0 %v1575
    %1598 = vmatpush1.msra.mxu0 %v1574
    %1599 = vmatprep.subr.mxu0 %v1577
    %1600 = vmatpush1.msra.mxu0 %v1576
    %1601 = vmatprep.subr.mxu0 %v1579
    %1602 = vmatpush1.msra.mxu0 %v1578
    %1603 = vmatprep.subr.mxu0 %v1581
    %1604 = vmatpush1.msra.mxu0 %v1580
    %1605 = vmatprep.subr.mxu0 0.0
    %1606 = vmatpush1.msra.mxu0 0.0
    %1607 = vmatprep.subr.mxu0 0.0
    %1608 = vmatpush1.msra.mxu0 0.0
    %1609 = vmatprep.subr.mxu0 0.0
    %1610 = vmatpush1.msra.mxu0 0.0
    %1611 = vmatprep.subr.mxu0 0.0
    %1612 = vmatpush1.msra.mxu0 0.0
    %1613 = vmatprep.subr.mxu0 0.0
    %1614 = vmatpush1.msra.mxu0 0.0
    %1615 = vmatprep.subr.mxu0 0.0
    %1616 = vmatpush1.msra.mxu0 0.0
    %1617 = vmatprep.subr.mxu0 0.0
    %1618 = vmatpush1.msra.mxu0 0.0
    %1619 = vmatprep.subr.mxu0 0.0
    %1620 = vmatpush1.msra.mxu0 0.0
    %1621 = vmatprep.subr.mxu0 0.0
    %1622 = vmatpush1.msra.mxu0 0.0
    %1623 = vmatprep.subr.mxu0 0.0
    %1624 = vmatpush1.msra.mxu0 0.0
    %1625 = vmatprep.subr.mxu0 0.0
    %1626 = vmatpush1.msra.mxu0 0.0
    %1627 = vmatprep.subr.mxu0 0.0
    %1628 = vmatpush1.msra.mxu0 0.0
    %1629 = vmatprep.subr.mxu0 0.0
    %1630 = vmatpush1.msra.mxu0 0.0
    %1631 = vmatprep.subr.mxu0 0.0
    %1632 = vmatpush1.msra.mxu0 0.0
    %1633 = vmatprep.subr.mxu0 0.0
    %1634 = vmatpush1.msra.mxu0 0.0
    %1635 = vmatprep.subr.mxu0 0.0
    %1636 = vmatpush1.msra.mxu0 0.0
    %1637 = vmatprep.subr.mxu0 0.0
    %1638 = vmatpush1.msra.mxu0 0.0
    %1639 = vmatprep.subr.mxu0 0.0
    %1640 = vmatpush1.msra.mxu0 0.0
    %1641 = vmatprep.subr.mxu0 0.0
    %1642 = vmatpush1.msra.mxu0 0.0
    %1643 = vmatprep.subr.mxu0 0.0
    %1644 = vmatpush1.msra.mxu0 0.0
    %1645 = vmatprep.subr.mxu0 0.0
    %1646 = vmatpush1.msra.mxu0 0.0
    %1647 = vmatprep.subr.mxu0 0.0
    %1648 = vmatpush1.msra.mxu0 0.0
    %1649 = vmatprep.subr.mxu0 0.0
    %1650 = vmatpush1.msra.mxu0 0.0
    %1651 = vmatprep.subr.mxu0 0.0
    %1652 = vmatpush1.msra.mxu0 0.0
    %1653 = vmatprep.subr.mxu0 0.0
    %1654 = vmatpush1.msra.mxu0 0.0
    %1655 = vmatprep.subr.mxu0 0.0
    %1656 = vmatpush1.msra.mxu0 0.0
    %1657 = vmatprep.subr.mxu0 0.0
    %1658 = vmatpush1.msra.mxu0 0.0
    %1659 = vmatprep.mubr.f32.mxu0 0.0
    %1660 = vmatmul.mubr.f32.gmra.mrb[0].mxu0 %v1587
    %v1661 = vpop.f32.mrb[0].mxu0
    %v1662 = vadd.f32 0.0, %v1661
    %v1663 = vpop.f32.mrb[0].mxu0
    %v1664 = vadd.f32 0.0, %v1663
    %1665 = vmatprep.mubr.f32.mxu0 0.0
    %1666 = vmatmul.mubr.f32.gmra.mrb[0].mxu0 %v1590
    %v1667 = vpop.f32.mrb[0].mxu0
    %v1668 = vadd.f32 0.0, %v1667
    %v1669 = vpop.f32.mrb[0].mxu0
    %v1670 = vadd.f32 0.0, %v1669
    %1671 = vmatprep.mubr.f32.mxu0 0.0
    %1672 = vmatmul.mubr.f32.gmra.mrb[0].mxu0 %v1593
    %v1673 = vpop.f32.mrb[0].mxu0
    %v1674 = vadd.f32 0.0, %v1673
    %v1675 = vpop.f32.mrb[0].mxu0
    %v1676 = vadd.f32 0.0, %v1675
    %1677 = vdwg.mxu0
    %v1678 = vadd.f32 %v1662, %v1019
    %v1679 = vadd.f32 %v1664, %v1020
    %v1680 = vadd.f32 %v1668, %v1021
    %v1681 = vadd.f32 %v1670, %v1022
    %v1682 = vadd.f32 %v1674, %v1023
    %v1683 = vadd.f32 %v1676, %v1024
    %v1684 = vadd.f32 %v1025, %v1674
    %v1685 = vadd.f32 %v1026, %v1676
    %v1687 = vsel %vm304, %v1682, 0
    %v1690 = vsel %vm304, %v1683, 0
    %1692 = vmatprep.subr.mxu0 %v1679
    %1693 = vmatpush1.msra.mxu0 %v1678
    %1694 = vmatprep.subr.mxu0 %v1681
    %1695 = vmatpush1.msra.mxu0 %v1680
    %1696 = vmatprep.subr.mxu0 %v1690
    %1697 = vmatpush1.msra.mxu0 %v1687
    %1698 = vmatprep.subr.mxu0 0.0
    %1699 = vmatpush1.msra.mxu0 0.0
    %1700 = vmatprep.subr.mxu0 0.0
    %1701 = vmatpush1.msra.mxu0 0.0
    %1702 = vmatprep.subr.mxu0 0.0
    %1703 = vmatpush1.msra.mxu0 0.0
    %1704 = vmatprep.subr.mxu0 0.0
    %1705 = vmatpush1.msra.mxu0 0.0
    %1706 = vmatprep.subr.mxu0 0.0
    %1707 = vmatpush1.msra.mxu0 0.0
    %1708 = vmatprep.subr.mxu0 0.0
    %1709 = vmatpush1.msra.mxu0 0.0
    %1710 = vmatprep.subr.mxu0 0.0
    %1711 = vmatpush1.msra.mxu0 0.0
    %1712 = vmatprep.subr.mxu0 0.0
    %1713 = vmatpush1.msra.mxu0 0.0
    %1714 = vmatprep.subr.mxu0 0.0
    %1715 = vmatpush1.msra.mxu0 0.0
    %1716 = vmatprep.subr.mxu0 0.0
    %1717 = vmatpush1.msra.mxu0 0.0
    %1718 = vmatprep.subr.mxu0 0.0
    %1719 = vmatpush1.msra.mxu0 0.0
    %1720 = vmatprep.subr.mxu0 0.0
    %1721 = vmatpush1.msra.mxu0 0.0
    %1722 = vmatprep.subr.mxu0 0.0
    %1723 = vmatpush1.msra.mxu0 0.0
    %1724 = vmatprep.subr.mxu0 0.0
    %1725 = vmatpush1.msra.mxu0 0.0
    %1726 = vmatprep.subr.mxu0 0.0
    %1727 = vmatpush1.msra.mxu0 0.0
    %1728 = vmatprep.subr.mxu0 0.0
    %1729 = vmatpush1.msra.mxu0 0.0
    %1730 = vmatprep.subr.mxu0 0.0
    %1731 = vmatpush1.msra.mxu0 0.0
    %1732 = vmatprep.subr.mxu0 0.0
    %1733 = vmatpush1.msra.mxu0 0.0
    %1734 = vmatprep.subr.mxu0 0.0
    %1735 = vmatpush1.msra.mxu0 0.0
    %1736 = vmatprep.subr.mxu0 0.0
    %1737 = vmatpush1.msra.mxu0 0.0
    %1738 = vmatprep.subr.mxu0 0.0
    %1739 = vmatpush1.msra.mxu0 0.0
    %1740 = vmatprep.subr.mxu0 0.0
    %1741 = vmatpush1.msra.mxu0 0.0
    %1742 = vmatprep.subr.mxu0 0.0
    %1743 = vmatpush1.msra.mxu0 0.0
    %1744 = vmatprep.subr.mxu0 0.0
    %1745 = vmatpush1.msra.mxu0 0.0
    %1746 = vmatprep.subr.mxu0 0.0
    %1747 = vmatpush1.msra.mxu0 0.0
    %1748 = vmatprep.subr.mxu0 0.0
    %1749 = vmatpush1.msra.mxu0 0.0
    %1750 = vmatprep.subr.mxu0 0.0
    %1751 = vmatpush1.msra.mxu0 0.0
    %1752 = vmatprep.subr.mxu0 0.0
    %1753 = vmatpush1.msra.mxu0 0.0
    %1754 = vmatprep.subr.mxu0 0.0
    %1755 = vmatpush1.msra.mxu0 0.0
    %1756 = vmatprep.mubr.f32.mxu0 0.0
    %1757 = vmatmul.mubr.f32.gmra.mrb[0].mxu0 %v275
    %v1758 = vpop.f32.mrb[0].mxu0
    %v1759 = vadd.f32 0.0, %v1758
    %v1760 = vpop.f32.mrb[0].mxu0
    %v1761 = vadd.f32 0.0, %v1760
    %1762 = vmatprep.mubr.f32.mxu0 0.0
    %1763 = vmatmul.mubr.f32.gmra.mrb[0].mxu0 %v278
    %v1764 = vpop.f32.mrb[0].mxu0
    %v1765 = vadd.f32 0.0, %v1764
    %v1766 = vpop.f32.mrb[0].mxu0
    %v1767 = vadd.f32 0.0, %v1766
    %1768 = vmatprep.mubr.f32.mxu0 0.0
    %1769 = vmatmul.mubr.f32.gmra.mrb[0].mxu0 %v281
    %v1770 = vpop.f32.mrb[0].mxu0
    %v1771 = vadd.f32 0.0, %v1770
    %v1772 = vpop.f32.mrb[0].mxu0
    %v1773 = vadd.f32 0.0, %v1772
    %1774 = vmatprep.mubr.f32.mxu0 0.0
    %1775 = vmatmul.mubr.f32.gmra.mrb[0].mxu0 %v284
    %v1776 = vpop.f32.mrb[0].mxu0
    %v1777 = vadd.f32 0.0, %v1776
    %v1778 = vpop.f32.mrb[0].mxu0
    %v1779 = vadd.f32 0.0, %v1778
    %1780 = vmatprep.mubr.f32.mxu0 0.0
    %1781 = vmatmul.mubr.f32.gmra.mrb[0].mxu0 %v287
    %v1782 = vpop.f32.mrb[0].mxu0
    %v1783 = vadd.f32 0.0, %v1782
    %v1784 = vpop.f32.mrb[0].mxu0
    %v1785 = vadd.f32 0.0, %v1784
    %1786 = vmatprep.mubr.f32.mxu0 0.0
    %1787 = vmatmul.mubr.f32.gmra.mrb[0].mxu0 %v290
    %v1788 = vpop.f32.mrb[0].mxu0
    %v1789 = vadd.f32 0.0, %v1788
    %v1790 = vpop.f32.mrb[0].mxu0
    %v1791 = vadd.f32 0.0, %v1790
    %1792 = vmatprep.mubr.f32.mxu0 0.0
    %1793 = vmatmul.mubr.f32.gmra.mrb[0].mxu0 %v293
    %v1794 = vpop.f32.mrb[0].mxu0
    %v1795 = vadd.f32 0.0, %v1794
    %v1796 = vpop.f32.mrb[0].mxu0
    %v1797 = vadd.f32 0.0, %v1796
    %1798 = vmatprep.mubr.f32.mxu0 0.0
    %1799 = vmatmul.mubr.f32.gmra.mrb[0].mxu0 %v296
    %v1800 = vpop.f32.mrb[0].mxu0
    %v1801 = vadd.f32 0.0, %v1800
    %v1802 = vpop.f32.mrb[0].mxu0
    %v1803 = vadd.f32 0.0, %v1802
    %1804 = vmatprep.mubr.f32.mxu0 0.0
    %1805 = vmatmul.mubr.f32.gmra.mrb[0].mxu0 %v299
    %v1806 = vpop.f32.mrb[0].mxu0
    %v1807 = vadd.f32 0.0, %v1806
    %v1808 = vpop.f32.mrb[0].mxu0
    %v1809 = vadd.f32 0.0, %v1808
    %1810 = vmatprep.mubr.f32.mxu0 0.0
    %1811 = vmatmul.mubr.f32.gmra.mrb[0].mxu0 %v302
    %v1812 = vpop.f32.mrb[0].mxu0
    %v1813 = vadd.f32 0.0, %v1812
    %v1814 = vpop.f32.mrb[0].mxu0
    %v1815 = vadd.f32 0.0, %v1814
    %1816 = vdwg.mxu0
    %v1817 = vadd.f32 %v1759, %v235
    %v1818 = vadd.f32 %v1761, %v237
    %v1819 = vadd.f32 %v1765, %v241
    %v1820 = vadd.f32 %v1767, %v243
    %v1821 = vadd.f32 %v1771, %v247
    %v1822 = vadd.f32 %v1773, %v249
    %v1823 = vadd.f32 %v1777, %v253
    %v1824 = vadd.f32 %v1779, %v255
    %v1825 = vadd.f32 %v1783, %v259
    %v1826 = vadd.f32 %v1785, %v261
    %v1827 = vmax.f32 %v1817, 0.0
    %v1828 = vmax.f32 %v1818, 0.0
    %v1829 = vmax.f32 %v1819, 0.0
    %v1830 = vmax.f32 %v1820, 0.0
    %v1831 = vmax.f32 %v1821, 0.0
    %v1832 = vmax.f32 %v1822, 0.0
    %v1833 = vmax.f32 %v1823, 0.0
    %v1834 = vmax.f32 %v1824, 0.0
    %v1835 = vmax.f32 %v1825, 0.0
    %v1836 = vmax.f32 %v1826, 0.0
    %1837 = vmatprep.subr.mxu0 %v1828
    %1838 = vmatpush1.msra.mxu0 %v1827
    %1839 = vmatprep.subr.mxu0 %v1830
    %1840 = vmatpush1.msra.mxu0 %v1829
    %1841 = vmatprep.subr.mxu0 %v1832
    %1842 = vmatpush1.msra.mxu0 %v1831
    %1843 = vmatprep.subr.mxu0 %v1834
    %1844 = vmatpush1.msra.mxu0 %v1833
    %1845 = vmatprep.subr.mxu0 %v1836
    %1846 = vmatpush1.msra.mxu0 %v1835
    %1847 = vmatprep.subr.mxu0 0.0
    %1848 = vmatpush1.msra.mxu0 0.0
    %1849 = vmatprep.subr.mxu0 0.0
    %1850 = vmatpush1.msra.mxu0 0.0
    %1851 = vmatprep.subr.mxu0 0.0
    %1852 = vmatpush1.msra.mxu0 0.0
    %1853 = vmatprep.subr.mxu0 0.0
    %1854 = vmatpush1.msra.mxu0 0.0
    %1855 = vmatprep.subr.mxu0 0.0
    %1856 = vmatpush1.msra.mxu0 0.0
    %1857 = vmatprep.subr.mxu0 0.0
    %1858 = vmatpush1.msra.mxu0 0.0
    %1859 = vmatprep.subr.mxu0 0.0
    %1860 = vmatpush1.msra.mxu0 0.0
    %1861 = vmatprep.subr.mxu0 0.0
    %1862 = vmatpush1.msra.mxu0 0.0
    %1863 = vmatprep.subr.mxu0 0.0
    %1864 = vmatpush1.msra.mxu0 0.0
    %1865 = vmatprep.subr.mxu0 0.0
    %1866 = vmatpush1.msra.mxu0 0.0
    %1867 = vmatprep.subr.mxu0 0.0
    %1868 = vmatpush1.msra.mxu0 0.0
    %1869 = vmatprep.subr.mxu0 0.0
    %1870 = vmatpush1.msra.mxu0 0.0
    %1871 = vmatprep.subr.mxu0 0.0
    %1872 = vmatpush1.msra.mxu0 0.0
    %1873 = vmatprep.subr.mxu0 0.0
    %1874 = vmatpush1.msra.mxu0 0.0
    %1875 = vmatprep.subr.mxu0 0.0
    %1876 = vmatpush1.msra.mxu0 0.0
    %1877 = vmatprep.subr.mxu0 0.0
    %1878 = vmatpush1.msra.mxu0 0.0
    %1879 = vmatprep.subr.mxu0 0.0
    %1880 = vmatpush1.msra.mxu0 0.0
    %1881 = vmatprep.subr.mxu0 0.0
    %1882 = vmatpush1.msra.mxu0 0.0
    %1883 = vmatprep.subr.mxu0 0.0
    %1884 = vmatpush1.msra.mxu0 0.0
    %1885 = vmatprep.subr.mxu0 0.0
    %1886 = vmatpush1.msra.mxu0 0.0
    %1887 = vmatprep.subr.mxu0 0.0
    %1888 = vmatpush1.msra.mxu0 0.0
    %1889 = vmatprep.subr.mxu0 0.0
    %1890 = vmatpush1.msra.mxu0 0.0
    %1891 = vmatprep.subr.mxu0 0.0
    %1892 = vmatpush1.msra.mxu0 0.0
    %1893 = vmatprep.subr.mxu0 0.0
    %1894 = vmatpush1.msra.mxu0 0.0
    %1895 = vmatprep.subr.mxu0 0.0
    %1896 = vmatpush1.msra.mxu0 0.0
    %1897 = vmatprep.subr.mxu0 0.0
    %1898 = vmatpush1.msra.mxu0 0.0
    %1899 = vmatprep.subr.mxu0 0.0
    %1900 = vmatpush1.msra.mxu0 0.0
    %1901 = vmatprep.mubr.f32.mxu0 0.0
    %1902 = vmatmul.mubr.f32.gmra.mrb[0].mxu0 %v460
    %v1903 = vpop.f32.mrb[0].mxu0
    %v1904 = vadd.f32 0.0, %v1903
    %v1905 = vpop.f32.mrb[0].mxu0
    %v1906 = vadd.f32 0.0, %v1905
    %1907 = vmatprep.mubr.f32.mxu0 0.0
    %1908 = vmatmul.mubr.f32.gmra.mrb[0].mxu0 %v463
    %v1909 = vpop.f32.mrb[0].mxu0
    %v1910 = vadd.f32 0.0, %v1909
    %v1911 = vpop.f32.mrb[0].mxu0
    %v1912 = vadd.f32 0.0, %v1911
    %1913 = vmatprep.mubr.f32.mxu0 0.0
    %1914 = vmatmul.mubr.f32.gmra.mrb[0].mxu0 %v466
    %v1915 = vpop.f32.mrb[0].mxu0
    %v1916 = vadd.f32 0.0, %v1915
    %v1917 = vpop.f32.mrb[0].mxu0
    %v1918 = vadd.f32 0.0, %v1917
    %1919 = vmatprep.mubr.f32.mxu0 0.0
    %1920 = vmatmul.mubr.f32.gmra.mrb[0].mxu0 %v469
    %v1921 = vpop.f32.mrb[0].mxu0
    %v1922 = vadd.f32 0.0, %v1921
    %v1923 = vpop.f32.mrb[0].mxu0
    %v1924 = vadd.f32 0.0, %v1923
    %1925 = vmatprep.mubr.f32.mxu0 0.0
    %1926 = vmatmul.mubr.f32.gmra.mrb[0].mxu0 %v472
    %v1927 = vpop.f32.mrb[0].mxu0
    %v1928 = vadd.f32 0.0, %v1927
    %v1929 = vpop.f32.mrb[0].mxu0
    %v1930 = vadd.f32 0.0, %v1929
    %1931 = vdwg.mxu0
    %v1932 = vmax.f32 %v1904, 0.0
    %v1933 = vmax.f32 %v1906, 0.0
    %v1934 = vmax.f32 %v1910, 0.0
    %v1935 = vmax.f32 %v1912, 0.0
    %v1936 = vmax.f32 %v1916, 0.0
    %v1937 = vmax.f32 %v1918, 0.0
    %v1938 = vmax.f32 %v1922, 0.0
    %v1939 = vmax.f32 %v1924, 0.0
    %v1940 = vmax.f32 %v1928, 0.0
    %v1941 = vmax.f32 %v1930, 0.0
    %1942 = vmatprep.subr.mxu0 %v1933
    %1943 = vmatpush1.msra.mxu0 %v1932
    %1944 = vmatprep.subr.mxu0 %v1935
    %1945 = vmatpush1.msra.mxu0 %v1934
    %1946 = vmatprep.subr.mxu0 %v1937
    %1947 = vmatpush1.msra.mxu0 %v1936
    %1948 = vmatprep.subr.mxu0 %v1939
    %1949 = vmatpush1.msra.mxu0 %v1938
    %1950 = vmatprep.subr.mxu0 %v1941
    %1951 = vmatpush1.msra.mxu0 %v1940
    %1952 = vmatprep.subr.mxu0 0.0
    %1953 = vmatpush1.msra.mxu0 0.0
    %1954 = vmatprep.subr.mxu0 0.0
    %1955 = vmatpush1.msra.mxu0 0.0
    %1956 = vmatprep.subr.mxu0 0.0
    %1957 = vmatpush1.msra.mxu0 0.0
    %1958 = vmatprep.subr.mxu0 0.0
    %1959 = vmatpush1.msra.mxu0 0.0
    %1960 = vmatprep.subr.mxu0 0.0
    %1961 = vmatpush1.msra.mxu0 0.0
    %1962 = vmatprep.subr.mxu0 0.0
    %1963 = vmatpush1.msra.mxu0 0.0
    %1964 = vmatprep.subr.mxu0 0.0
    %1965 = vmatpush1.msra.mxu0 0.0
    %1966 = vmatprep.subr.mxu0 0.0
    %1967 = vmatpush1.msra.mxu0 0.0
    %1968 = vmatprep.subr.mxu0 0.0
    %1969 = vmatpush1.msra.mxu0 0.0
    %1970 = vmatprep.subr.mxu0 0.0
    %1971 = vmatpush1.msra.mxu0 0.0
    %1972 = vmatprep.subr.mxu0 0.0
    %1973 = vmatpush1.msra.mxu0 0.0
    %1974 = vmatprep.subr.mxu0 0.0
    %1975 = vmatpush1.msra.mxu0 0.0
    %1976 = vmatprep.subr.mxu0 0.0
    %1977 = vmatpush1.msra.mxu0 0.0
    %1978 = vmatprep.subr.mxu0 0.0
    %1979 = vmatpush1.msra.mxu0 0.0
    %1980 = vmatprep.subr.mxu0 0.0
    %1981 = vmatpush1.msra.mxu0 0.0
    %1982 = vmatprep.subr.mxu0 0.0
    %1983 = vmatpush1.msra.mxu0 0.0
    %1984 = vmatprep.subr.mxu0 0.0
    %1985 = vmatpush1.msra.mxu0 0.0
    %1986 = vmatprep.subr.mxu0 0.0
    %1987 = vmatpush1.msra.mxu0 0.0
    %1988 = vmatprep.subr.mxu0 0.0
    %1989 = vmatpush1.msra.mxu0 0.0
    %1990 = vmatprep.subr.mxu0 0.0
    %1991 = vmatpush1.msra.mxu0 0.0
    %1992 = vmatprep.subr.mxu0 0.0
    %1993 = vmatpush1.msra.mxu0 0.0
    %1994 = vmatprep.subr.mxu0 0.0
    %1995 = vmatpush1.msra.mxu0 0.0
    %1996 = vmatprep.subr.mxu0 0.0
    %1997 = vmatpush1.msra.mxu0 0.0
    %1998 = vmatprep.subr.mxu0 0.0
    %1999 = vmatpush1.msra.mxu0 0.0
    %2000 = vmatprep.subr.mxu0 0.0
    %2001 = vmatpush1.msra.mxu0 0.0
    %2002 = vmatprep.subr.mxu0 0.0
    %2003 = vmatpush1.msra.mxu0 0.0
    %2004 = vmatprep.subr.mxu0 0.0
    %2005 = vmatpush1.msra.mxu0 0.0
    %2006 = vmatprep.mubr.f32.mxu0 0.0
    %2007 = vmatmul.mubr.f32.gmra.mrb[0].mxu0 %v581
    %v2008 = vpop.f32.mrb[0].mxu0
    %v2009 = vadd.f32 0.0, %v2008
    %v2010 = vpop.f32.mrb[0].mxu0
    %v2011 = vadd.f32 0.0, %v2010
    %2012 = vdwg.mxu0
    %v2013 = vtanh.pop %v2009
    %v2014 = vtanh.pop %v2011
    %v2016 = vsel %vm677, %v2013, 0
    %v2019 = vsel %vm677, %v2014, 0
    %2021 = vmatprep.subr.mxu0 %v2019
    %2022 = vmatpush1.msra.mxu0 %v2016
    %2023 = vmatprep.subr.mxu0 0.0
    %2024 = vmatpush1.msra.mxu0 0.0
    %2025 = vmatprep.subr.mxu0 0.0
    %2026 = vmatpush1.msra.mxu0 0.0
    %2027 = vmatprep.subr.mxu0 0.0
    %2028 = vmatpush1.msra.mxu0 0.0
    %2029 = vmatprep.subr.mxu0 0.0
    %2030 = vmatpush1.msra.mxu0 0.0
    %2031 = vmatprep.subr.mxu0 0.0
    %2032 = vmatpush1.msra.mxu0 0.0
    %2033 = vmatprep.subr.mxu0 0.0
    %2034 = vmatpush1.msra.mxu0 0.0
    %2035 = vmatprep.subr.mxu0 0.0
    %2036 = vmatpush1.msra.mxu0 0.0
    %2037 = vmatprep.subr.mxu0 0.0
    %2038 = vmatpush1.msra.mxu0 0.0
    %2039 = vmatprep.subr.mxu0 0.0
    %2040 = vmatpush1.msra.mxu0 0.0
    %2041 = vmatprep.subr.mxu0 0.0
    %2042 = vmatpush1.msra.mxu0 0.0
    %2043 = vmatprep.subr.mxu0 0.0
    %2044 = vmatpush1.msra.mxu0 0.0
    %2045 = vmatprep.subr.mxu0 0.0
    %2046 = vmatpush1.msra.mxu0 0.0
    %2047 = vmatprep.subr.mxu0 0.0
    %2048 = vmatpush1.msra.mxu0 0.0
    %2049 = vmatprep.subr.mxu0 0.0
    %2050 = vmatpush1.msra.mxu0 0.0
    %2051 = vmatprep.subr.mxu0 0.0
    %2052 = vmatpush1.msra.mxu0 0.0
    %2053 = vmatprep.subr.mxu0 0.0
    %2054 = vmatpush1.msra.mxu0 0.0
    %2055 = vmatprep.subr.mxu0 0.0
    %2056 = vmatpush1.msra.mxu0 0.0
    %2057 = vmatprep.subr.mxu0 0.0
    %2058 = vmatpush1.msra.mxu0 0.0
    %2059 = vmatprep.subr.mxu0 0.0
    %2060 = vmatpush1.msra.mxu0 0.0
    %2061 = vmatprep.subr.mxu0 0.0
    %2062 = vmatpush1.msra.mxu0 0.0
    %2063 = vmatprep.subr.mxu0 0.0
    %2064 = vmatpush1.msra.mxu0 0.0
    %2065 = vmatprep.subr.mxu0 0.0
    %2066 = vmatpush1.msra.mxu0 0.0
    %2067 = vmatprep.subr.mxu0 0.0
    %2068 = vmatpush1.msra.mxu0 0.0
    %2069 = vmatprep.subr.mxu0 0.0
    %2070 = vmatpush1.msra.mxu0 0.0
    %2071 = vmatprep.subr.mxu0 0.0
    %2072 = vmatpush1.msra.mxu0 0.0
    %2073 = vmatprep.subr.mxu0 0.0
    %2074 = vmatpush1.msra.mxu0 0.0
    %2075 = vmatprep.subr.mxu0 0.0
    %2076 = vmatpush1.msra.mxu0 0.0
    %2077 = vmatprep.subr.mxu0 0.0
    %2078 = vmatpush1.msra.mxu0 0.0
    %2079 = vmatprep.subr.mxu0 0.0
    %2080 = vmatpush1.msra.mxu0 0.0
    %2081 = vmatprep.subr.mxu0 0.0
    %2082 = vmatpush1.msra.mxu0 0.0
    %2083 = vmatprep.subr.mxu0 0.0
    %2084 = vmatpush1.msra.mxu0 0.0
    %2085 = vmatprep.mubr.f32.mxu0 0.0
    %2086 = vmatmul.mubr.f32.gmra.mrb[0].mxu0 %v663
    %v2087 = vpop.f32.mrb[0].mxu0
    %v2088 = vadd.f32 0.0, %v2087
    %v2089 = vpop.f32.mrb[0].mxu0
    %v2090 = vadd.f32 0.0, %v2089
    %2091 = vmatprep.mubr.f32.mxu0 0.0
    %2092 = vmatmul.mubr.f32.gmra.mrb[0].mxu0 %v666
    %v2093 = vpop.f32.mrb[0].mxu0
    %v2094 = vadd.f32 0.0, %v2093
    %v2095 = vpop.f32.mrb[0].mxu0
    %v2096 = vadd.f32 0.0, %v2095
    %2097 = vmatprep.mubr.f32.mxu0 0.0
    %2098 = vmatmul.mubr.f32.gmra.mrb[0].mxu0 %v669
    %v2099 = vpop.f32.mrb[0].mxu0
    %v2100 = vadd.f32 0.0, %v2099
    %v2101 = vpop.f32.mrb[0].mxu0
    %v2102 = vadd.f32 0.0, %v2101
    %2103 = vmatprep.mubr.f32.mxu0 0.0
    %2104 = vmatmul.mubr.f32.gmra.mrb[0].mxu0 %v672
    %v2105 = vpop.f32.mrb[0].mxu0
    %v2106 = vadd.f32 0.0, %v2105
    %v2107 = vpop.f32.mrb[0].mxu0
    %v2108 = vadd.f32 0.0, %v2107
    %2109 = vmatprep.mubr.f32.mxu0 0.0
    %2110 = vmatmul.mubr.f32.gmra.mrb[0].mxu0 %v675
    %v2111 = vpop.f32.mrb[0].mxu0
    %v2112 = vadd.f32 0.0, %v2111
    %v2113 = vpop.f32.mrb[0].mxu0
    %v2114 = vadd.f32 0.0, %v2113
    %2115 = vdwg.mxu0
    %v2116 = vadd.f32 %v1789, %v2088
    %v2117 = vadd.f32 %v1791, %v2090
    %v2118 = vadd.f32 %v1795, %v2094
    %v2119 = vadd.f32 %v1797, %v2096
    %v2120 = vadd.f32 %v1801, %v2100
    %v2121 = vadd.f32 %v1803, %v2102
    %v2122 = vadd.f32 %v1807, %v2106
    %v2123 = vadd.f32 %v1809, %v2108
    %v2124 = vadd.f32 %v1813, %v2112
    %v2125 = vadd.f32 %v1815, %v2114
    %v2126 = vmax.f32 %v2116, 0.0
    %v2127 = vmax.f32 %v2117, 0.0
    %v2128 = vmax.f32 %v2118, 0.0
    %v2129 = vmax.f32 %v2119, 0.0
    %v2130 = vmax.f32 %v2120, 0.0
    %v2131 = vmax.f32 %v2121, 0.0
    %v2132 = vmax.f32 %v2122, 0.0
    %v2133 = vmax.f32 %v2123, 0.0
    %v2134 = vmax.f32 %v2124, 0.0
    %v2135 = vmax.f32 %v2125, 0.0
    %2136 = vmatprep.subr.mxu0 %v2127
    %2137 = vmatpush1.msra.mxu0 %v2126
    %2138 = vmatprep.subr.mxu0 %v2129
    %2139 = vmatpush1.msra.mxu0 %v2128
    %2140 = vmatprep.subr.mxu0 %v2131
    %2141 = vmatpush1.msra.mxu0 %v2130
    %2142 = vmatprep.subr.mxu0 %v2133
    %2143 = vmatpush1.msra.mxu0 %v2132
    %2144 = vmatprep.subr.mxu0 %v2135
    %2145 = vmatpush1.msra.mxu0 %v2134
    %2146 = vmatprep.subr.mxu0 0.0
    %2147 = vmatpush1.msra.mxu0 0.0
    %2148 = vmatprep.subr.mxu0 0.0
    %2149 = vmatpush1.msra.mxu0 0.0
    %2150 = vmatprep.subr.mxu0 0.0
    %2151 = vmatpush1.msra.mxu0 0.0
    %2152 = vmatprep.subr.mxu0 0.0
    %2153 = vmatpush1.msra.mxu0 0.0
    %2154 = vmatprep.subr.mxu0 0.0
    %2155 = vmatpush1.msra.mxu0 0.0
    %2156 = vmatprep.subr.mxu0 0.0
    %2157 = vmatpush1.msra.mxu0 0.0
    %2158 = vmatprep.subr.mxu0 0.0
    %2159 = vmatpush1.msra.mxu0 0.0
    %2160 = vmatprep.subr.mxu0 0.0
    %2161 = vmatpush1.msra.mxu0 0.0
    %2162 = vmatprep.subr.mxu0 0.0
    %2163 = vmatpush1.msra.mxu0 0.0
    %2164 = vmatprep.subr.mxu0 0.0
    %2165 = vmatpush1.msra.mxu0 0.0
    %2166 = vmatprep.subr.mxu0 0.0
    %2167 = vmatpush1.msra.mxu0 0.0
    %2168 = vmatprep.subr.mxu0 0.0
    %2169 = vmatpush1.msra.mxu0 0.0
    %2170 = vmatprep.subr.mxu0 0.0
    %2171 = vmatpush1.msra.mxu0 0.0
    %2172 = vmatprep.subr.mxu0 0.0
    %2173 = vmatpush1.msra.mxu0 0.0
    %2174 = vmatprep.subr.mxu0 0.0
    %2175 = vmatpush1.msra.mxu0 0.0
    %2176 = vmatprep.subr.mxu0 0.0
    %2177 = vmatpush1.msra.mxu0 0.0
    %2178 = vmatprep.subr.mxu0 0.0
    %2179 = vmatpush1.msra.mxu0 0.0
    %2180 = vmatprep.subr.mxu0 0.0
    %2181 = vmatpush1.msra.mxu0 0.0
    %2182 = vmatprep.subr.mxu0 0.0
    %2183 = vmatpush1.msra.mxu0 0.0
    %2184 = vmatprep.subr.mxu0 0.0
    %2185 = vmatpush1.msra.mxu0 0.0
    %2186 = vmatprep.subr.mxu0 0.0
    %2187 = vmatpush1.msra.mxu0 0.0
    %2188 = vmatprep.subr.mxu0 0.0
    %2189 = vmatpush1.msra.mxu0 0.0
    %2190 = vmatprep.subr.mxu0 0.0
    %2191 = vmatpush1.msra.mxu0 0.0
    %2192 = vmatprep.subr.mxu0 0.0
    %2193 = vmatpush1.msra.mxu0 0.0
    %2194 = vmatprep.subr.mxu0 0.0
    %2195 = vmatpush1.msra.mxu0 0.0
    %2196 = vmatprep.subr.mxu0 0.0
    %2197 = vmatpush1.msra.mxu0 0.0
    %2198 = vmatprep.subr.mxu0 0.0
    %2199 = vmatpush1.msra.mxu0 0.0
    %2200 = vmatprep.mubr.f32.mxu0 0.0
    %2201 = vmatmul.mubr.f32.gmra.mrb[0].mxu0 %v805
    %v2202 = vpop.f32.mrb[0].mxu0
    %v2203 = vadd.f32 0.0, %v2202
    %v2204 = vpop.f32.mrb[0].mxu0
    %v2205 = vadd.f32 0.0, %v2204
    %2206 = vmatprep.mubr.f32.mxu0 0.0
    %2207 = vmatmul.mubr.f32.gmra.mrb[0].mxu0 %v808
    %v2208 = vpop.f32.mrb[0].mxu0
    %v2209 = vadd.f32 0.0, %v2208
    %v2210 = vpop.f32.mrb[0].mxu0
    %v2211 = vadd.f32 0.0, %v2210
    %2212 = vmatprep.mubr.f32.mxu0 0.0
    %2213 = vmatmul.mubr.f32.gmra.mrb[0].mxu0 %v811
    %v2214 = vpop.f32.mrb[0].mxu0
    %v2215 = vadd.f32 0.0, %v2214
    %v2216 = vpop.f32.mrb[0].mxu0
    %v2217 = vadd.f32 0.0, %v2216
    %2218 = vmatprep.mubr.f32.mxu0 0.0
    %2219 = vmatmul.mubr.f32.gmra.mrb[0].mxu0 %v814
    %v2220 = vpop.f32.mrb[0].mxu0
    %v2221 = vadd.f32 0.0, %v2220
    %v2222 = vpop.f32.mrb[0].mxu0
    %v2223 = vadd.f32 0.0, %v2222
    %2224 = vmatprep.mubr.f32.mxu0 0.0
    %2225 = vmatmul.mubr.f32.gmra.mrb[0].mxu0 %v817
    %v2226 = vpop.f32.mrb[0].mxu0
    %v2227 = vadd.f32 0.0, %v2226
    %v2228 = vpop.f32.mrb[0].mxu0
    %v2229 = vadd.f32 0.0, %v2228
    %2230 = vdwg.mxu0
    %v2231 = vmax.f32 %v2203, 0.0
    %v2232 = vmax.f32 %v2205, 0.0
    %v2233 = vmax.f32 %v2209, 0.0
    %v2234 = vmax.f32 %v2211, 0.0
    %v2235 = vmax.f32 %v2215, 0.0
    %v2236 = vmax.f32 %v2217, 0.0
    %v2237 = vmax.f32 %v2221, 0.0
    %v2238 = vmax.f32 %v2223, 0.0
    %v2239 = vmax.f32 %v2227, 0.0
    %v2240 = vmax.f32 %v2229, 0.0
    %s2241 = scalar_lea.vmem %s9, 48
    %v2242 = vld [vmem:[%s2241] sm:$0xff]
    %v2243 = vld [vmem:[%s2241 + $0x8] sm:$0xff]
    %v2244 = vld [vmem:[%s2241 + $0x10] sm:$0x3]
    %v2246 = vsel %vm458, %v2242, 0
    %v2249 = vsel %vm458, %v2243, 0
    %v2252 = vsel %vm458, %v2244, 0
    %2254 = vmatprep.subr.mxu0 %v2232
    %2255 = vmatpush1.msra.mxu0 %v2231
    %2256 = vmatprep.subr.mxu0 %v2234
    %2257 = vmatpush1.msra.mxu0 %v2233
    %2258 = vmatprep.subr.mxu0 %v2236
    %2259 = vmatpush1.msra.mxu0 %v2235
    %2260 = vmatprep.subr.mxu0 %v2238
    %2261 = vmatpush1.msra.mxu0 %v2237
    %2262 = vmatprep.subr.mxu0 %v2240
    %2263 = vmatpush1.msra.mxu0 %v2239
    %2264 = vmatprep.subr.mxu0 0.0
    %2265 = vmatpush1.msra.mxu0 0.0
    %2266 = vmatprep.subr.mxu0 0.0
    %2267 = vmatpush1.msra.mxu0 0.0
    %2268 = vmatprep.subr.mxu0 0.0
    %2269 = vmatpush1.msra.mxu0 0.0
    %2270 = vmatprep.subr.mxu0 0.0
    %2271 = vmatpush1.msra.mxu0 0.0
    %2272 = vmatprep.subr.mxu0 0.0
    %2273 = vmatpush1.msra.mxu0 0.0
    %2274 = vmatprep.subr.mxu0 0.0
    %2275 = vmatpush1.msra.mxu0 0.0
    %2276 = vmatprep.subr.mxu0 0.0
    %2277 = vmatpush1.msra.mxu0 0.0
    %2278 = vmatprep.subr.mxu0 0.0
    %2279 = vmatpush1.msra.mxu0 0.0
    %2280 = vmatprep.subr.mxu0 0.0
    %2281 = vmatpush1.msra.mxu0 0.0
    %2282 = vmatprep.subr.mxu0 0.0
    %2283 = vmatpush1.msra.mxu0 0.0
    %2284 = vmatprep.subr.mxu0 0.0
    %2285 = vmatpush1.msra.mxu0 0.0
    %2286 = vmatprep.subr.mxu0 0.0
    %2287 = vmatpush1.msra.mxu0 0.0
    %2288 = vmatprep.subr.mxu0 0.0
    %2289 = vmatpush1.msra.mxu0 0.0
    %2290 = vmatprep.subr.mxu0 0.0
    %2291 = vmatpush1.msra.mxu0 0.0
    %2292 = vmatprep.subr.mxu0 0.0
    %2293 = vmatpush1.msra.mxu0 0.0
    %2294 = vmatprep.subr.mxu0 0.0
    %2295 = vmatpush1.msra.mxu0 0.0
    %2296 = vmatprep.subr.mxu0 0.0
    %2297 = vmatpush1.msra.mxu0 0.0
    %2298 = vmatprep.subr.mxu0 0.0
    %2299 = vmatpush1.msra.mxu0 0.0
    %2300 = vmatprep.subr.mxu0 0.0
    %2301 = vmatpush1.msra.mxu0 0.0
    %2302 = vmatprep.subr.mxu0 0.0
    %2303 = vmatpush1.msra.mxu0 0.0
    %2304 = vmatprep.subr.mxu0 0.0
    %2305 = vmatpush1.msra.mxu0 0.0
    %2306 = vmatprep.subr.mxu0 0.0
    %2307 = vmatpush1.msra.mxu0 0.0
    %2308 = vmatprep.subr.mxu0 0.0
    %2309 = vmatpush1.msra.mxu0 0.0
    %2310 = vmatprep.subr.mxu0 0.0
    %2311 = vmatpush1.msra.mxu0 0.0
    %2312 = vmatprep.subr.mxu0 0.0
    %2313 = vmatpush1.msra.mxu0 0.0
    %2314 = vmatprep.subr.mxu0 0.0
    %2315 = vmatpush1.msra.mxu0 0.0
    %2316 = vmatprep.subr.mxu0 0.0
    %2317 = vmatpush1.msra.mxu0 0.0
    %2318 = vmatprep.mubr.f32.mxu0 0.0
    %2319 = vmatmul.mubr.f32.gmra.mrb[0].mxu0 %v2246
    %v2320 = vpop.f32.mrb[0].mxu0
    %v2321 = vadd.f32 0.0, %v2320
    %v2322 = vpop.f32.mrb[0].mxu0
    %v2323 = vadd.f32 0.0, %v2322
    %2324 = vmatprep.mubr.f32.mxu0 0.0
    %2325 = vmatmul.mubr.f32.gmra.mrb[0].mxu0 %v2249
    %v2326 = vpop.f32.mrb[0].mxu0
    %v2327 = vadd.f32 0.0, %v2326
    %v2328 = vpop.f32.mrb[0].mxu0
    %v2329 = vadd.f32 0.0, %v2328
    %2330 = vmatprep.mubr.f32.mxu0 0.0
    %2331 = vmatmul.mubr.f32.gmra.mrb[0].mxu0 %v2252
    %v2332 = vpop.f32.mrb[0].mxu0
    %v2333 = vadd.f32 0.0, %v2332
    %v2334 = vpop.f32.mrb[0].mxu0
    %v2335 = vadd.f32 0.0, %v2334
    %2336 = vdwg.mxu0
    %v2337 = vadd.f32 %v2321, %v1678
    %v2338 = vadd.f32 %v2323, %v1679
    %v2339 = vadd.f32 %v2327, %v1680
    %v2340 = vadd.f32 %v2329, %v1681
    %v2341 = vadd.f32 %v2333, %v1682
    %v2342 = vadd.f32 %v2335, %v1683
    %v2343 = vadd.f32 %v1684, %v2333
    %v2344 = vadd.f32 %v1685, %v2335
    %v2346 = vsel %vm304, %v2341, 0
    %v2349 = vsel %vm304, %v2342, 0
    %2351 = vmatprep.subr.mxu0 %v2338
    %2352 = vmatpush1.msra.mxu0 %v2337
    %2353 = vmatprep.subr.mxu0 %v2340
    %2354 = vmatpush1.msra.mxu0 %v2339
    %2355 = vmatprep.subr.mxu0 %v2349
    %2356 = vmatpush1.msra.mxu0 %v2346
    %2357 = vmatprep.subr.mxu0 0.0
    %2358 = vmatpush1.msra.mxu0 0.0
    %2359 = vmatprep.subr.mxu0 0.0
    %2360 = vmatpush1.msra.mxu0 0.0
    %2361 = vmatprep.subr.mxu0 0.0
    %2362 = vmatpush1.msra.mxu0 0.0
    %2363 = vmatprep.subr.mxu0 0.0
    %2364 = vmatpush1.msra.mxu0 0.0
    %2365 = vmatprep.subr.mxu0 0.0
    %2366 = vmatpush1.msra.mxu0 0.0
    %2367 = vmatprep.subr.mxu0 0.0
    %2368 = vmatpush1.msra.mxu0 0.0
    %2369 = vmatprep.subr.mxu0 0.0
    %2370 = vmatpush1.msra.mxu0 0.0
    %2371 = vmatprep.subr.mxu0 0.0
    %2372 = vmatpush1.msra.mxu0 0.0
    %2373 = vmatprep.subr.mxu0 0.0
    %2374 = vmatpush1.msra.mxu0 0.0
    %2375 = vmatprep.subr.mxu0 0.0
    %2376 = vmatpush1.msra.mxu0 0.0
    %2377 = vmatprep.subr.mxu0 0.0
    %2378 = vmatpush1.msra.mxu0 0.0
    %2379 = vmatprep.subr.mxu0 0.0
    %2380 = vmatpush1.msra.mxu0 0.0
    %2381 = vmatprep.subr.mxu0 0.0
    %2382 = vmatpush1.msra.mxu0 0.0
    %2383 = vmatprep.subr.mxu0 0.0
    %2384 = vmatpush1.msra.mxu0 0.0
    %2385 = vmatprep.subr.mxu0 0.0
    %2386 = vmatpush1.msra.mxu0 0.0
    %2387 = vmatprep.subr.mxu0 0.0
    %2388 = vmatpush1.msra.mxu0 0.0
    %2389 = vmatprep.subr.mxu0 0.0
    %2390 = vmatpush1.msra.mxu0 0.0
    %2391 = vmatprep.subr.mxu0 0.0
    %2392 = vmatpush1.msra.mxu0 0.0
    %2393 = vmatprep.subr.mxu0 0.0
    %2394 = vmatpush1.msra.mxu0 0.0
    %2395 = vmatprep.subr.mxu0 0.0
    %2396 = vmatpush1.msra.mxu0 0.0
    %2397 = vmatprep.subr.mxu0 0.0
    %2398 = vmatpush1.msra.mxu0 0.0
    %2399 = vmatprep.subr.mxu0 0.0
    %2400 = vmatpush1.msra.mxu0 0.0
    %2401 = vmatprep.subr.mxu0 0.0
    %2402 = vmatpush1.msra.mxu0 0.0
    %2403 = vmatprep.subr.mxu0 0.0
    %2404 = vmatpush1.msra.mxu0 0.0
    %2405 = vmatprep.subr.mxu0 0.0
    %2406 = vmatpush1.msra.mxu0 0.0
    %2407 = vmatprep.subr.mxu0 0.0
    %2408 = vmatpush1.msra.mxu0 0.0
    %2409 = vmatprep.subr.mxu0 0.0
    %2410 = vmatpush1.msra.mxu0 0.0
    %2411 = vmatprep.subr.mxu0 0.0
    %2412 = vmatpush1.msra.mxu0 0.0
    %2413 = vmatprep.subr.mxu0 0.0
    %2414 = vmatpush1.msra.mxu0 0.0
    %2415 = vmatprep.mubr.f32.mxu0 0.0
    %2416 = vmatmul.mubr.f32.gmra.mrb[0].mxu0 %v275
    %v2417 = vpop.f32.mrb[0].mxu0
    %v2418 = vadd.f32 0.0, %v2417
    %v2419 = vpop.f32.mrb[0].mxu0
    %v2420 = vadd.f32 0.0, %v2419
    %2421 = vmatprep.mubr.f32.mxu0 0.0
    %2422 = vmatmul.mubr.f32.gmra.mrb[0].mxu0 %v278
    %v2423 = vpop.f32.mrb[0].mxu0
    %v2424 = vadd.f32 0.0, %v2423
    %v2425 = vpop.f32.mrb[0].mxu0
    %v2426 = vadd.f32 0.0, %v2425
    %2427 = vmatprep.mubr.f32.mxu0 0.0
    %2428 = vmatmul.mubr.f32.gmra.mrb[0].mxu0 %v281
    %v2429 = vpop.f32.mrb[0].mxu0
    %v2430 = vadd.f32 0.0, %v2429
    %v2431 = vpop.f32.mrb[0].mxu0
    %v2432 = vadd.f32 0.0, %v2431
    %2433 = vmatprep.mubr.f32.mxu0 0.0
    %2434 = vmatmul.mubr.f32.gmra.mrb[0].mxu0 %v284
    %v2435 = vpop.f32.mrb[0].mxu0
    %v2436 = vadd.f32 0.0, %v2435
    %v2437 = vpop.f32.mrb[0].mxu0
    %v2438 = vadd.f32 0.0, %v2437
    %2439 = vmatprep.mubr.f32.mxu0 0.0
    %2440 = vmatmul.mubr.f32.gmra.mrb[0].mxu0 %v287
    %v2441 = vpop.f32.mrb[0].mxu0
    %v2442 = vadd.f32 0.0, %v2441
    %v2443 = vpop.f32.mrb[0].mxu0
    %v2444 = vadd.f32 0.0, %v2443
    %2445 = vmatprep.mubr.f32.mxu0 0.0
    %2446 = vmatmul.mubr.f32.gmra.mrb[0].mxu0 %v290
    %v2447 = vpop.f32.mrb[0].mxu0
    %v2448 = vadd.f32 0.0, %v2447
    %v2449 = vpop.f32.mrb[0].mxu0
    %v2450 = vadd.f32 0.0, %v2449
    %2451 = vmatprep.mubr.f32.mxu0 0.0
    %2452 = vmatmul.mubr.f32.gmra.mrb[0].mxu0 %v293
    %v2453 = vpop.f32.mrb[0].mxu0
    %v2454 = vadd.f32 0.0, %v2453
    %v2455 = vpop.f32.mrb[0].mxu0
    %v2456 = vadd.f32 0.0, %v2455
    %2457 = vmatprep.mubr.f32.mxu0 0.0
    %2458 = vmatmul.mubr.f32.gmra.mrb[0].mxu0 %v296
    %v2459 = vpop.f32.mrb[0].mxu0
    %v2460 = vadd.f32 0.0, %v2459
    %v2461 = vpop.f32.mrb[0].mxu0
    %v2462 = vadd.f32 0.0, %v2461
    %2463 = vmatprep.mubr.f32.mxu0 0.0
    %2464 = vmatmul.mubr.f32.gmra.mrb[0].mxu0 %v299
    %v2465 = vpop.f32.mrb[0].mxu0
    %v2466 = vadd.f32 0.0, %v2465
    %v2467 = vpop.f32.mrb[0].mxu0
    %v2468 = vadd.f32 0.0, %v2467
    %2469 = vmatprep.mubr.f32.mxu0 0.0
    %2470 = vmatmul.mubr.f32.gmra.mrb[0].mxu0 %v302
    %v2471 = vpop.f32.mrb[0].mxu0
    %v2472 = vadd.f32 0.0, %v2471
    %v2473 = vpop.f32.mrb[0].mxu0
    %v2474 = vadd.f32 0.0, %v2473
    %2475 = vdwg.mxu0
    %v2476 = vadd.f32 %v2418, %v235
    %v2477 = vadd.f32 %v2420, %v237
    %v2478 = vadd.f32 %v2424, %v241
    %v2479 = vadd.f32 %v2426, %v243
    %v2480 = vadd.f32 %v2430, %v247
    %v2481 = vadd.f32 %v2432, %v249
    %v2482 = vadd.f32 %v2436, %v253
    %v2483 = vadd.f32 %v2438, %v255
    %v2484 = vadd.f32 %v2442, %v259
    %v2485 = vadd.f32 %v2444, %v261
    %v2486 = vmax.f32 %v2476, 0.0
    %v2487 = vmax.f32 %v2477, 0.0
    %v2488 = vmax.f32 %v2478, 0.0
    %v2489 = vmax.f32 %v2479, 0.0
    %v2490 = vmax.f32 %v2480, 0.0
    %v2491 = vmax.f32 %v2481, 0.0
    %v2492 = vmax.f32 %v2482, 0.0
    %v2493 = vmax.f32 %v2483, 0.0
    %v2494 = vmax.f32 %v2484, 0.0
    %v2495 = vmax.f32 %v2485, 0.0
    %2496 = vmatprep.subr.mxu0 %v2487
    %2497 = vmatpush1.msra.mxu0 %v2486
    %2498 = vmatprep.subr.mxu0 %v2489
    %2499 = vmatpush1.msra.mxu0 %v2488
    %2500 = vmatprep.subr.mxu0 %v2491
    %2501 = vmatpush1.msra.mxu0 %v2490
    %2502 = vmatprep.subr.mxu0 %v2493
    %2503 = vmatpush1.msra.mxu0 %v2492
    %2504 = vmatprep.subr.mxu0 %v2495
    %2505 = vmatpush1.msra.mxu0 %v2494
    %2506 = vmatprep.subr.mxu0 0.0
    %2507 = vmatpush1.msra.mxu0 0.0
    %2508 = vmatprep.subr.mxu0 0.0
    %2509 = vmatpush1.msra.mxu0 0.0
    %2510 = vmatprep.subr.mxu0 0.0
    %2511 = vmatpush1.msra.mxu0 0.0
    %2512 = vmatprep.subr.mxu0 0.0
    %2513 = vmatpush1.msra.mxu0 0.0
    %2514 = vmatprep.subr.mxu0 0.0
    %2515 = vmatpush1.msra.mxu0 0.0
    %2516 = vmatprep.subr.mxu0 0.0
    %2517 = vmatpush1.msra.mxu0 0.0
    %2518 = vmatprep.subr.mxu0 0.0
    %2519 = vmatpush1.msra.mxu0 0.0
    %2520 = vmatprep.subr.mxu0 0.0
    %2521 = vmatpush1.msra.mxu0 0.0
    %2522 = vmatprep.subr.mxu0 0.0
    %2523 = vmatpush1.msra.mxu0 0.0
    %2524 = vmatprep.subr.mxu0 0.0
    %2525 = vmatpush1.msra.mxu0 0.0
    %2526 = vmatprep.subr.mxu0 0.0
    %2527 = vmatpush1.msra.mxu0 0.0
    %2528 = vmatprep.subr.mxu0 0.0
    %2529 = vmatpush1.msra.mxu0 0.0
    %2530 = vmatprep.subr.mxu0 0.0
    %2531 = vmatpush1.msra.mxu0 0.0
    %2532 = vmatprep.subr.mxu0 0.0
    %2533 = vmatpush1.msra.mxu0 0.0
    %2534 = vmatprep.subr.mxu0 0.0
    %2535 = vmatpush1.msra.mxu0 0.0
    %2536 = vmatprep.subr.mxu0 0.0
    %2537 = vmatpush1.msra.mxu0 0.0
    %2538 = vmatprep.subr.mxu0 0.0
    %2539 = vmatpush1.msra.mxu0 0.0
    %2540 = vmatprep.subr.mxu0 0.0
    %2541 = vmatpush1.msra.mxu0 0.0
    %2542 = vmatprep.subr.mxu0 0.0
    %2543 = vmatpush1.msra.mxu0 0.0
    %2544 = vmatprep.subr.mxu0 0.0
    %2545 = vmatpush1.msra.mxu0 0.0
    %2546 = vmatprep.subr.mxu0 0.0
    %2547 = vmatpush1.msra.mxu0 0.0
    %2548 = vmatprep.subr.mxu0 0.0
    %2549 = vmatpush1.msra.mxu0 0.0
    %2550 = vmatprep.subr.mxu0 0.0
    %2551 = vmatpush1.msra.mxu0 0.0
    %2552 = vmatprep.subr.mxu0 0.0
    %2553 = vmatpush1.msra.mxu0 0.0
    %2554 = vmatprep.subr.mxu0 0.0
    %2555 = vmatpush1.msra.mxu0 0.0
    %2556 = vmatprep.subr.mxu0 0.0
    %2557 = vmatpush1.msra.mxu0 0.0
    %2558 = vmatprep.subr.mxu0 0.0
    %2559 = vmatpush1.msra.mxu0 0.0
    %2560 = vmatprep.mubr.f32.mxu0 0.0
    %2561 = vmatmul.mubr.f32.gmra.mrb[0].mxu0 %v460
    %v2562 = vpop.f32.mrb[0].mxu0
    %v2563 = vadd.f32 0.0, %v2562
    %v2564 = vpop.f32.mrb[0].mxu0
    %v2565 = vadd.f32 0.0, %v2564
    %2566 = vmatprep.mubr.f32.mxu0 0.0
    %2567 = vmatmul.mubr.f32.gmra.mrb[0].mxu0 %v463
    %v2568 = vpop.f32.mrb[0].mxu0
    %v2569 = vadd.f32 0.0, %v2568
    %v2570 = vpop.f32.mrb[0].mxu0
    %v2571 = vadd.f32 0.0, %v2570
    %2572 = vmatprep.mubr.f32.mxu0 0.0
    %2573 = vmatmul.mubr.f32.gmra.mrb[0].mxu0 %v466
    %v2574 = vpop.f32.mrb[0].mxu0
    %v2575 = vadd.f32 0.0, %v2574
    %v2576 = vpop.f32.mrb[0].mxu0
    %v2577 = vadd.f32 0.0, %v2576
    %2578 = vmatprep.mubr.f32.mxu0 0.0
    %2579 = vmatmul.mubr.f32.gmra.mrb[0].mxu0 %v469
    %v2580 = vpop.f32.mrb[0].mxu0
    %v2581 = vadd.f32 0.0, %v2580
    %v2582 = vpop.f32.mrb[0].mxu0
    %v2583 = vadd.f32 0.0, %v2582
    %2584 = vmatprep.mubr.f32.mxu0 0.0
    %2585 = vmatmul.mubr.f32.gmra.mrb[0].mxu0 %v472
    %v2586 = vpop.f32.mrb[0].mxu0
    %v2587 = vadd.f32 0.0, %v2586
    %v2588 = vpop.f32.mrb[0].mxu0
    %v2589 = vadd.f32 0.0, %v2588
    %2590 = vdwg.mxu0
    %v2591 = vmax.f32 %v2563, 0.0
    %v2592 = vmax.f32 %v2565, 0.0
    %v2593 = vmax.f32 %v2569, 0.0
    %v2594 = vmax.f32 %v2571, 0.0
    %v2595 = vmax.f32 %v2575, 0.0
    %v2596 = vmax.f32 %v2577, 0.0
    %v2597 = vmax.f32 %v2581, 0.0
    %v2598 = vmax.f32 %v2583, 0.0
    %v2599 = vmax.f32 %v2587, 0.0
    %v2600 = vmax.f32 %v2589, 0.0
    %2601 = vmatprep.subr.mxu0 %v2592
    %2602 = vmatpush1.msra.mxu0 %v2591
    %2603 = vmatprep.subr.mxu0 %v2594
    %2604 = vmatpush1.msra.mxu0 %v2593
    %2605 = vmatprep.subr.mxu0 %v2596
    %2606 = vmatpush1.msra.mxu0 %v2595
    %2607 = vmatprep.subr.mxu0 %v2598
    %2608 = vmatpush1.msra.mxu0 %v2597
    %2609 = vmatprep.subr.mxu0 %v2600
    %2610 = vmatpush1.msra.mxu0 %v2599
    %2611 = vmatprep.subr.mxu0 0.0
    %2612 = vmatpush1.msra.mxu0 0.0
    %2613 = vmatprep.subr.mxu0 0.0
    %2614 = vmatpush1.msra.mxu0 0.0
    %2615 = vmatprep.subr.mxu0 0.0
    %2616 = vmatpush1.msra.mxu0 0.0
    %2617 = vmatprep.subr.mxu0 0.0
    %2618 = vmatpush1.msra.mxu0 0.0
    %2619 = vmatprep.subr.mxu0 0.0
    %2620 = vmatpush1.msra.mxu0 0.0
    %2621 = vmatprep.subr.mxu0 0.0
    %2622 = vmatpush1.msra.mxu0 0.0
    %2623 = vmatprep.subr.mxu0 0.0
    %2624 = vmatpush1.msra.mxu0 0.0
    %2625 = vmatprep.subr.mxu0 0.0
    %2626 = vmatpush1.msra.mxu0 0.0
    %2627 = vmatprep.subr.mxu0 0.0
    %2628 = vmatpush1.msra.mxu0 0.0
    %2629 = vmatprep.subr.mxu0 0.0
    %2630 = vmatpush1.msra.mxu0 0.0
    %2631 = vmatprep.subr.mxu0 0.0
    %2632 = vmatpush1.msra.mxu0 0.0
    %2633 = vmatprep.subr.mxu0 0.0
    %2634 = vmatpush1.msra.mxu0 0.0
    %2635 = vmatprep.subr.mxu0 0.0
    %2636 = vmatpush1.msra.mxu0 0.0
    %2637 = vmatprep.subr.mxu0 0.0
    %2638 = vmatpush1.msra.mxu0 0.0
    %2639 = vmatprep.subr.mxu0 0.0
    %2640 = vmatpush1.msra.mxu0 0.0
    %2641 = vmatprep.subr.mxu0 0.0
    %2642 = vmatpush1.msra.mxu0 0.0
    %2643 = vmatprep.subr.mxu0 0.0
    %2644 = vmatpush1.msra.mxu0 0.0
    %2645 = vmatprep.subr.mxu0 0.0
    %2646 = vmatpush1.msra.mxu0 0.0
    %2647 = vmatprep.subr.mxu0 0.0
    %2648 = vmatpush1.msra.mxu0 0.0
    %2649 = vmatprep.subr.mxu0 0.0
    %2650 = vmatpush1.msra.mxu0 0.0
    %2651 = vmatprep.subr.mxu0 0.0
    %2652 = vmatpush1.msra.mxu0 0.0
    %2653 = vmatprep.subr.mxu0 0.0
    %2654 = vmatpush1.msra.mxu0 0.0
    %2655 = vmatprep.subr.mxu0 0.0
    %2656 = vmatpush1.msra.mxu0 0.0
    %2657 = vmatprep.subr.mxu0 0.0
    %2658 = vmatpush1.msra.mxu0 0.0
    %2659 = vmatprep.subr.mxu0 0.0
    %2660 = vmatpush1.msra.mxu0 0.0
    %2661 = vmatprep.subr.mxu0 0.0
    %2662 = vmatpush1.msra.mxu0 0.0
    %2663 = vmatprep.subr.mxu0 0.0
    %2664 = vmatpush1.msra.mxu0 0.0
    %2665 = vmatprep.mubr.f32.mxu0 0.0
    %2666 = vmatmul.mubr.f32.gmra.mrb[0].mxu0 %v581
    %v2667 = vpop.f32.mrb[0].mxu0
    %v2668 = vadd.f32 0.0, %v2667
    %v2669 = vpop.f32.mrb[0].mxu0
    %v2670 = vadd.f32 0.0, %v2669
    %2671 = vdwg.mxu0
    %v2672 = vtanh.pop %v2668
    %v2673 = vtanh.pop %v2670
    %v2675 = vsel %vm677, %v2672, 0
    %v2678 = vsel %vm677, %v2673, 0
    %2680 = vmatprep.subr.mxu0 %v2678
    %2681 = vmatpush1.msra.mxu0 %v2675
    %2682 = vmatprep.subr.mxu0 0.0
    %2683 = vmatpush1.msra.mxu0 0.0
    %2684 = vmatprep.subr.mxu0 0.0
    %2685 = vmatpush1.msra.mxu0 0.0
    %2686 = vmatprep.subr.mxu0 0.0
    %2687 = vmatpush1.msra.mxu0 0.0
    %2688 = vmatprep.subr.mxu0 0.0
    %2689 = vmatpush1.msra.mxu0 0.0
    %2690 = vmatprep.subr.mxu0 0.0
    %2691 = vmatpush1.msra.mxu0 0.0
    %2692 = vmatprep.subr.mxu0 0.0
    %2693 = vmatpush1.msra.mxu0 0.0
    %2694 = vmatprep.subr.mxu0 0.0
    %2695 = vmatpush1.msra.mxu0 0.0
    %2696 = vmatprep.subr.mxu0 0.0
    %2697 = vmatpush1.msra.mxu0 0.0
    %2698 = vmatprep.subr.mxu0 0.0
    %2699 = vmatpush1.msra.mxu0 0.0
    %2700 = vmatprep.subr.mxu0 0.0
    %2701 = vmatpush1.msra.mxu0 0.0
    %2702 = vmatprep.subr.mxu0 0.0
    %2703 = vmatpush1.msra.mxu0 0.0
    %2704 = vmatprep.subr.mxu0 0.0
    %2705 = vmatpush1.msra.mxu0 0.0
    %2706 = vmatprep.subr.mxu0 0.0
    %2707 = vmatpush1.msra.mxu0 0.0
    %2708 = vmatprep.subr.mxu0 0.0
    %2709 = vmatpush1.msra.mxu0 0.0
    %2710 = vmatprep.subr.mxu0 0.0
    %2711 = vmatpush1.msra.mxu0 0.0
    %2712 = vmatprep.subr.mxu0 0.0
    %2713 = vmatpush1.msra.mxu0 0.0
    %2714 = vmatprep.subr.mxu0 0.0
    %2715 = vmatpush1.msra.mxu0 0.0
    %2716 = vmatprep.subr.mxu0 0.0
    %2717 = vmatpush1.msra.mxu0 0.0
    %2718 = vmatprep.subr.mxu0 0.0
    %2719 = vmatpush1.msra.mxu0 0.0
    %2720 = vmatprep.subr.mxu0 0.0
    %2721 = vmatpush1.msra.mxu0 0.0
    %2722 = vmatprep.subr.mxu0 0.0
    %2723 = vmatpush1.msra.mxu0 0.0
    %2724 = vmatprep.subr.mxu0 0.0
    %2725 = vmatpush1.msra.mxu0 0.0
    %2726 = vmatprep.subr.mxu0 0.0
    %2727 = vmatpush1.msra.mxu0 0.0
    %2728 = vmatprep.subr.mxu0 0.0
    %2729 = vmatpush1.msra.mxu0 0.0
    %2730 = vmatprep.subr.mxu0 0.0
    %2731 = vmatpush1.msra.mxu0 0.0
    %2732 = vmatprep.subr.mxu0 0.0
    %2733 = vmatpush1.msra.mxu0 0.0
    %2734 = vmatprep.subr.mxu0 0.0
    %2735 = vmatpush1.msra.mxu0 0.0
    %2736 = vmatprep.subr.mxu0 0.0
    %2737 = vmatpush1.msra.mxu0 0.0
    %2738 = vmatprep.subr.mxu0 0.0
    %2739 = vmatpush1.msra.mxu0 0.0
    %2740 = vmatprep.subr.mxu0 0.0
    %2741 = vmatpush1.msra.mxu0 0.0
    %2742 = vmatprep.subr.mxu0 0.0
    %2743 = vmatpush1.msra.mxu0 0.0
    %2744 = vmatprep.mubr.f32.mxu0 0.0
    %2745 = vmatmul.mubr.f32.gmra.mrb[0].mxu0 %v663
    %v2746 = vpop.f32.mrb[0].mxu0
    %v2747 = vadd.f32 0.0, %v2746
    %v2748 = vpop.f32.mrb[0].mxu0
    %v2749 = vadd.f32 0.0, %v2748
    %2750 = vmatprep.mubr.f32.mxu0 0.0
    %2751 = vmatmul.mubr.f32.gmra.mrb[0].mxu0 %v666
    %v2752 = vpop.f32.mrb[0].mxu0
    %v2753 = vadd.f32 0.0, %v2752
    %v2754 = vpop.f32.mrb[0].mxu0
    %v2755 = vadd.f32 0.0, %v2754
    %2756 = vmatprep.mubr.f32.mxu0 0.0
    %2757 = vmatmul.mubr.f32.gmra.mrb[0].mxu0 %v669
    %v2758 = vpop.f32.mrb[0].mxu0
    %v2759 = vadd.f32 0.0, %v2758
    %v2760 = vpop.f32.mrb[0].mxu0
    %v2761 = vadd.f32 0.0, %v2760
    %2762 = vmatprep.mubr.f32.mxu0 0.0
    %2763 = vmatmul.mubr.f32.gmra.mrb[0].mxu0 %v672
    %v2764 = vpop.f32.mrb[0].mxu0
    %v2765 = vadd.f32 0.0, %v2764
    %v2766 = vpop.f32.mrb[0].mxu0
    %v2767 = vadd.f32 0.0, %v2766
    %2768 = vmatprep.mubr.f32.mxu0 0.0
    %2769 = vmatmul.mubr.f32.gmra.mrb[0].mxu0 %v675
    %v2770 = vpop.f32.mrb[0].mxu0
    %v2771 = vadd.f32 0.0, %v2770
    %v2772 = vpop.f32.mrb[0].mxu0
    %v2773 = vadd.f32 0.0, %v2772
    %2774 = vdwg.mxu0
    %v2775 = vadd.f32 %v2448, %v2747
    %v2776 = vadd.f32 %v2450, %v2749
    %v2777 = vadd.f32 %v2454, %v2753
    %v2778 = vadd.f32 %v2456, %v2755
    %v2779 = vadd.f32 %v2460, %v2759
    %v2780 = vadd.f32 %v2462, %v2761
    %v2781 = vadd.f32 %v2466, %v2765
    %v2782 = vadd.f32 %v2468, %v2767
    %v2783 = vadd.f32 %v2472, %v2771
    %v2784 = vadd.f32 %v2474, %v2773
    %v2785 = vmax.f32 %v2775, 0.0
    %v2786 = vmax.f32 %v2776, 0.0
    %v2787 = vmax.f32 %v2777, 0.0
    %v2788 = vmax.f32 %v2778, 0.0
    %v2789 = vmax.f32 %v2779, 0.0
    %v2790 = vmax.f32 %v2780, 0.0
    %v2791 = vmax.f32 %v2781, 0.0
    %v2792 = vmax.f32 %v2782, 0.0
    %v2793 = vmax.f32 %v2783, 0.0
    %v2794 = vmax.f32 %v2784, 0.0
    %2795 = vmatprep.subr.mxu0 %v2786
    %2796 = vmatpush1.msra.mxu0 %v2785
    %2797 = vmatprep.subr.mxu0 %v2788
    %2798 = vmatpush1.msra.mxu0 %v2787
    %2799 = vmatprep.subr.mxu0 %v2790
    %2800 = vmatpush1.msra.mxu0 %v2789
    %2801 = vmatprep.subr.mxu0 %v2792
    %2802 = vmatpush1.msra.mxu0 %v2791
    %2803 = vmatprep.subr.mxu0 %v2794
    %2804 = vmatpush1.msra.mxu0 %v2793
    %2805 = vmatprep.subr.mxu0 0.0
    %2806 = vmatpush1.msra.mxu0 0.0
    %2807 = vmatprep.subr.mxu0 0.0
    %2808 = vmatpush1.msra.mxu0 0.0
    %2809 = vmatprep.subr.mxu0 0.0
    %2810 = vmatpush1.msra.mxu0 0.0
    %2811 = vmatprep.subr.mxu0 0.0
    %2812 = vmatpush1.msra.mxu0 0.0
    %2813 = vmatprep.subr.mxu0 0.0
    %2814 = vmatpush1.msra.mxu0 0.0
    %2815 = vmatprep.subr.mxu0 0.0
    %2816 = vmatpush1.msra.mxu0 0.0
    %2817 = vmatprep.subr.mxu0 0.0
    %2818 = vmatpush1.msra.mxu0 0.0
    %2819 = vmatprep.subr.mxu0 0.0
    %2820 = vmatpush1.msra.mxu0 0.0
    %2821 = vmatprep.subr.mxu0 0.0
    %2822 = vmatpush1.msra.mxu0 0.0
    %2823 = vmatprep.subr.mxu0 0.0
    %2824 = vmatpush1.msra.mxu0 0.0
    %2825 = vmatprep.subr.mxu0 0.0
    %2826 = vmatpush1.msra.mxu0 0.0
    %2827 = vmatprep.subr.mxu0 0.0
    %2828 = vmatpush1.msra.mxu0 0.0
    %2829 = vmatprep.subr.mxu0 0.0
    %2830 = vmatpush1.msra.mxu0 0.0
    %2831 = vmatprep.subr.mxu0 0.0
    %2832 = vmatpush1.msra.mxu0 0.0
    %2833 = vmatprep.subr.mxu0 0.0
    %2834 = vmatpush1.msra.mxu0 0.0
    %2835 = vmatprep.subr.mxu0 0.0
    %2836 = vmatpush1.msra.mxu0 0.0
    %2837 = vmatprep.subr.mxu0 0.0
    %2838 = vmatpush1.msra.mxu0 0.0
    %2839 = vmatprep.subr.mxu0 0.0
    %2840 = vmatpush1.msra.mxu0 0.0
    %2841 = vmatprep.subr.mxu0 0.0
    %2842 = vmatpush1.msra.mxu0 0.0
    %2843 = vmatprep.subr.mxu0 0.0
    %2844 = vmatpush1.msra.mxu0 0.0
    %2845 = vmatprep.subr.mxu0 0.0
    %2846 = vmatpush1.msra.mxu0 0.0
    %2847 = vmatprep.subr.mxu0 0.0
    %2848 = vmatpush1.msra.mxu0 0.0
    %2849 = vmatprep.subr.mxu0 0.0
    %2850 = vmatpush1.msra.mxu0 0.0
    %2851 = vmatprep.subr.mxu0 0.0
    %2852 = vmatpush1.msra.mxu0 0.0
    %2853 = vmatprep.subr.mxu0 0.0
    %2854 = vmatpush1.msra.mxu0 0.0
    %2855 = vmatprep.subr.mxu0 0.0
    %2856 = vmatpush1.msra.mxu0 0.0
    %2857 = vmatprep.subr.mxu0 0.0
    %2858 = vmatpush1.msra.mxu0 0.0
    %2859 = vmatprep.mubr.f32.mxu0 0.0
    %2860 = vmatmul.mubr.f32.gmra.mrb[0].mxu0 %v805
    %v2861 = vpop.f32.mrb[0].mxu0
    %v2862 = vadd.f32 0.0, %v2861
    %v2863 = vpop.f32.mrb[0].mxu0
    %v2864 = vadd.f32 0.0, %v2863
    %2865 = vmatprep.mubr.f32.mxu0 0.0
    %2866 = vmatmul.mubr.f32.gmra.mrb[0].mxu0 %v808
    %v2867 = vpop.f32.mrb[0].mxu0
    %v2868 = vadd.f32 0.0, %v2867
    %v2869 = vpop.f32.mrb[0].mxu0
    %v2870 = vadd.f32 0.0, %v2869
    %2871 = vmatprep.mubr.f32.mxu0 0.0
    %2872 = vmatmul.mubr.f32.gmra.mrb[0].mxu0 %v811
    %v2873 = vpop.f32.mrb[0].mxu0
    %v2874 = vadd.f32 0.0, %v2873
    %v2875 = vpop.f32.mrb[0].mxu0
    %v2876 = vadd.f32 0.0, %v2875
    %2877 = vmatprep.mubr.f32.mxu0 0.0
    %2878 = vmatmul.mubr.f32.gmra.mrb[0].mxu0 %v814
    %v2879 = vpop.f32.mrb[0].mxu0
    %v2880 = vadd.f32 0.0, %v2879
    %v2881 = vpop.f32.mrb[0].mxu0
    %v2882 = vadd.f32 0.0, %v2881
    %2883 = vmatprep.mubr.f32.mxu0 0.0
    %2884 = vmatmul.mubr.f32.gmra.mrb[0].mxu0 %v817
    %v2885 = vpop.f32.mrb[0].mxu0
    %v2886 = vadd.f32 0.0, %v2885
    %v2887 = vpop.f32.mrb[0].mxu0
    %v2888 = vadd.f32 0.0, %v2887
    %2889 = vdwg.mxu0
    %v2890 = vmax.f32 %v2862, 0.0
    %v2891 = vmax.f32 %v2864, 0.0
    %v2892 = vmax.f32 %v2868, 0.0
    %v2893 = vmax.f32 %v2870, 0.0
    %v2894 = vmax.f32 %v2874, 0.0
    %v2895 = vmax.f32 %v2876, 0.0
    %v2896 = vmax.f32 %v2880, 0.0
    %v2897 = vmax.f32 %v2882, 0.0
    %v2898 = vmax.f32 %v2886, 0.0
    %v2899 = vmax.f32 %v2888, 0.0
    %s2900 = scalar_lea.vmem %s9, 72
    %v2901 = vld [vmem:[%s2900] sm:$0xff]
    %v2902 = vld [vmem:[%s2900 + $0x8] sm:$0xff]
    %v2903 = vld [vmem:[%s2900 + $0x10] sm:$0x3]
    %v2905 = vsel %vm458, %v2901, 0
    %v2908 = vsel %vm458, %v2902, 0
    %v2911 = vsel %vm458, %v2903, 0
    %2913 = vmatprep.subr.mxu0 %v2891
    %2914 = vmatpush1.msra.mxu0 %v2890
    %2915 = vmatprep.subr.mxu0 %v2893
    %2916 = vmatpush1.msra.mxu0 %v2892
    %2917 = vmatprep.subr.mxu0 %v2895
    %2918 = vmatpush1.msra.mxu0 %v2894
    %2919 = vmatprep.subr.mxu0 %v2897
    %2920 = vmatpush1.msra.mxu0 %v2896
    %2921 = vmatprep.subr.mxu0 %v2899
    %2922 = vmatpush1.msra.mxu0 %v2898
    %2923 = vmatprep.subr.mxu0 0.0
    %2924 = vmatpush1.msra.mxu0 0.0
    %2925 = vmatprep.subr.mxu0 0.0
    %2926 = vmatpush1.msra.mxu0 0.0
    %2927 = vmatprep.subr.mxu0 0.0
    %2928 = vmatpush1.msra.mxu0 0.0
    %2929 = vmatprep.subr.mxu0 0.0
    %2930 = vmatpush1.msra.mxu0 0.0
    %2931 = vmatprep.subr.mxu0 0.0
    %2932 = vmatpush1.msra.mxu0 0.0
    %2933 = vmatprep.subr.mxu0 0.0
    %2934 = vmatpush1.msra.mxu0 0.0
    %2935 = vmatprep.subr.mxu0 0.0
    %2936 = vmatpush1.msra.mxu0 0.0
    %2937 = vmatprep.subr.mxu0 0.0
    %2938 = vmatpush1.msra.mxu0 0.0
    %2939 = vmatprep.subr.mxu0 0.0
    %2940 = vmatpush1.msra.mxu0 0.0
    %2941 = vmatprep.subr.mxu0 0.0
    %2942 = vmatpush1.msra.mxu0 0.0
    %2943 = vmatprep.subr.mxu0 0.0
    %2944 = vmatpush1.msra.mxu0 0.0
    %2945 = vmatprep.subr.mxu0 0.0
    %2946 = vmatpush1.msra.mxu0 0.0
    %2947 = vmatprep.subr.mxu0 0.0
    %2948 = vmatpush1.msra.mxu0 0.0
    %2949 = vmatprep.subr.mxu0 0.0
    %2950 = vmatpush1.msra.mxu0 0.0
    %2951 = vmatprep.subr.mxu0 0.0
    %2952 = vmatpush1.msra.mxu0 0.0
    %2953 = vmatprep.subr.mxu0 0.0
    %2954 = vmatpush1.msra.mxu0 0.0
    %2955 = vmatprep.subr.mxu0 0.0
    %2956 = vmatpush1.msra.mxu0 0.0
    %2957 = vmatprep.subr.mxu0 0.0
    %2958 = vmatpush1.msra.mxu0 0.0
    %2959 = vmatprep.subr.mxu0 0.0
    %2960 = vmatpush1.msra.mxu0 0.0
    %2961 = vmatprep.subr.mxu0 0.0
    %2962 = vmatpush1.msra.mxu0 0.0
    %2963 = vmatprep.subr.mxu0 0.0
    %2964 = vmatpush1.msra.mxu0 0.0
    %2965 = vmatprep.subr.mxu0 0.0
    %2966 = vmatpush1.msra.mxu0 0.0
    %2967 = vmatprep.subr.mxu0 0.0
    %2968 = vmatpush1.msra.mxu0 0.0
    %2969 = vmatprep.subr.mxu0 0.0
    %2970 = vmatpush1.msra.mxu0 0.0
    %2971 = vmatprep.subr.mxu0 0.0
    %2972 = vmatpush1.msra.mxu0 0.0
    %2973 = vmatprep.subr.mxu0 0.0
    %2974 = vmatpush1.msra.mxu0 0.0
    %2975 = vmatprep.subr.mxu0 0.0
    %2976 = vmatpush1.msra.mxu0 0.0
    %2977 = vmatprep.mubr.f32.mxu0 0.0
    %2978 = vmatmul.mubr.f32.gmra.mrb[0].mxu0 %v2905
    %v2979 = vpop.f32.mrb[0].mxu0
    %v2980 = vpop.f32.mrb[0].mxu0
    %2981 = vmatprep.mubr.f32.mxu0 0.0
    %2982 = vmatmul.mubr.f32.gmra.mrb[0].mxu0 %v2908
    %v2983 = vpop.f32.mrb[0].mxu0
    %v2984 = vpop.f32.mrb[0].mxu0
    %2985 = vmatprep.mubr.f32.mxu0 0.0
    %2986 = vmatmul.mubr.f32.gmra.mrb[0].mxu0 %v2911
    %v2987 = vpop.f32.mrb[0].mxu0
    %v2988 = vadd.f32 0.0, %v2987
    %v2989 = vpop.f32.mrb[0].mxu0
    %v2990 = vadd.f32 0.0, %v2989
    %2991 = vdwg.mxu0
    %v2992 = vadd.f32 %v2343, %v2988
    %v2993 = vadd.f32 %v2344, %v2990
    %v2996 = vcombine.low %v2992, %v2993
    %v2998 = vunpack.c.l.s4 1966171168
    %v2999 = vunpack.c.0.s8 %v2998
    %v3000 = vlaneseq
    %v3001 = vshrl.u32 %v3000, 7
    %v3002 = vsub.s32 %v2999, %v3001
    %v3003 = vrot.slane %v2996, %v3002
    %v3004 = vcombine.high %v3003, %v3003
    %v3006 = vunpack.c.l.s4 1966171168
    %v3007 = vunpack.c.0.s8 %v3006
    %v3008 = vlaneseq
    %v3009 = vshrl.u32 %v3008, 7
    %v3010 = vsub.s32 %v3007, %v3009
    %v3011 = vrot.slane %v3004, %v3010
    %v3013 = vlaneseq
    %vm3014 = vcmp.ge.s32.totalorder %v3013, 0
    %vm3015 = vcmp.lt.s32.totalorder %v3013, 256
    %vm3016 = vmand %vm3014, %vm3015
    %3017 = vst.msk [vmem:[#allocation2] sm:$0x3] %vm3016, %v3011
    // Predicated region
    $region42: #{tpu_custom_call.1} parent=1 // pred_check
      _
    $region43: #{tpu_custom_call.1} parent=1 // pred_check_branch
      %3019 = sbr.rel (0) target = $region45
    $region44: #{tpu_custom_call.1} parent=1 // pred_region
      %s3021 = ssub.s32 32, 32
      %3022 = vsyncadd [#allocation3], %s3021
      %s3024 = sshll.u32 [#allocation2], 4
      %s3025 = int_to_ptr.vmem [resolvable:$true] %s3024
      %3027 = dma.vmem_to_hbm [thread:$0]  %s3025, 32, %s10, [#allocation3]
    $region45: #{tpu_custom_call.1} parent=1 // pred_fallthru
      _
    // Predicated region
    $region46: #{tpu_custom_call.1} parent=1 // pred_check
      _
    $region47: #{tpu_custom_call.1} parent=1 // pred_check_branch
      %3029 = sbr.rel (0) target = $region49
    $region48: #{tpu_custom_call.1} parent=1 // pred_region
      %3030 = dma.done [#allocation3], 32
    $region49: #{tpu_custom_call.1} parent=1 // pred_fallthru
      _
    %3031 = vsyncpa [#allocation3], 1

</llo_original>
